<compile_context>
chip_gen: v6e
topology: v6e:2x2x1
jax: 0.10.0
libtpu: 0.0.40
codegen_flags: <defaults>
</compile_context>

<pallas_src>
import functools
import math

import numpy as np
import jax
import jax.numpy as jnp
from jax import lax
from jax.experimental import pallas as pl
from jax.experimental.pallas import tpu as pltpu

_LN_EPS = 1e-5
_NEG_INF = -1e9


def _vmem_limit_bytes():
    try:
        cap = getattr(pltpu.get_tpu_info(), "vmem_capacity_bytes",
                      128 * 1024 * 1024)
    except Exception:
        cap = 128 * 1024 * 1024
    # 3/4 of physical: 96 MiB on v5e/v6e, 48 MiB on v7x.
    return int(min(cap * 3 // 4, 96 * 1024 * 1024))


_VMEM_LIMIT = _vmem_limit_bytes()


def _pick_tile(dim, prefs):
    """Largest preferred tile that divides `dim`, else the full dimension."""
    for p in prefs:
        if dim % p == 0:
            return p
    return dim


def _layer_norm(y, g, b):
    mu = jnp.mean(y, axis=-1, keepdims=True)
    var = jnp.mean(jnp.square(y - mu), axis=-1, keepdims=True)
    return (y - mu) * lax.rsqrt(var + _LN_EPS) * g + b


# ----------------------------------------------------------------------------
# Tiled matmul (+ bias, optional ReLU) kernel.  bf16 MXU inputs, f32 VMEM
# accumulator, configurable output dtype (bf16 for activation intermediates).
# ----------------------------------------------------------------------------

def _matmul_kernel(x_ref, w_ref, b_ref, o_ref, acc_ref, *, activation):
    @pl.when(pl.program_id(2) == 0)
    def _():
        acc_ref[...] = jnp.zeros_like(acc_ref)

    acc_ref[...] += jnp.dot(
        x_ref[...].astype(jnp.bfloat16), w_ref[...],
        preferred_element_type=jnp.float32)

    @pl.when(pl.program_id(2) == pl.num_programs(2) - 1)
    def _():
        y = acc_ref[...] + b_ref[...]
        if activation == "relu":
            y = jnp.maximum(y, 0.0)
        o_ref[...] = y.astype(o_ref.dtype)


def matmul_bias(x2d, w_bf16, b, *, activation=None, out_dtype=jnp.float32):
    """(M,K) @ (K,N) bf16 + (N,)  ->  (M,N) out_dtype, tiled over M/N/K."""
    M, K = x2d.shape
    Kw, N = w_bf16.shape
    assert Kw == K
    tm = _pick_tile(M, (256, 128, 64, 32, 16, 8))
    tn = _pick_tile(N, (512, 256, 128))
    tk = _pick_tile(K, (512, 256, 128))
    grid = (pl.cdiv(M, tm), pl.cdiv(N, tn), pl.cdiv(K, tk))
    kernel = functools.partial(_matmul_kernel, activation=activation)
    flops = 2 * M * N * K
    bytes_accessed = (4 * M * K + 2 * K * N + 4 * N
                      + M * N * jnp.dtype(out_dtype).itemsize)
    return pl.pallas_call(
        kernel,
        grid=grid,
        in_specs=[
            pl.BlockSpec((tm, tk), lambda i, j, k: (i, k)),
            pl.BlockSpec((tk, tn), lambda i, j, k: (k, j)),
            pl.BlockSpec((1, tn), lambda i, j, k: (0, j)),
        ],
        out_specs=pl.BlockSpec((tm, tn), lambda i, j, k: (i, j)),
        out_shape=jax.ShapeDtypeStruct((M, N), out_dtype),
        scratch_shapes=[pltpu.VMEM((tm, tn), jnp.float32)],
        compiler_params=pltpu.CompilerParams(
            dimension_semantics=("parallel", "parallel", "arbitrary"),
            vmem_limit_bytes=_VMEM_LIMIT),
        cost_estimate=pl.CostEstimate(
            flops=int(flops), transcendentals=0,
            bytes_accessed=int(bytes_accessed)),
    )(x2d, w_bf16, b.reshape(1, N).astype(jnp.float32))


# ----------------------------------------------------------------------------
# Tiled matmul with fused bias + residual-add + LayerNorm epilogue (fc2 + LN3)
# ----------------------------------------------------------------------------

def _matmul_ln_kernel(x_ref, w_ref, b_ref, r_ref, g_ref, beta_ref, o_ref,
                      acc_ref):
    @pl.when(pl.program_id(1) == 0)
    def _():
        acc_ref[...] = jnp.zeros_like(acc_ref)

    acc_ref[...] += jnp.dot(
        x_ref[...].astype(jnp.bfloat16), w_ref[...],
        preferred_element_type=jnp.float32)

    @pl.when(pl.program_id(1) == pl.num_programs(1) - 1)
    def _():
        y = acc_ref[...] + b_ref[...] + r_ref[...]
        o_ref[...] = _layer_norm(y, g_ref[...], beta_ref[...])


def matmul_bias_add_ln(x2d, w_bf16, b, residual2d, gamma, beta):
    """LayerNorm(residual + x @ w + b) * gamma + beta, tiled over M/K."""
    M, K = x2d.shape
    Kw, D = w_bf16.shape
    assert Kw == K and residual2d.shape == (M, D)
    tm = _pick_tile(M, (256, 128, 64, 32, 16, 8))
    tk = _pick_tile(K, (512, 256, 128))
    grid = (pl.cdiv(M, tm), pl.cdiv(K, tk))
    flops = 2 * M * D * K
    bytes_accessed = (x2d.dtype.itemsize * M * K + 2 * K * D + 4 * M * D * 2)
    return pl.pallas_call(
        _matmul_ln_kernel,
        grid=grid,
        in_specs=[
            pl.BlockSpec((tm, tk), lambda i, k: (i, k)),
            pl.BlockSpec((tk, D), lambda i, k: (k, 0)),
            pl.BlockSpec((1, D), lambda i, k: (0, 0)),
            pl.BlockSpec((tm, D), lambda i, k: (i, 0)),
            pl.BlockSpec((1, D), lambda i, k: (0, 0)),
            pl.BlockSpec((1, D), lambda i, k: (0, 0)),
        ],
        out_specs=pl.BlockSpec((tm, D), lambda i, k: (i, 0)),
        out_shape=jax.ShapeDtypeStruct((M, D), jnp.float32),
        scratch_shapes=[pltpu.VMEM((tm, D), jnp.float32)],
        compiler_params=pltpu.CompilerParams(
            dimension_semantics=("parallel", "arbitrary"),
            vmem_limit_bytes=_VMEM_LIMIT),
        cost_estimate=pl.CostEstimate(
            flops=int(flops), transcendentals=0,
            bytes_accessed=int(bytes_accessed)),
    )(x2d, w_bf16,
      b.reshape(1, D).astype(jnp.float32),
      residual2d,
      gamma.reshape(1, D).astype(jnp.float32),
      beta.reshape(1, D).astype(jnp.float32))


# ----------------------------------------------------------------------------
# Fused multi-head attention kernels.
#   * per-head Q/K/V are ref-sliced via static column offsets,
#   * per-head contexts land in a bf16 (T, D) VMEM scratch,
#   * one (T,D)@(D,D) out-projection, then bias + residual + LayerNorm.
# ----------------------------------------------------------------------------

def _attention_heads(q_ref, q_off, kv_ref, k_off, v_off, bias, ctx_ref, w_ref,
                     *, head_num, head_dim, scale, exact_softmax):
    for h in range(head_num):
        a, b = h * head_dim, (h + 1) * head_dim
        q_h = q_ref[:, q_off + a:q_off + b].astype(jnp.bfloat16)
        k_h = kv_ref[:, k_off + a:k_off + b].astype(jnp.bfloat16)
        v_h = kv_ref[:, v_off + a:v_off + b].astype(jnp.bfloat16)

        # (T, S) scores without materializing a transposed K.
        s = lax.dot_general(q_h, k_h, (((1,), (1,)), ((), ())),
                            preferred_element_type=jnp.float32) * scale
        s = s + bias
        m = jnp.max(s, axis=-1, keepdims=True)
        e = jnp.exp(s - m)
        denom = jnp.sum(e, axis=-1, keepdims=True)
        if exact_softmax:
            p = e / denom                                 # exact for emitted w
        else:
            p = e * pl.reciprocal(denom, approx=True)     # EUP, ~free
        if w_ref is not None:
            w_ref[h] = p
        ctx_ref[:, a:b] = jnp.dot(
            p.astype(jnp.bfloat16), v_h,
            preferred_element_type=jnp.float32).astype(ctx_ref.dtype)


def _self_attn_ln_kernel(*refs, head_num, head_dim, has_attn_mask):
    if has_attn_mask:
        (qkv_ref, kpb_ref, ab_ref, wo_ref, bo_ref, res_ref, g_ref, beta_ref,
         o_ref, ctx_ref) = refs
    else:
        (qkv_ref, kpb_ref, wo_ref, bo_ref, res_ref, g_ref, beta_ref,
         o_ref, ctx_ref) = refs
        ab_ref = None
    D = head_num * head_dim
    scale = 1.0 / math.sqrt(head_dim)

    bias = kpb_ref[...]                       # (1, T) key-padding bias
    if ab_ref is not None:
        bias = bias + ab_ref[...]             # + (T, T) attn mask

    _attention_heads(qkv_ref, 0, qkv_ref, D, 2 * D, bias, ctx_ref, None,
                     head_num=head_num, head_dim=head_dim, scale=scale,
                     exact_softmax=False)

    proj = jnp.dot(ctx_ref[...], wo_ref[...],
                   preferred_element_type=jnp.float32)
    y = proj + bo_ref[...] + res_ref[...]
    o_ref[...] = _layer_norm(y, g_ref[...], beta_ref[...])


def _en_de_attn_ln_kernel(x1_ref, kv_ref, kpb_ref, wq_ref, bq_ref, wo_ref,
                          bo_ref, g_ref, beta_ref, o_ref, w_ref,
                          q_scr, ctx_scr, *, head_num, head_dim):
    D = head_num * head_dim
    scale = 1.0 / math.sqrt(head_dim)

    # Fused Q projection: (T, D) = x1 @ Wq + bq  (bf16 staged in VMEM scratch).
    q = jnp.dot(x1_ref[...].astype(jnp.bfloat16), wq_ref[...],
                preferred_element_type=jnp.float32) + bq_ref[...]
    q_scr[...] = q.astype(q_scr.dtype)

    bias = kpb_ref[...]                        # (1, S) key-padding bias only

    _attention_heads(q_scr, 0, kv_ref, 0, D, bias, ctx_scr, w_ref,
                     head_num=head_num, head_dim=head_dim, scale=scale,
                     exact_softmax=True)

    proj = jnp.dot(ctx_scr[...], wo_ref[...],
                   preferred_element_type=jnp.float32)
    y = proj + bo_ref[...] + x1_ref[...]       # residual = x1 (post-LN1)
    o_ref[...] = _layer_norm(y, g_ref[...], beta_ref[...])


def self_attn_block(qkv, kp_bias, attn_bias, wo_bf16, bo, residual,
                    gamma, beta, head_num):
    """softmax(QK^T/sqrt(hd)+mask)V -> out-proj -> +res -> LN.  Q/K/V come
    from a single fused (B,T,3D) bf16 tensor, read once per program."""
    B, T, D3 = qkv.shape
    D = residual.shape[-1]
    assert D3 == 3 * D and D % head_num == 0
    hd = D // head_num
    has_mask = attn_bias is not None

    in_arrays = [qkv, kp_bias]
    in_specs = [pl.BlockSpec((None, T, D3), lambda b: (b, 0, 0)),
                pl.BlockSpec((None, 1, T), lambda b: (b, 0, 0))]
    if has_mask:
        in_arrays.append(attn_bias)
        in_specs.append(pl.BlockSpec((T, T), lambda b: (0, 0)))
    in_arrays += [wo_bf16, bo.reshape(1, D).astype(jnp.float32), residual,
                  gamma.reshape(1, D).astype(jnp.float32),
                  beta.reshape(1, D).astype(jnp.float32)]
    in_specs += [pl.BlockSpec((D, D), lambda b: (0, 0)),
                 pl.BlockSpec((1, D), lambda b: (0, 0)),
                 pl.BlockSpec((None, T, D), lambda b: (b, 0, 0)),
                 pl.BlockSpec((1, D), lambda b: (0, 0)),
                 pl.BlockSpec((1, D), lambda b: (0, 0))]

    kernel = functools.partial(_self_attn_ln_kernel, head_num=head_num,
                               head_dim=hd, has_attn_mask=has_mask)
    flops = B * (head_num * 4 * T * T * hd + 2 * T * D * D)
    bytes_accessed = 2 * B * T * D3 + 4 * B * T * D * 2 + 2 * D * D

    return pl.pallas_call(
        kernel,
        grid=(B,),
        in_specs=in_specs,
        out_specs=pl.BlockSpec((None, T, D), lambda b: (b, 0, 0)),
        out_shape=jax.ShapeDtypeStruct((B, T, D), jnp.float32),
        scratch_shapes=[pltpu.VMEM((T, D), jnp.bfloat16)],
        compiler_params=pltpu.CompilerParams(
            dimension_semantics=("parallel",),
            vmem_limit_bytes=_VMEM_LIMIT),
        cost_estimate=pl.CostEstimate(
            flops=int(flops), transcendentals=int(B * head_num * T * T),
            bytes_accessed=int(bytes_accessed)),
    )(*in_arrays)


def en_de_attn_block(x1, kv, kp_bias, wq_bf16, bq, wo_bf16, bo,
                     gamma, beta, head_num):
    """Fused: Q-projection of x1, attention over (K,V) from a single fused
    (B,S,2D) bf16 tensor, out-proj, +x1 residual, LN.  Emits per-head
    attention weights (exact softmax)."""
    B, T, D = x1.shape
    _, S, D2 = kv.shape
    assert D2 == 2 * D and D % head_num == 0
    hd = D // head_num

    kernel = functools.partial(_en_de_attn_ln_kernel, head_num=head_num,
                               head_dim=hd)
    flops = B * (2 * T * D * D + head_num * 4 * T * S * hd + 2 * T * D * D)
    bytes_accessed = (4 * B * T * D * 2 + 2 * B * S * D2 + 2 * 2 * D * D
                      + 4 * B * head_num * T * S)

    outs = pl.pallas_call(
        kernel,
        grid=(B,),
        in_specs=[
            pl.BlockSpec((None, T, D), lambda b: (b, 0, 0)),      # x1
            pl.BlockSpec((None, S, D2), lambda b: (b, 0, 0)),     # fused KV
            pl.BlockSpec((None, 1, S), lambda b: (b, 0, 0)),      # key-pad bias
            pl.BlockSpec((D, D), lambda b: (0, 0)),               # Wq
            pl.BlockSpec((1, D), lambda b: (0, 0)),               # bq
            pl.BlockSpec((D, D), lambda b: (0, 0)),               # Wo
            pl.BlockSpec((1, D), lambda b: (0, 0)),               # bo
            pl.BlockSpec((1, D), lambda b: (0, 0)),               # gamma
            pl.BlockSpec((1, D), lambda b: (0, 0)),               # beta
        ],
        out_specs=[
            pl.BlockSpec((None, T, D), lambda b: (b, 0, 0)),
            pl.BlockSpec((None, head_num, T, S), lambda b: (b, 0, 0, 0)),
        ],
        out_shape=[
            jax.ShapeDtypeStruct((B, T, D), jnp.float32),
            jax.ShapeDtypeStruct((B, head_num, T, S), jnp.float32),
        ],
        scratch_shapes=[pltpu.VMEM((T, D), jnp.bfloat16),   # projected Q
                        pltpu.VMEM((T, D), jnp.bfloat16)],  # per-head contexts
        compiler_params=pltpu.CompilerParams(
            dimension_semantics=("parallel",),
            vmem_limit_bytes=_VMEM_LIMIT),
        cost_estimate=pl.CostEstimate(
            flops=int(flops), transcendentals=int(B * head_num * T * S),
            bytes_accessed=int(bytes_accessed)),
    )(x1, kv, kp_bias,
      wq_bf16, bq.reshape(1, D).astype(jnp.float32),
      wo_bf16, bo.reshape(1, D).astype(jnp.float32),
      gamma.reshape(1, D).astype(jnp.float32),
      beta.reshape(1, D).astype(jnp.float32))
    return outs[0], outs[1]


# ----------------------------------------------------------------------------
# Decoder layer forward (post_norm=True path; dropouts are identity in eval)
# ----------------------------------------------------------------------------

def transformer_decoder_layer(params, net_input, padding_mask, attn_mask,
                              prev_input, prev_input_padding_mask, head_num):
    assert net_input.shape[0] == prev_input.shape[0]
    B, T, D = net_input.shape
    S = prev_input.shape[1]
    M = B * T
    x2d = net_input.reshape(M, D)

    # --- self-attention block (fused QKV proj -> fused attn+out-proj+LN1) ---
    qkv = matmul_bias(x2d, params["sa_wqkv"], params["sa_bqkv"],
                      out_dtype=jnp.bfloat16).reshape(B, T, 3 * D)
    self_kp_bias = jnp.where(padding_mask, _NEG_INF, 0.0).astype(
        jnp.float32)[:, None, :]                               # (B, 1, T)
    self_attn_bias = (attn_mask.astype(jnp.float32)
                      if attn_mask is not None else None)      # (T, T) or None
    x1 = self_attn_block(qkv, self_kp_bias, self_attn_bias,
                         params["sa_wo"], params["sa_bo"], net_input,
                         params["ln1_g"], params["ln1_b"], head_num)

    # --- encoder-decoder attention (Q proj fused into the MHA kernel) ---
    kv_ed = matmul_bias(prev_input.reshape(B * S, D), params["ed_wkv"],
                        params["ed_bkv"], out_dtype=jnp.bfloat16
                        ).reshape(B, S, 2 * D)
    ed_kp_bias = jnp.where(prev_input_padding_mask, _NEG_INF, 0.0).astype(
        jnp.float32)[:, None, :]                               # (B, 1, S)
    x2, attn_weight = en_de_attn_block(
        x1, kv_ed, ed_kp_bias, params["ed_wq"], params["ed_bq"],
        params["ed_wo"], params["ed_bo"], params["ln2_g"], params["ln2_b"],
        head_num)

    # --- SVD-reparameterized FFN (input is net_input, per the reference) ---
    h = matmul_bias(x2d, params["svd_weight"], params["fc1_zero_b"],
                    activation="relu", out_dtype=jnp.bfloat16)
    out = matmul_bias_add_ln(h, params["fc2_w"], params["fc2_b"],
                             x2.reshape(M, D), params["ln3_g"],
                             params["ln3_b"]).reshape(B, T, D)
    return out, attn_weight


# ----------------------------------------------------------------------------
# Deterministic parameter initialization
# ----------------------------------------------------------------------------

def xavier_uniform(key, shape):
    fan_in, fan_out = shape
    bound = math.sqrt(6.0 / (fan_in + fan_out))
    return jax.random.uniform(key, shape, jnp.float32, -bound, bound)


def _attn_weights(key, model_dim):
    ks = jax.random.split(key, 4)
    wq = xavier_uniform(ks[0], (model_dim, model_dim))
    wk = xavier_uniform(ks[1], (model_dim, model_dim))
    wv = xavier_uniform(ks[2], (model_dim, model_dim))
    wo = xavier_uniform(ks[3], (model_dim, model_dim))
    return wq, wk, wv, wo


def init_params(key, head_num, model_dim, ffn_dim):
    k_sa, k_ed, k_svd, k_fc2 = jax.random.split(key, 4)
    zD = jnp.zeros((model_dim,), jnp.float32)

    # Self-attention: fused QKV weight (D, 3D).
    wq, wk, wv, wo = _attn_weights(k_sa, model_dim)
    sa_wqkv = jnp.concatenate([wq, wk, wv], axis=1).astype(jnp.bfloat16)
    sa_bqkv = jnp.zeros((3 * model_dim,), jnp.float32)

    # Encoder-decoder attention: separate Q and fused KV (D, 2D).
    ewq, ewk, ewv, ewo = _attn_weights(k_ed, model_dim)
    ed_wq = ewq.astype(jnp.bfloat16)
    ed_wkv = jnp.concatenate([ewk, ewv], axis=1).astype(jnp.bfloat16)
    ed_bkv = jnp.zeros((2 * model_dim,), jnp.float32)

    # SVD re-parameterization (matches decoder_svdchange):
    # weight = U @ diag(S)_padded @ V^T, applied as net_input @ weight.
    temp_weight = np.asarray(jax.device_get(
        jax.random.normal(k_svd, (model_dim, ffn_dim), jnp.float32)))
    U, Svals, Vt = np.linalg.svd(temp_weight, full_matrices=True)
    E = np.zeros((model_dim, ffn_dim), np.float32)
    m = min(model_dim, ffn_dim)
    E[np.arange(m), np.arange(m)] = Svals
    svd_weight = jnp.asarray(U.astype(np.float32) @ E @ Vt.astype(np.float32))

    return {
        "sa_wqkv": sa_wqkv, "sa_bqkv": sa_bqkv,
        "sa_wo": wo.astype(jnp.bfloat16), "sa_bo": zD,
        "ed_wq": ed_wq, "ed_bq": zD,
        "ed_wkv": ed_wkv, "ed_bkv": ed_bkv,
        "ed_wo": ewo.astype(jnp.bfloat16), "ed_bo": zD,
        "ln1_g": jnp.ones((model_dim,), jnp.float32), "ln1_b": zD,
        "ln2_g": jnp.ones((model_dim,), jnp.float32), "ln2_b": zD,
        "ln3_g": jnp.ones((model_dim,), jnp.float32), "ln3_b": zD,
        "svd_weight": svd_weight.astype(jnp.bfloat16),      # (D, ffn_dim)
        "fc1_zero_b": jnp.zeros((ffn_dim,), jnp.float32),
        "fc2_w": xavier_uniform(k_fc2, (ffn_dim, model_dim)).astype(
            jnp.bfloat16),                                   # x @ W convention
        "fc2_b": zD,
    }


# ----------------------------------------------------------------------------
# Main
# ----------------------------------------------------------------------------

if __name__ == "__main__":
    B, T, S = 2, 8, 8
    head_num, model_dim, ffn_dim = 4, 32, 64

    key = jax.random.PRNGKey(0)
    k_params, k_x, k_prev = jax.random.split(key, 3)

    params = init_params(k_params, head_num, model_dim, ffn_dim)

    net_input = jax.random.normal(k_x, (B, T, model_dim), jnp.float32)
    prev_input = jax.random.normal(k_prev, (B, S, model_dim), jnp.float32)

    padding_mask = jnp.zeros((B, T), dtype=bool)                  # no tgt pads
    prev_padding_mask = jnp.zeros((B, S), dtype=bool).at[1, S - 1].set(True)
    # causal additive attention mask for self-attention
    attn_mask = jnp.where(jnp.triu(jnp.ones((T, T), dtype=bool), k=1),
                          _NEG_INF, 0.0).astype(jnp.float32)

    fwd = jax.jit(functools.partial(transformer_decoder_layer,
                                    head_num=head_num))
    out, attn_w = fwd(params, net_input, padding_mask, attn_mask,
                      prev_input, prev_padding_mask)

    out = jax.block_until_ready(out)
    attn_w = jax.block_until_ready(attn_w)

    assert out.shape == (B, T, model_dim)
    assert attn_w.shape == (B, head_num, T, S)
    assert bool(jnp.all(jnp.isfinite(out)))
    assert bool(jnp.all(jnp.isfinite(attn_w)))
    # attention rows over valid keys should sum to ~1 (exact softmax divide)
    assert bool(jnp.all(jnp.abs(jnp.sum(attn_w, axis=-1) - 1.0) < 1e-3))
    print("KERNEL_OK")
</pallas_src>

<mosaic_0001>
module attributes {stable_mosaic.version = 11 : i64} {
  func.func @_matmul_kernel(%arg0: i32, %arg1: i32, %arg2: i32, %arg3: memref<16x32xf32, #tpu.memory_space<vmem>>, %arg4: memref<32x64xbf16, #tpu.memory_space<vmem>>, %arg5: memref<1x64xf32, #tpu.memory_space<vmem>>, %arg6: memref<16x64xbf16, #tpu.memory_space<vmem>>, %arg7: memref<16x64xf32, #tpu.memory_space<vmem>>) attributes {dimension_semantics = [#tpu.dimension_semantics<parallel>, #tpu.dimension_semantics<parallel>, #tpu.dimension_semantics<arbitrary>], iteration_bounds = array<i64: 1, 1, 1>, scalar_prefetch = 0 : i64, scratch_operands = 1 : i64, tpu.core_type = #tpu.core_type<tc>, window_params = [{transform_indices = @transform_0, window_bounds = array<i64: 16, 32>}, {transform_indices = @transform_1, window_bounds = array<i64: 32, 64>}, {transform_indices = @transform_2, window_bounds = array<i64: 1, 64>}, {transform_indices = @transform_3, window_bounds = array<i64: 16, 64>}]} {
    %c0_i32 = arith.constant 0 : i32
    %0 = arith.cmpi eq, %arg2, %c0_i32 : i32
    %1 = arith.extui %0 : i1 to i32
    %c0_i32_0 = arith.constant 0 : i32
    %2 = arith.cmpi ne, %1, %c0_i32_0 : i32
    scf.if %2 {
      %cst_10 = arith.constant 0.000000e+00 : f32
      %13 = vector.broadcast %cst_10 : f32 to vector<16x64xf32>
      %c0_11 = arith.constant 0 : index
      %c0_12 = arith.constant 0 : index
      %14 = vector.load %arg7[%c0_11, %c0_12] : memref<16x64xf32, #tpu.memory_space<vmem>>, vector<16x64xf32>
      tpu.vector_store %arg7[%c0_11, %c0_12], %13 {strides = array<i32>} : memref<16x64xf32, #tpu.memory_space<vmem>>, vector<16x64xf32>,
    } else {
    }
    %c0 = arith.constant 0 : index
    %c0_1 = arith.constant 0 : index
    %3 = vector.load %arg7[%c0, %c0_1] : memref<16x64xf32, #tpu.memory_space<vmem>>, vector<16x64xf32>
    %c0_2 = arith.constant 0 : index
    %c0_3 = arith.constant 0 : index
    %4 = vector.load %arg3[%c0_2, %c0_3] : memref<16x32xf32, #tpu.memory_space<vmem>>, vector<16x32xf32>
    %5 = arith.truncf %4 : vector<16x32xf32> to vector<16x32xbf16>
    %c0_4 = arith.constant 0 : index
    %c0_5 = arith.constant 0 : index
    %6 = vector.load %arg4[%c0_4, %c0_5] : memref<32x64xbf16, #tpu.memory_space<vmem>>, vector<32x64xbf16>
    %cst = arith.constant dense<0.000000e+00> : vector<16x64xf32>
    %7 = tpu.matmul %5, %6, %cst {dimension_numbers = #tpu.dot_dimension_numbers<[1], [0], [0], [1], [0, 0, 1, 1], [], []>} : vector<16x32xbf16>, vector<32x64xbf16>, vector<16x64xf32> -> vector<16x64xf32>
    %8 = arith.addf %3, %7 : vector<16x64xf32>
    %c0_6 = arith.constant 0 : index
    %c0_7 = arith.constant 0 : index
    %9 = vector.load %arg7[%c0_6, %c0_7] : memref<16x64xf32, #tpu.memory_space<vmem>>, vector<16x64xf32>
    tpu.vector_store %arg7[%c0_6, %c0_7], %8 {strides = array<i32>} : memref<16x64xf32, #tpu.memory_space<vmem>>, vector<16x64xf32>,
    %c0_i32_8 = arith.constant 0 : i32
    %10 = arith.cmpi eq, %arg2, %c0_i32_8 : i32
    %11 = arith.extui %10 : i1 to i32
    %c0_i32_9 = arith.constant 0 : i32
    %12 = arith.cmpi ne, %11, %c0_i32_9 : i32
    scf.if %12 {
      %c0_10 = arith.constant 0 : index
      %c0_11 = arith.constant 0 : index
      %13 = vector.load %arg7[%c0_10, %c0_11] : memref<16x64xf32, #tpu.memory_space<vmem>>, vector<16x64xf32>
      %c0_12 = arith.constant 0 : index
      %c0_13 = arith.constant 0 : index
      %14 = vector.load %arg5[%c0_12, %c0_13] : memref<1x64xf32, #tpu.memory_space<vmem>>, vector<1x64xf32>
      %15 = vector.broadcast %14 : vector<1x64xf32> to vector<16x64xf32>
      %16 = arith.addf %13, %15 : vector<16x64xf32>
      %17 = arith.truncf %16 : vector<16x64xf32> to vector<16x64xbf16>
      %c0_14 = arith.constant 0 : index
      %c0_15 = arith.constant 0 : index
      %18 = vector.load %arg6[%c0_14, %c0_15] : memref<16x64xbf16, #tpu.memory_space<vmem>>, vector<16x64xbf16>
      tpu.vector_store %arg6[%c0_14, %c0_15], %17 {strides = array<i32>} : memref<16x64xbf16, #tpu.memory_space<vmem>>, vector<16x64xbf16>,
    } else {
    }
    return
  }
  func.func @transform_0(%arg0: i32, %arg1: i32, %arg2: i32) -> (i32, i32) {
    %c0_i32 = arith.constant 0 : i32
    return %arg0, %arg2 : i32, i32
  }
  func.func @transform_1(%arg0: i32, %arg1: i32, %arg2: i32) -> (i32, i32) {
    %c0_i32 = arith.constant 0 : i32
    return %arg2, %arg1 : i32, i32
  }
  func.func @transform_2(%arg0: i32, %arg1: i32, %arg2: i32) -> (i32, i32) {
    %c0_i32 = arith.constant 0 : i32
    %c0_i32_0 = arith.constant 0 : i32
    return %c0_i32, %arg1 : i32, i32
  }
  func.func @transform_3(%arg0: i32, %arg1: i32, %arg2: i32) -> (i32, i32) {
    %c0_i32 = arith.constant 0 : i32
    return %arg0, %arg1 : i32, i32
  }
}

module attributes {stable_mosaic.version = 11 : i64} {
  func.func @_self_attn_ln_kernel(%arg0: i32, %arg1: memref<1x8x96xbf16, #tpu.memory_space<vmem>>, %arg2: memref<1x1x8xf32, #tpu.memory_space<vmem>>, %arg3: memref<8x8xf32, #tpu.memory_space<vmem>>, %arg4: memref<32x32xbf16, #tpu.memory_space<vmem>>, %arg5: memref<1x32xf32, #tpu.memory_space<vmem>>, %arg6: memref<1x8x32xf32, #tpu.memory_space<vmem>>, %arg7: memref<1x32xf32, #tpu.memory_space<vmem>>, %arg8: memref<1x32xf32, #tpu.memory_space<vmem>>, %arg9: memref<1x8x32xf32, #tpu.memory_space<vmem>>, %arg10: memref<8x32xbf16, #tpu.memory_space<vmem>>) attributes {dimension_semantics = [#tpu.dimension_semantics<parallel>], iteration_bounds = array<i64: 2>, scalar_prefetch = 0 : i64, scratch_operands = 1 : i64, tpu.core_type = #tpu.core_type<tc>, window_params = [{transform_indices = @transform_0, window_bounds = array<i64: 1, 8, 96>}, {transform_indices = @transform_1, window_bounds = array<i64: 1, 1, 8>}, {pipeline_mode = #tpu.pipeline_mode<synchronous>, transform_indices = @transform_2, window_bounds = array<i64: 8, 8>}, {pipeline_mode = #tpu.pipeline_mode<synchronous>, transform_indices = @transform_3, window_bounds = array<i64: 32, 32>}, {pipeline_mode = #tpu.pipeline_mode<synchronous>, transform_indices = @transform_4, window_bounds = array<i64: 1, 32>}, {transform_indices = @transform_5, window_bounds = array<i64: 1, 8, 32>}, {pipeline_mode = #tpu.pipeline_mode<synchronous>, transform_indices = @transform_6, window_bounds = array<i64: 1, 32>}, {pipeline_mode = #tpu.pipeline_mode<synchronous>, transform_indices = @transform_7, window_bounds = array<i64: 1, 32>}, {transform_indices = @transform_8, window_bounds = array<i64: 1, 8, 32>}]} {
    %c0 = arith.constant 0 : index
    %c0_0 = arith.constant 0 : index
    %c0_1 = arith.constant 0 : index
    %0 = vector.load %arg2[%c0, %c0_0, %c0_1] : memref<1x1x8xf32, #tpu.memory_space<vmem>>, vector<1x1x8xf32>
    %1 = vector.shape_cast %0 : vector<1x1x8xf32> to vector<1x8xf32>
    %c0_2 = arith.constant 0 : index
    %c0_3 = arith.constant 0 : index
    %2 = vector.load %arg3[%c0_2, %c0_3] : memref<8x8xf32, #tpu.memory_space<vmem>>, vector<8x8xf32>
    %3 = vector.broadcast %1 : vector<1x8xf32> to vector<8x8xf32>
    %4 = arith.addf %3, %2 : vector<8x8xf32>
    %c0_4 = arith.constant 0 : index
    %c0_5 = arith.constant 0 : index
    %c0_6 = arith.constant 0 : index
    %5 = vector.load %arg1[%c0_4, %c0_5, %c0_6] : memref<1x8x96xbf16, #tpu.memory_space<vmem>>, vector<1x8x8xbf16>
    %6 = vector.shape_cast %5 : vector<1x8x8xbf16> to vector<8x8xbf16>
    %c0_7 = arith.constant 0 : index
    %c0_8 = arith.constant 0 : index
    %c32 = arith.constant 32 : index
    %7 = vector.load %arg1[%c0_7, %c0_8, %c32] : memref<1x8x96xbf16, #tpu.memory_space<vmem>>, vector<1x8x8xbf16>
    %8 = vector.shape_cast %7 : vector<1x8x8xbf16> to vector<8x8xbf16>
    %c0_9 = arith.constant 0 : index
    %c0_10 = arith.constant 0 : index
    %c64 = arith.constant 64 : index
    %9 = vector.load %arg1[%c0_9, %c0_10, %c64] : memref<1x8x96xbf16, #tpu.memory_space<vmem>>, vector<1x8x8xbf16>
    %10 = vector.shape_cast %9 : vector<1x8x8xbf16> to vector<8x8xbf16>
    %cst = arith.constant dense<0.000000e+00> : vector<8x8xf32>
    %11 = tpu.matmul %6, %8, %cst {dimension_numbers = #tpu.dot_dimension_numbers<[1], [1], [0], [0], [0, 0, 1, 0], [], []>} : vector<8x8xbf16>, vector<8x8xbf16>, vector<8x8xf32> -> vector<8x8xf32>
    %cst_11 = arith.constant 0.353553385 : f32
    %12 = vector.broadcast %cst_11 : f32 to vector<8x8xf32>
    %13 = arith.mulf %11, %12 : vector<8x8xf32>
    %14 = arith.addf %13, %4 : vector<8x8xf32>
    %cst_12 = arith.constant dense<0xFF800000> : vector<8xf32>
    %15 = vector.multi_reduction <maximumf>, %14, %cst_12 [1] : vector<8x8xf32> to vector<8xf32>
    %16 = vector.shape_cast %15 : vector<8xf32> to vector<8x1xf32>
    %17 = vector.broadcast %16 : vector<8x1xf32> to vector<8x8xf32>
    %18 = arith.subf %14, %17 : vector<8x8xf32>
    %19 = math.exp %18 : vector<8x8xf32>
    %cst_13 = arith.constant dense<0.000000e+00> : vector<8xf32>
    %20 = vector.multi_reduction <add>, %19, %cst_13 [1] : vector<8x8xf32> to vector<8xf32>
    %21 = vector.shape_cast %20 : vector<8xf32> to vector<8x1xf32>
    %22 = tpu.reciprocal %21 {approx = true} : vector<8x1xf32> -> vector<8x1xf32>
    %23 = vector.broadcast %22 : vector<8x1xf32> to vector<8x8xf32>
    %24 = arith.mulf %19, %23 : vector<8x8xf32>
    %25 = arith.truncf %24 : vector<8x8xf32> to vector<8x8xbf16>
    %cst_14 = arith.constant dense<0.000000e+00> : vector<8x8xf32>
    %26 = tpu.matmul %25, %10, %cst_14 {dimension_numbers = #tpu.dot_dimension_numbers<[1], [0], [0], [1], [0, 0, 1, 1], [], []>} : vector<8x8xbf16>, vector<8x8xbf16>, vector<8x8xf32> -> vector<8x8xf32>
    %27 = arith.truncf %26 : vector<8x8xf32> to vector<8x8xbf16>
    %c0_15 = arith.constant 0 : index
    %c0_16 = arith.constant 0 : index
    %28 = vector.load %arg10[%c0_15, %c0_16] : memref<8x32xbf16, #tpu.memory_space<vmem>>, vector<8x8xbf16>
    tpu.vector_store %arg10[%c0_15, %c0_16], %27 {strides = array<i32>} : memref<8x32xbf16, #tpu.memory_space<vmem>>, vector<8x8xbf16>,
    %c0_17 = arith.constant 0 : index
    %c0_18 = arith.constant 0 : index
    %c8 = arith.constant 8 : index
    %29 = vector.load %arg1[%c0_17, %c0_18, %c8] : memref<1x8x96xbf16, #tpu.memory_space<vmem>>, vector<1x8x8xbf16>
    %30 = vector.shape_cast %29 : vector<1x8x8xbf16> to vector<8x8xbf16>
    %c0_19 = arith.constant 0 : index
    %c0_20 = arith.constant 0 : index
    %c40 = arith.constant 40 : index
    %31 = vector.load %arg1[%c0_19, %c0_20, %c40] : memref<1x8x96xbf16, #tpu.memory_space<vmem>>, vector<1x8x8xbf16>
    %32 = vector.shape_cast %31 : vector<1x8x8xbf16> to vector<8x8xbf16>
    %c0_21 = arith.constant 0 : index
    %c0_22 = arith.constant 0 : index
    %c72 = arith.constant 72 : index
    %33 = vector.load %arg1[%c0_21, %c0_22, %c72] : memref<1x8x96xbf16, #tpu.memory_space<vmem>>, vector<1x8x8xbf16>
    %34 = vector.shape_cast %33 : vector<1x8x8xbf16> to vector<8x8xbf16>
    %cst_23 = arith.constant dense<0.000000e+00> : vector<8x8xf32>
    %35 = tpu.matmul %30, %32, %cst_23 {dimension_numbers = #tpu.dot_dimension_numbers<[1], [1], [0], [0], [0, 0, 1, 0], [], []>} : vector<8x8xbf16>, vector<8x8xbf16>, vector<8x8xf32> -> vector<8x8xf32>
    %cst_24 = arith.constant 0.353553385 : f32
    %36 = vector.broadcast %cst_24 : f32 to vector<8x8xf32>
    %37 = arith.mulf %35, %36 : vector<8x8xf32>
    %38 = arith.addf %37, %4 : vector<8x8xf32>
    %cst_25 = arith.constant dense<0xFF800000> : vector<8xf32>
    %39 = vector.multi_reduction <maximumf>, %38, %cst_25 [1] : vector<8x8xf32> to vector<8xf32>
    %40 = vector.shape_cast %39 : vector<8xf32> to vector<8x1xf32>
    %41 = vector.broadcast %40 : vector<8x1xf32> to vector<8x8xf32>
    %42 = arith.subf %38, %41 : vector<8x8xf32>
    %43 = math.exp %42 : vector<8x8xf32>
    %cst_26 = arith.constant dense<0.000000e+00> : vector<8xf32>
    %44 = vector.multi_reduction <add>, %43, %cst_26 [1] : vector<8x8xf32> to vector<8xf32>
    %45 = vector.shape_cast %44 : vector<8xf32> to vector<8x1xf32>
    %46 = tpu.reciprocal %45 {approx = true} : vector<8x1xf32> -> vector<8x1xf32>
    %47 = vector.broadcast %46 : vector<8x1xf32> to vector<8x8xf32>
    %48 = arith.mulf %43, %47 : vector<8x8xf32>
    %49 = arith.truncf %48 : vector<8x8xf32> to vector<8x8xbf16>
    %cst_27 = arith.constant dense<0.000000e+00> : vector<8x8xf32>
    %50 = tpu.matmul %49, %34, %cst_27 {dimension_numbers = #tpu.dot_dimension_numbers<[1], [0], [0], [1], [0, 0, 1, 1], [], []>} : vector<8x8xbf16>, vector<8x8xbf16>, vector<8x8xf32> -> vector<8x8xf32>
    %51 = arith.truncf %50 : vector<8x8xf32> to vector<8x8xbf16>
    %c0_28 = arith.constant 0 : index
    %c8_29 = arith.constant 8 : index
    %52 = vector.load %arg10[%c0_28, %c8_29] : memref<8x32xbf16, #tpu.memory_space<vmem>>, vector<8x8xbf16>
    tpu.vector_store %arg10[%c0_28, %c8_29], %51 {strides = array<i32>} : memref<8x32xbf16, #tpu.memory_space<vmem>>, vector<8x8xbf16>,
    %c0_30 = arith.constant 0 : index
    %c0_31 = arith.constant 0 : index
    %c16 = arith.constant 16 : index
    %53 = vector.load %arg1[%c0_30, %c0_31, %c16] : memref<1x8x96xbf16, #tpu.memory_space<vmem>>, vector<1x8x8xbf16>
    %54 = vector.shape_cast %53 : vector<1x8x8xbf16> to vector<8x8xbf16>
    %c0_32 = arith.constant 0 : index
    %c0_33 = arith.constant 0 : index
    %c48 = arith.constant 48 : index
    %55 = vector.load %arg1[%c0_32, %c0_33, %c48] : memref<1x8x96xbf16, #tpu.memory_space<vmem>>, vector<1x8x8xbf16>
    %56 = vector.shape_cast %55 : vector<1x8x8xbf16> to vector<8x8xbf16>
    %c0_34 = arith.constant 0 : index
    %c0_35 = arith.constant 0 : index
    %c80 = arith.constant 80 : index
    %57 = vector.load %arg1[%c0_34, %c0_35, %c80] : memref<1x8x96xbf16, #tpu.memory_space<vmem>>, vector<1x8x8xbf16>
    %58 = vector.shape_cast %57 : vector<1x8x8xbf16> to vector<8x8xbf16>
    %cst_36 = arith.constant dense<0.000000e+00> : vector<8x8xf32>
    %59 = tpu.matmul %54, %56, %cst_36 {dimension_numbers = #tpu.dot_dimension_numbers<[1], [1], [0], [0], [0, 0, 1, 0], [], []>} : vector<8x8xbf16>, vector<8x8xbf16>, vector<8x8xf32> -> vector<8x8xf32>
    %cst_37 = arith.constant 0.353553385 : f32
    %60 = vector.broadcast %cst_37 : f32 to vector<8x8xf32>
    %61 = arith.mulf %59, %60 : vector<8x8xf32>
    %62 = arith.addf %61, %4 : vector<8x8xf32>
    %cst_38 = arith.constant dense<0xFF800000> : vector<8xf32>
    %63 = vector.multi_reduction <maximumf>, %62, %cst_38 [1] : vector<8x8xf32> to vector<8xf32>
    %64 = vector.shape_cast %63 : vector<8xf32> to vector<8x1xf32>
    %65 = vector.broadcast %64 : vector<8x1xf32> to vector<8x8xf32>
    %66 = arith.subf %62, %65 : vector<8x8xf32>
    %67 = math.exp %66 : vector<8x8xf32>
    %cst_39 = arith.constant dense<0.000000e+00> : vector<8xf32>
    %68 = vector.multi_reduction <add>, %67, %cst_39 [1] : vector<8x8xf32> to vector<8xf32>
    %69 = vector.shape_cast %68 : vector<8xf32> to vector<8x1xf32>
    %70 = tpu.reciprocal %69 {approx = true} : vector<8x1xf32> -> vector<8x1xf32>
    %71 = vector.broadcast %70 : vector<8x1xf32> to vector<8x8xf32>
    %72 = arith.mulf %67, %71 : vector<8x8xf32>
    %73 = arith.truncf %72 : vector<8x8xf32> to vector<8x8xbf16>
    %cst_40 = arith.constant dense<0.000000e+00> : vector<8x8xf32>
    %74 = tpu.matmul %73, %58, %cst_40 {dimension_numbers = #tpu.dot_dimension_numbers<[1], [0], [0], [1], [0, 0, 1, 1], [], []>} : vector<8x8xbf16>, vector<8x8xbf16>, vector<8x8xf32> -> vector<8x8xf32>
    %75 = arith.truncf %74 : vector<8x8xf32> to vector<8x8xbf16>
    %c0_41 = arith.constant 0 : index
    %c16_42 = arith.constant 16 : index
    %76 = vector.load %arg10[%c0_41, %c16_42] : memref<8x32xbf16, #tpu.memory_space<vmem>>, vector<8x8xbf16>
    tpu.vector_store %arg10[%c0_41, %c16_42], %75 {strides = array<i32>} : memref<8x32xbf16, #tpu.memory_space<vmem>>, vector<8x8xbf16>,
    %c0_43 = arith.constant 0 : index
    %c0_44 = arith.constant 0 : index
    %c24 = arith.constant 24 : index
    %77 = vector.load %arg1[%c0_43, %c0_44, %c24] : memref<1x8x96xbf16, #tpu.memory_space<vmem>>, vector<1x8x8xbf16>
    %78 = vector.shape_cast %77 : vector<1x8x8xbf16> to vector<8x8xbf16>
    %c0_45 = arith.constant 0 : index
    %c0_46 = arith.constant 0 : index
    %c56 = arith.constant 56 : index
    %79 = vector.load %arg1[%c0_45, %c0_46, %c56] : memref<1x8x96xbf16, #tpu.memory_space<vmem>>, vector<1x8x8xbf16>
    %80 = vector.shape_cast %79 : vector<1x8x8xbf16> to vector<8x8xbf16>
    %c0_47 = arith.constant 0 : index
    %c0_48 = arith.constant 0 : index
    %c88 = arith.constant 88 : index
    %81 = vector.load %arg1[%c0_47, %c0_48, %c88] : memref<1x8x96xbf16, #tpu.memory_space<vmem>>, vector<1x8x8xbf16>
    %82 = vector.shape_cast %81 : vector<1x8x8xbf16> to vector<8x8xbf16>
    %cst_49 = arith.constant dense<0.000000e+00> : vector<8x8xf32>
    %83 = tpu.matmul %78, %80, %cst_49 {dimension_numbers = #tpu.dot_dimension_numbers<[1], [1], [0], [0], [0, 0, 1, 0], [], []>} : vector<8x8xbf16>, vector<8x8xbf16>, vector<8x8xf32> -> vector<8x8xf32>
    %cst_50 = arith.constant 0.353553385 : f32
    %84 = vector.broadcast %cst_50 : f32 to vector<8x8xf32>
    %85 = arith.mulf %83, %84 : vector<8x8xf32>
    %86 = arith.addf %85, %4 : vector<8x8xf32>
    %cst_51 = arith.constant dense<0xFF800000> : vector<8xf32>
    %87 = vector.multi_reduction <maximumf>, %86, %cst_51 [1] : vector<8x8xf32> to vector<8xf32>
    %88 = vector.shape_cast %87 : vector<8xf32> to vector<8x1xf32>
    %89 = vector.broadcast %88 : vector<8x1xf32> to vector<8x8xf32>
    %90 = arith.subf %86, %89 : vector<8x8xf32>
    %91 = math.exp %90 : vector<8x8xf32>
    %cst_52 = arith.constant dense<0.000000e+00> : vector<8xf32>
    %92 = vector.multi_reduction <add>, %91, %cst_52 [1] : vector<8x8xf32> to vector<8xf32>
    %93 = vector.shape_cast %92 : vector<8xf32> to vector<8x1xf32>
    %94 = tpu.reciprocal %93 {approx = true} : vector<8x1xf32> -> vector<8x1xf32>
    %95 = vector.broadcast %94 : vector<8x1xf32> to vector<8x8xf32>
    %96 = arith.mulf %91, %95 : vector<8x8xf32>
    %97 = arith.truncf %96 : vector<8x8xf32> to vector<8x8xbf16>
    %cst_53 = arith.constant dense<0.000000e+00> : vector<8x8xf32>
    %98 = tpu.matmul %97, %82, %cst_53 {dimension_numbers = #tpu.dot_dimension_numbers<[1], [0], [0], [1], [0, 0, 1, 1], [], []>} : vector<8x8xbf16>, vector<8x8xbf16>, vector<8x8xf32> -> vector<8x8xf32>
    %99 = arith.truncf %98 : vector<8x8xf32> to vector<8x8xbf16>
    %c0_54 = arith.constant 0 : index
    %c24_55 = arith.constant 24 : index
    %100 = vector.load %arg10[%c0_54, %c24_55] : memref<8x32xbf16, #tpu.memory_space<vmem>>, vector<8x8xbf16>
    tpu.vector_store %arg10[%c0_54, %c24_55], %99 {strides = array<i32>} : memref<8x32xbf16, #tpu.memory_space<vmem>>, vector<8x8xbf16>,
    %c0_56 = arith.constant 0 : index
    %c0_57 = arith.constant 0 : index
    %101 = vector.load %arg10[%c0_56, %c0_57] : memref<8x32xbf16, #tpu.memory_space<vmem>>, vector<8x32xbf16>
    %c0_58 = arith.constant 0 : index
    %c0_59 = arith.constant 0 : index
    %102 = vector.load %arg4[%c0_58, %c0_59] : memref<32x32xbf16, #tpu.memory_space<vmem>>, vector<32x32xbf16>
    %cst_60 = arith.constant dense<0.000000e+00> : vector<8x32xf32>
    %103 = tpu.matmul %101, %102, %cst_60 {dimension_numbers = #tpu.dot_dimension_numbers<[1], [0], [0], [1], [0, 0, 1, 1], [], []>} : vector<8x32xbf16>, vector<32x32xbf16>, vector<8x32xf32> -> vector<8x32xf32>
    %c0_61 = arith.constant 0 : index
    %c0_62 = arith.constant 0 : index
    %104 = vector.load %arg5[%c0_61, %c0_62] : memref<1x32xf32, #tpu.memory_space<vmem>>, vector<1x32xf32>
    %105 = vector.broadcast %104 : vector<1x32xf32> to vector<8x32xf32>
    %106 = arith.addf %103, %105 : vector<8x32xf32>
    %c0_63 = arith.constant 0 : index
    %c0_64 = arith.constant 0 : index
    %c0_65 = arith.constant 0 : index
    %107 = vector.load %arg6[%c0_63, %c0_64, %c0_65] : memref<1x8x32xf32, #tpu.memory_space<vmem>>, vector<1x8x32xf32>
    %108 = vector.shape_cast %107 : vector<1x8x32xf32> to vector<8x32xf32>
    %109 = arith.addf %106, %108 : vector<8x32xf32>
    %c0_66 = arith.constant 0 : index
    %c0_67 = arith.constant 0 : index
    %110 = vector.load %arg7[%c0_66, %c0_67] : memref<1x32xf32, #tpu.memory_space<vmem>>, vector<1x32xf32>
    %c0_68 = arith.constant 0 : index
    %c0_69 = arith.constant 0 : index
    %111 = vector.load %arg8[%c0_68, %c0_69] : memref<1x32xf32, #tpu.memory_space<vmem>>, vector<1x32xf32>
    %cst_70 = arith.constant dense<0.000000e+00> : vector<8xf32>
    %112 = vector.multi_reduction <add>, %109, %cst_70 [1] : vector<8x32xf32> to vector<8xf32>
    %113 = vector.shape_cast %112 : vector<8xf32> to vector<8x1xf32>
    %cst_71 = arith.constant 3.200000e+01 : f32
    %114 = vector.broadcast %cst_71 : f32 to vector<8x1xf32>
    %115 = arith.divf %113, %114 : vector<8x1xf32>
    %116 = vector.broadcast %115 : vector<8x1xf32> to vector<8x32xf32>
    %117 = arith.subf %109, %116 : vector<8x32xf32>
    %118 = arith.mulf %117, %117 : vector<8x32xf32>
    %cst_72 = arith.constant dense<0.000000e+00> : vector<8xf32>
    %119 = vector.multi_reduction <add>, %118, %cst_72 [1] : vector<8x32xf32> to vector<8xf32>
    %120 = vector.shape_cast %119 : vector<8xf32> to vector<8x1xf32>
    %cst_73 = arith.constant 3.200000e+01 : f32
    %121 = vector.broadcast %cst_73 : f32 to vector<8x1xf32>
    %122 = arith.divf %120, %121 : vector<8x1xf32>
    %123 = vector.broadcast %115 : vector<8x1xf32> to vector<8x32xf32>
    %124 = arith.subf %109, %123 : vector<8x32xf32>
    %cst_74 = arith.constant 9.99999974E-6 : f32
    %125 = vector.broadcast %cst_74 : f32 to vector<8x1xf32>
    %126 = arith.addf %122, %125 : vector<8x1xf32>
    %127 = math.rsqrt %126 : vector<8x1xf32>
    %128 = vector.broadcast %127 : vector<8x1xf32> to vector<8x32xf32>
    %129 = arith.mulf %124, %128 : vector<8x32xf32>
    %130 = vector.broadcast %110 : vector<1x32xf32> to vector<8x32xf32>
    %131 = arith.mulf %129, %130 : vector<8x32xf32>
    %132 = vector.broadcast %111 : vector<1x32xf32> to vector<8x32xf32>
    %133 = arith.addf %131, %132 : vector<8x32xf32>
    %c0_75 = arith.constant 0 : index
    %c0_76 = arith.constant 0 : index
    %c0_77 = arith.constant 0 : index
    %134 = vector.load %arg9[%c0_75, %c0_76, %c0_77] : memref<1x8x32xf32, #tpu.memory_space<vmem>>, vector<1x8x32xf32>
    %135 = vector.shape_cast %134 : vector<1x8x32xf32> to vector<8x32xf32>
    %136 = vector.shape_cast %133 : vector<8x32xf32> to vector<1x8x32xf32>
    tpu.vector_store %arg9[%c0_75, %c0_76, %c0_77], %136 {strides = array<i32>} : memref<1x8x32xf32, #tpu.memory_space<vmem>>, vector<1x8x32xf32>,
    return
  }
  func.func @transform_0(%arg0: i32) -> (i32, i32, i32) {
    %c0_i32 = arith.constant 0 : i32
    %c0_i32_0 = arith.constant 0 : i32
    %c0_i32_1 = arith.constant 0 : i32
    return %arg0, %c0_i32, %c0_i32_0 : i32, i32, i32
  }
  func.func @transform_1(%arg0: i32) -> (i32, i32, i32) {
    %c0_i32 = arith.constant 0 : i32
    %c0_i32_0 = arith.constant 0 : i32
    %c0_i32_1 = arith.constant 0 : i32
    return %arg0, %c0_i32, %c0_i32_0 : i32, i32, i32
  }
  func.func @transform_2(%arg0: i32) -> (i32, i32) {
    %c0_i32 = arith.constant 0 : i32
    %c0_i32_0 = arith.constant 0 : i32
    %c0_i32_1 = arith.constant 0 : i32
    return %c0_i32, %c0_i32_0 : i32, i32
  }
  func.func @transform_3(%arg0: i32) -> (i32, i32) {
    %c0_i32 = arith.constant 0 : i32
    %c0_i32_0 = arith.constant 0 : i32
    %c0_i32_1 = arith.constant 0 : i32
    return %c0_i32, %c0_i32_0 : i32, i32
  }
  func.func @transform_4(%arg0: i32) -> (i32, i32) {
    %c0_i32 = arith.constant 0 : i32
    %c0_i32_0 = arith.constant 0 : i32
    %c0_i32_1 = arith.constant 0 : i32
    return %c0_i32, %c0_i32_0 : i32, i32
  }
  func.func @transform_5(%arg0: i32) -> (i32, i32, i32) {
    %c0_i32 = arith.constant 0 : i32
    %c0_i32_0 = arith.constant 0 : i32
    %c0_i32_1 = arith.constant 0 : i32
    return %arg0, %c0_i32, %c0_i32_0 : i32, i32, i32
  }
  func.func @transform_6(%arg0: i32) -> (i32, i32) {
    %c0_i32 = arith.constant 0 : i32
    %c0_i32_0 = arith.constant 0 : i32
    %c0_i32_1 = arith.constant 0 : i32
    return %c0_i32, %c0_i32_0 : i32, i32
  }
  func.func @transform_7(%arg0: i32) -> (i32, i32) {
    %c0_i32 = arith.constant 0 : i32
    %c0_i32_0 = arith.constant 0 : i32
    %c0_i32_1 = arith.constant 0 : i32
    return %c0_i32, %c0_i32_0 : i32, i32
  }
  func.func @transform_8(%arg0: i32) -> (i32, i32, i32) {
    %c0_i32 = arith.constant 0 : i32
    %c0_i32_0 = arith.constant 0 : i32
    %c0_i32_1 = arith.constant 0 : i32
    return %arg0, %c0_i32, %c0_i32_0 : i32, i32, i32
  }
}

module attributes {stable_mosaic.version = 11 : i64} {
  func.func @_matmul_kernel(%arg0: i32, %arg1: i32, %arg2: i32, %arg3: memref<16x32xf32, #tpu.memory_space<vmem>>, %arg4: memref<32x96xbf16, #tpu.memory_space<vmem>>, %arg5: memref<1x96xf32, #tpu.memory_space<vmem>>, %arg6: memref<16x96xbf16, #tpu.memory_space<vmem>>, %arg7: memref<16x96xf32, #tpu.memory_space<vmem>>) attributes {dimension_semantics = [#tpu.dimension_semantics<parallel>, #tpu.dimension_semantics<parallel>, #tpu.dimension_semantics<arbitrary>], iteration_bounds = array<i64: 1, 1, 1>, scalar_prefetch = 0 : i64, scratch_operands = 1 : i64, tpu.core_type = #tpu.core_type<tc>, window_params = [{transform_indices = @transform_0, window_bounds = array<i64: 16, 32>}, {transform_indices = @transform_1, window_bounds = array<i64: 32, 96>}, {transform_indices = @transform_2, window_bounds = array<i64: 1, 96>}, {transform_indices = @transform_3, window_bounds = array<i64: 16, 96>}]} {
    %c0_i32 = arith.constant 0 : i32
    %0 = arith.cmpi eq, %arg2, %c0_i32 : i32
    %1 = arith.extui %0 : i1 to i32
    %c0_i32_0 = arith.constant 0 : i32
    %2 = arith.cmpi ne, %1, %c0_i32_0 : i32
    scf.if %2 {
      %cst_10 = arith.constant 0.000000e+00 : f32
      %13 = vector.broadcast %cst_10 : f32 to vector<16x96xf32>
      %c0_11 = arith.constant 0 : index
      %c0_12 = arith.constant 0 : index
      %14 = vector.load %arg7[%c0_11, %c0_12] : memref<16x96xf32, #tpu.memory_space<vmem>>, vector<16x96xf32>
      tpu.vector_store %arg7[%c0_11, %c0_12], %13 {strides = array<i32>} : memref<16x96xf32, #tpu.memory_space<vmem>>, vector<16x96xf32>,
    } else {
    }
    %c0 = arith.constant 0 : index
    %c0_1 = arith.constant 0 : index
    %3 = vector.load %arg7[%c0, %c0_1] : memref<16x96xf32, #tpu.memory_space<vmem>>, vector<16x96xf32>
    %c0_2 = arith.constant 0 : index
    %c0_3 = arith.constant 0 : index
    %4 = vector.load %arg3[%c0_2, %c0_3] : memref<16x32xf32, #tpu.memory_space<vmem>>, vector<16x32xf32>
    %5 = arith.truncf %4 : vector<16x32xf32> to vector<16x32xbf16>
    %c0_4 = arith.constant 0 : index
    %c0_5 = arith.constant 0 : index
    %6 = vector.load %arg4[%c0_4, %c0_5] : memref<32x96xbf16, #tpu.memory_space<vmem>>, vector<32x96xbf16>
    %cst = arith.constant dense<0.000000e+00> : vector<16x96xf32>
    %7 = tpu.matmul %5, %6, %cst {dimension_numbers = #tpu.dot_dimension_numbers<[1], [0], [0], [1], [0, 0, 1, 1], [], []>} : vector<16x32xbf16>, vector<32x96xbf16>, vector<16x96xf32> -> vector<16x96xf32>
    %8 = arith.addf %3, %7 : vector<16x96xf32>
    %c0_6 = arith.constant 0 : index
    %c0_7 = arith.constant 0 : index
    %9 = vector.load %arg7[%c0_6, %c0_7] : memref<16x96xf32, #tpu.memory_space<vmem>>, vector<16x96xf32>
    tpu.vector_store %arg7[%c0_6, %c0_7], %8 {strides = array<i32>} : memref<16x96xf32, #tpu.memory_space<vmem>>, vector<16x96xf32>,
    %c0_i32_8 = arith.constant 0 : i32
    %10 = arith.cmpi eq, %arg2, %c0_i32_8 : i32
    %11 = arith.extui %10 : i1 to i32
    %c0_i32_9 = arith.constant 0 : i32
    %12 = arith.cmpi ne, %11, %c0_i32_9 : i32
    scf.if %12 {
      %c0_10 = arith.constant 0 : index
      %c0_11 = arith.constant 0 : index
      %13 = vector.load %arg7[%c0_10, %c0_11] : memref<16x96xf32, #tpu.memory_space<vmem>>, vector<16x96xf32>
      %c0_12 = arith.constant 0 : index
      %c0_13 = arith.constant 0 : index
      %14 = vector.load %arg5[%c0_12, %c0_13] : memref<1x96xf32, #tpu.memory_space<vmem>>, vector<1x96xf32>
      %15 = vector.broadcast %14 : vector<1x96xf32> to vector<16x96xf32>
      %16 = arith.addf %13, %15 : vector<16x96xf32>
      %17 = arith.truncf %16 : vector<16x96xf32> to vector<16x96xbf16>
      %c0_14 = arith.constant 0 : index
      %c0_15 = arith.constant 0 : index
      %18 = vector.load %arg6[%c0_14, %c0_15] : memref<16x96xbf16, #tpu.memory_space<vmem>>, vector<16x96xbf16>
      tpu.vector_store %arg6[%c0_14, %c0_15], %17 {strides = array<i32>} : memref<16x96xbf16, #tpu.memory_space<vmem>>, vector<16x96xbf16>,
    } else {
    }
    return
  }
  func.func @transform_0(%arg0: i32, %arg1: i32, %arg2: i32) -> (i32, i32) {
    %c0_i32 = arith.constant 0 : i32
    return %arg0, %arg2 : i32, i32
  }
  func.func @transform_1(%arg0: i32, %arg1: i32, %arg2: i32) -> (i32, i32) {
    %c0_i32 = arith.constant 0 : i32
    return %arg2, %arg1 : i32, i32
  }
  func.func @transform_2(%arg0: i32, %arg1: i32, %arg2: i32) -> (i32, i32) {
    %c0_i32 = arith.constant 0 : i32
    %c0_i32_0 = arith.constant 0 : i32
    return %c0_i32, %arg1 : i32, i32
  }
  func.func @transform_3(%arg0: i32, %arg1: i32, %arg2: i32) -> (i32, i32) {
    %c0_i32 = arith.constant 0 : i32
    return %arg0, %arg1 : i32, i32
  }
}

module attributes {stable_mosaic.version = 11 : i64} {
  func.func @_en_de_attn_ln_kernel(%arg0: i32, %arg1: memref<1x8x32xf32, #tpu.memory_space<vmem>>, %arg2: memref<1x8x64xbf16, #tpu.memory_space<vmem>>, %arg3: memref<1x1x8xf32, #tpu.memory_space<vmem>>, %arg4: memref<32x32xbf16, #tpu.memory_space<vmem>>, %arg5: memref<1x32xf32, #tpu.memory_space<vmem>>, %arg6: memref<32x32xbf16, #tpu.memory_space<vmem>>, %arg7: memref<1x32xf32, #tpu.memory_space<vmem>>, %arg8: memref<1x32xf32, #tpu.memory_space<vmem>>, %arg9: memref<1x32xf32, #tpu.memory_space<vmem>>, %arg10: memref<1x8x32xf32, #tpu.memory_space<vmem>>, %arg11: memref<1x4x8x8xf32, #tpu.memory_space<vmem>>, %arg12: memref<8x32xbf16, #tpu.memory_space<vmem>>, %arg13: memref<8x32xbf16, #tpu.memory_space<vmem>>) attributes {dimension_semantics = [#tpu.dimension_semantics<parallel>], iteration_bounds = array<i64: 2>, scalar_prefetch = 0 : i64, scratch_operands = 2 : i64, tpu.core_type = #tpu.core_type<tc>, window_params = [{transform_indices = @transform_0, window_bounds = array<i64: 1, 8, 32>}, {transform_indices = @transform_1, window_bounds = array<i64: 1, 8, 64>}, {transform_indices = @transform_2, window_bounds = array<i64: 1, 1, 8>}, {pipeline_mode = #tpu.pipeline_mode<synchronous>, transform_indices = @transform_3, window_bounds = array<i64: 32, 32>}, {pipeline_mode = #tpu.pipeline_mode<synchronous>, transform_indices = @transform_4, window_bounds = array<i64: 1, 32>}, {pipeline_mode = #tpu.pipeline_mode<synchronous>, transform_indices = @transform_5, window_bounds = array<i64: 32, 32>}, {pipeline_mode = #tpu.pipeline_mode<synchronous>, transform_indices = @transform_6, window_bounds = array<i64: 1, 32>}, {pipeline_mode = #tpu.pipeline_mode<synchronous>, transform_indices = @transform_7, window_bounds = array<i64: 1, 32>}, {pipeline_mode = #tpu.pipeline_mode<synchronous>, transform_indices = @transform_8, window_bounds = array<i64: 1, 32>}, {transform_indices = @transform_9, window_bounds = array<i64: 1, 8, 32>}, {transform_indices = @transform_10, window_bounds = array<i64: 1, 4, 8, 8>}]} {
    %c0 = arith.constant 0 : index
    %c0_0 = arith.constant 0 : index
    %c0_1 = arith.constant 0 : index
    %0 = vector.load %arg1[%c0, %c0_0, %c0_1] : memref<1x8x32xf32, #tpu.memory_space<vmem>>, vector<1x8x32xf32>
    %1 = vector.shape_cast %0 : vector<1x8x32xf32> to vector<8x32xf32>
    %2 = arith.truncf %1 : vector<8x32xf32> to vector<8x32xbf16>
    %c0_2 = arith.constant 0 : index
    %c0_3 = arith.constant 0 : index
    %3 = vector.load %arg4[%c0_2, %c0_3] : memref<32x32xbf16, #tpu.memory_space<vmem>>, vector<32x32xbf16>
    %cst = arith.constant dense<0.000000e+00> : vector<8x32xf32>
    %4 = tpu.matmul %2, %3, %cst {dimension_numbers = #tpu.dot_dimension_numbers<[1], [0], [0], [1], [0, 0, 1, 1], [], []>} : vector<8x32xbf16>, vector<32x32xbf16>, vector<8x32xf32> -> vector<8x32xf32>
    %c0_4 = arith.constant 0 : index
    %c0_5 = arith.constant 0 : index
    %5 = vector.load %arg5[%c0_4, %c0_5] : memref<1x32xf32, #tpu.memory_space<vmem>>, vector<1x32xf32>
    %6 = vector.broadcast %5 : vector<1x32xf32> to vector<8x32xf32>
    %7 = arith.addf %4, %6 : vector<8x32xf32>
    %8 = arith.truncf %7 : vector<8x32xf32> to vector<8x32xbf16>
    %c0_6 = arith.constant 0 : index
    %c0_7 = arith.constant 0 : index
    %9 = vector.load %arg12[%c0_6, %c0_7] : memref<8x32xbf16, #tpu.memory_space<vmem>>, vector<8x32xbf16>
    tpu.vector_store %arg12[%c0_6, %c0_7], %8 {strides = array<i32>} : memref<8x32xbf16, #tpu.memory_space<vmem>>, vector<8x32xbf16>,
    %c0_8 = arith.constant 0 : index
    %c0_9 = arith.constant 0 : index
    %c0_10 = arith.constant 0 : index
    %10 = vector.load %arg3[%c0_8, %c0_9, %c0_10] : memref<1x1x8xf32, #tpu.memory_space<vmem>>, vector<1x1x8xf32>
    %11 = vector.shape_cast %10 : vector<1x1x8xf32> to vector<1x8xf32>
    %c0_11 = arith.constant 0 : index
    %c0_12 = arith.constant 0 : index
    %12 = vector.load %arg12[%c0_11, %c0_12] : memref<8x32xbf16, #tpu.memory_space<vmem>>, vector<8x8xbf16>
    %c0_13 = arith.constant 0 : index
    %c0_14 = arith.constant 0 : index
    %c0_15 = arith.constant 0 : index
    %13 = vector.load %arg2[%c0_13, %c0_14, %c0_15] : memref<1x8x64xbf16, #tpu.memory_space<vmem>>, vector<1x8x8xbf16>
    %14 = vector.shape_cast %13 : vector<1x8x8xbf16> to vector<8x8xbf16>
    %c0_16 = arith.constant 0 : index
    %c0_17 = arith.constant 0 : index
    %c32 = arith.constant 32 : index
    %15 = vector.load %arg2[%c0_16, %c0_17, %c32] : memref<1x8x64xbf16, #tpu.memory_space<vmem>>, vector<1x8x8xbf16>
    %16 = vector.shape_cast %15 : vector<1x8x8xbf16> to vector<8x8xbf16>
    %cst_18 = arith.constant dense<0.000000e+00> : vector<8x8xf32>
    %17 = tpu.matmul %12, %14, %cst_18 {dimension_numbers = #tpu.dot_dimension_numbers<[1], [1], [0], [0], [0, 0, 1, 0], [], []>} : vector<8x8xbf16>, vector<8x8xbf16>, vector<8x8xf32> -> vector<8x8xf32>
    %cst_19 = arith.constant 0.353553385 : f32
    %18 = vector.broadcast %cst_19 : f32 to vector<8x8xf32>
    %19 = arith.mulf %17, %18 : vector<8x8xf32>
    %20 = vector.broadcast %11 : vector<1x8xf32> to vector<8x8xf32>
    %21 = arith.addf %19, %20 : vector<8x8xf32>
    %cst_20 = arith.constant dense<0xFF800000> : vector<8xf32>
    %22 = vector.multi_reduction <maximumf>, %21, %cst_20 [1] : vector<8x8xf32> to vector<8xf32>
    %23 = vector.shape_cast %22 : vector<8xf32> to vector<8x1xf32>
    %24 = vector.broadcast %23 : vector<8x1xf32> to vector<8x8xf32>
    %25 = arith.subf %21, %24 : vector<8x8xf32>
    %26 = math.exp %25 : vector<8x8xf32>
    %cst_21 = arith.constant dense<0.000000e+00> : vector<8xf32>
    %27 = vector.multi_reduction <add>, %26, %cst_21 [1] : vector<8x8xf32> to vector<8xf32>
    %28 = vector.shape_cast %27 : vector<8xf32> to vector<8x1xf32>
    %29 = vector.broadcast %28 : vector<8x1xf32> to vector<8x8xf32>
    %30 = arith.divf %26, %29 : vector<8x8xf32>
    %c0_22 = arith.constant 0 : index
    %c0_23 = arith.constant 0 : index
    %c0_24 = arith.constant 0 : index
    %c0_25 = arith.constant 0 : index
    %31 = vector.load %arg11[%c0_22, %c0_23, %c0_24, %c0_25] : memref<1x4x8x8xf32, #tpu.memory_space<vmem>>, vector<1x1x8x8xf32>
    %32 = vector.shape_cast %31 : vector<1x1x8x8xf32> to vector<8x8xf32>
    %33 = vector.shape_cast %30 : vector<8x8xf32> to vector<1x1x8x8xf32>
    tpu.vector_store %arg11[%c0_22, %c0_23, %c0_24, %c0_25], %33 {strides = array<i32>} : memref<1x4x8x8xf32, #tpu.memory_space<vmem>>, vector<1x1x8x8xf32>,
    %34 = arith.truncf %30 : vector<8x8xf32> to vector<8x8xbf16>
    %cst_26 = arith.constant dense<0.000000e+00> : vector<8x8xf32>
    %35 = tpu.matmul %34, %16, %cst_26 {dimension_numbers = #tpu.dot_dimension_numbers<[1], [0], [0], [1], [0, 0, 1, 1], [], []>} : vector<8x8xbf16>, vector<8x8xbf16>, vector<8x8xf32> -> vector<8x8xf32>
    %36 = arith.truncf %35 : vector<8x8xf32> to vector<8x8xbf16>
    %c0_27 = arith.constant 0 : index
    %c0_28 = arith.constant 0 : index
    %37 = vector.load %arg13[%c0_27, %c0_28] : memref<8x32xbf16, #tpu.memory_space<vmem>>, vector<8x8xbf16>
    tpu.vector_store %arg13[%c0_27, %c0_28], %36 {strides = array<i32>} : memref<8x32xbf16, #tpu.memory_space<vmem>>, vector<8x8xbf16>,
    %c0_29 = arith.constant 0 : index
    %c8 = arith.constant 8 : index
    %38 = vector.load %arg12[%c0_29, %c8] : memref<8x32xbf16, #tpu.memory_space<vmem>>, vector<8x8xbf16>
    %c0_30 = arith.constant 0 : index
    %c0_31 = arith.constant 0 : index
    %c8_32 = arith.constant 8 : index
    %39 = vector.load %arg2[%c0_30, %c0_31, %c8_32] : memref<1x8x64xbf16, #tpu.memory_space<vmem>>, vector<1x8x8xbf16>
    %40 = vector.shape_cast %39 : vector<1x8x8xbf16> to vector<8x8xbf16>
    %c0_33 = arith.constant 0 : index
    %c0_34 = arith.constant 0 : index
    %c40 = arith.constant 40 : index
    %41 = vector.load %arg2[%c0_33, %c0_34, %c40] : memref<1x8x64xbf16, #tpu.memory_space<vmem>>, vector<1x8x8xbf16>
    %42 = vector.shape_cast %41 : vector<1x8x8xbf16> to vector<8x8xbf16>
    %cst_35 = arith.constant dense<0.000000e+00> : vector<8x8xf32>
    %43 = tpu.matmul %38, %40, %cst_35 {dimension_numbers = #tpu.dot_dimension_numbers<[1], [1], [0], [0], [0, 0, 1, 0], [], []>} : vector<8x8xbf16>, vector<8x8xbf16>, vector<8x8xf32> -> vector<8x8xf32>
    %cst_36 = arith.constant 0.353553385 : f32
    %44 = vector.broadcast %cst_36 : f32 to vector<8x8xf32>
    %45 = arith.mulf %43, %44 : vector<8x8xf32>
    %46 = vector.broadcast %11 : vector<1x8xf32> to vector<8x8xf32>
    %47 = arith.addf %45, %46 : vector<8x8xf32>
    %cst_37 = arith.constant dense<0xFF800000> : vector<8xf32>
    %48 = vector.multi_reduction <maximumf>, %47, %cst_37 [1] : vector<8x8xf32> to vector<8xf32>
    %49 = vector.shape_cast %48 : vector<8xf32> to vector<8x1xf32>
    %50 = vector.broadcast %49 : vector<8x1xf32> to vector<8x8xf32>
    %51 = arith.subf %47, %50 : vector<8x8xf32>
    %52 = math.exp %51 : vector<8x8xf32>
    %cst_38 = arith.constant dense<0.000000e+00> : vector<8xf32>
    %53 = vector.multi_reduction <add>, %52, %cst_38 [1] : vector<8x8xf32> to vector<8xf32>
    %54 = vector.shape_cast %53 : vector<8xf32> to vector<8x1xf32>
    %55 = vector.broadcast %54 : vector<8x1xf32> to vector<8x8xf32>
    %56 = arith.divf %52, %55 : vector<8x8xf32>
    %c0_39 = arith.constant 0 : index
    %c1 = arith.constant 1 : index
    %c0_40 = arith.constant 0 : index
    %c0_41 = arith.constant 0 : index
    %57 = vector.load %arg11[%c0_39, %c1, %c0_40, %c0_41] : memref<1x4x8x8xf32, #tpu.memory_space<vmem>>, vector<1x1x8x8xf32>
    %58 = vector.shape_cast %57 : vector<1x1x8x8xf32> to vector<8x8xf32>
    %59 = vector.shape_cast %56 : vector<8x8xf32> to vector<1x1x8x8xf32>
    tpu.vector_store %arg11[%c0_39, %c1, %c0_40, %c0_41], %59 {strides = array<i32>} : memref<1x4x8x8xf32, #tpu.memory_space<vmem>>, vector<1x1x8x8xf32>,
    %60 = arith.truncf %56 : vector<8x8xf32> to vector<8x8xbf16>
    %cst_42 = arith.constant dense<0.000000e+00> : vector<8x8xf32>
    %61 = tpu.matmul %60, %42, %cst_42 {dimension_numbers = #tpu.dot_dimension_numbers<[1], [0], [0], [1], [0, 0, 1, 1], [], []>} : vector<8x8xbf16>, vector<8x8xbf16>, vector<8x8xf32> -> vector<8x8xf32>
    %62 = arith.truncf %61 : vector<8x8xf32> to vector<8x8xbf16>
    %c0_43 = arith.constant 0 : index
    %c8_44 = arith.constant 8 : index
    %63 = vector.load %arg13[%c0_43, %c8_44] : memref<8x32xbf16, #tpu.memory_space<vmem>>, vector<8x8xbf16>
    tpu.vector_store %arg13[%c0_43, %c8_44], %62 {strides = array<i32>} : memref<8x32xbf16, #tpu.memory_space<vmem>>, vector<8x8xbf16>,
    %c0_45 = arith.constant 0 : index
    %c16 = arith.constant 16 : index
    %64 = vector.load %arg12[%c0_45, %c16] : memref<8x32xbf16, #tpu.memory_space<vmem>>, vector<8x8xbf16>
    %c0_46 = arith.constant 0 : index
    %c0_47 = arith.constant 0 : index
    %c16_48 = arith.constant 16 : index
    %65 = vector.load %arg2[%c0_46, %c0_47, %c16_48] : memref<1x8x64xbf16, #tpu.memory_space<vmem>>, vector<1x8x8xbf16>
    %66 = vector.shape_cast %65 : vector<1x8x8xbf16> to vector<8x8xbf16>
    %c0_49 = arith.constant 0 : index
    %c0_50 = arith.constant 0 : index
    %c48 = arith.constant 48 : index
    %67 = vector.load %arg2[%c0_49, %c0_50, %c48] : memref<1x8x64xbf16, #tpu.memory_space<vmem>>, vector<1x8x8xbf16>
    %68 = vector.shape_cast %67 : vector<1x8x8xbf16> to vector<8x8xbf16>
    %cst_51 = arith.constant dense<0.000000e+00> : vector<8x8xf32>
    %69 = tpu.matmul %64, %66, %cst_51 {dimension_numbers = #tpu.dot_dimension_numbers<[1], [1], [0], [0], [0, 0, 1, 0], [], []>} : vector<8x8xbf16>, vector<8x8xbf16>, vector<8x8xf32> -> vector<8x8xf32>
    %cst_52 = arith.constant 0.353553385 : f32
    %70 = vector.broadcast %cst_52 : f32 to vector<8x8xf32>
    %71 = arith.mulf %69, %70 : vector<8x8xf32>
    %72 = vector.broadcast %11 : vector<1x8xf32> to vector<8x8xf32>
    %73 = arith.addf %71, %72 : vector<8x8xf32>
    %cst_53 = arith.constant dense<0xFF800000> : vector<8xf32>
    %74 = vector.multi_reduction <maximumf>, %73, %cst_53 [1] : vector<8x8xf32> to vector<8xf32>
    %75 = vector.shape_cast %74 : vector<8xf32> to vector<8x1xf32>
    %76 = vector.broadcast %75 : vector<8x1xf32> to vector<8x8xf32>
    %77 = arith.subf %73, %76 : vector<8x8xf32>
    %78 = math.exp %77 : vector<8x8xf32>
    %cst_54 = arith.constant dense<0.000000e+00> : vector<8xf32>
    %79 = vector.multi_reduction <add>, %78, %cst_54 [1] : vector<8x8xf32> to vector<8xf32>
    %80 = vector.shape_cast %79 : vector<8xf32> to vector<8x1xf32>
    %81 = vector.broadcast %80 : vector<8x1xf32> to vector<8x8xf32>
    %82 = arith.divf %78, %81 : vector<8x8xf32>
    %c0_55 = arith.constant 0 : index
    %c2 = arith.constant 2 : index
    %c0_56 = arith.constant 0 : index
    %c0_57 = arith.constant 0 : index
    %83 = vector.load %arg11[%c0_55, %c2, %c0_56, %c0_57] : memref<1x4x8x8xf32, #tpu.memory_space<vmem>>, vector<1x1x8x8xf32>
    %84 = vector.shape_cast %83 : vector<1x1x8x8xf32> to vector<8x8xf32>
    %85 = vector.shape_cast %82 : vector<8x8xf32> to vector<1x1x8x8xf32>
    tpu.vector_store %arg11[%c0_55, %c2, %c0_56, %c0_57], %85 {strides = array<i32>} : memref<1x4x8x8xf32, #tpu.memory_space<vmem>>, vector<1x1x8x8xf32>,
    %86 = arith.truncf %82 : vector<8x8xf32> to vector<8x8xbf16>
    %cst_58 = arith.constant dense<0.000000e+00> : vector<8x8xf32>
    %87 = tpu.matmul %86, %68, %cst_58 {dimension_numbers = #tpu.dot_dimension_numbers<[1], [0], [0], [1], [0, 0, 1, 1], [], []>} : vector<8x8xbf16>, vector<8x8xbf16>, vector<8x8xf32> -> vector<8x8xf32>
    %88 = arith.truncf %87 : vector<8x8xf32> to vector<8x8xbf16>
    %c0_59 = arith.constant 0 : index
    %c16_60 = arith.constant 16 : index
    %89 = vector.load %arg13[%c0_59, %c16_60] : memref<8x32xbf16, #tpu.memory_space<vmem>>, vector<8x8xbf16>
    tpu.vector_store %arg13[%c0_59, %c16_60], %88 {strides = array<i32>} : memref<8x32xbf16, #tpu.memory_space<vmem>>, vector<8x8xbf16>,
    %c0_61 = arith.constant 0 : index
    %c24 = arith.constant 24 : index
    %90 = vector.load %arg12[%c0_61, %c24] : memref<8x32xbf16, #tpu.memory_space<vmem>>, vector<8x8xbf16>
    %c0_62 = arith.constant 0 : index
    %c0_63 = arith.constant 0 : index
    %c24_64 = arith.constant 24 : index
    %91 = vector.load %arg2[%c0_62, %c0_63, %c24_64] : memref<1x8x64xbf16, #tpu.memory_space<vmem>>, vector<1x8x8xbf16>
    %92 = vector.shape_cast %91 : vector<1x8x8xbf16> to vector<8x8xbf16>
    %c0_65 = arith.constant 0 : index
    %c0_66 = arith.constant 0 : index
    %c56 = arith.constant 56 : index
    %93 = vector.load %arg2[%c0_65, %c0_66, %c56] : memref<1x8x64xbf16, #tpu.memory_space<vmem>>, vector<1x8x8xbf16>
    %94 = vector.shape_cast %93 : vector<1x8x8xbf16> to vector<8x8xbf16>
    %cst_67 = arith.constant dense<0.000000e+00> : vector<8x8xf32>
    %95 = tpu.matmul %90, %92, %cst_67 {dimension_numbers = #tpu.dot_dimension_numbers<[1], [1], [0], [0], [0, 0, 1, 0], [], []>} : vector<8x8xbf16>, vector<8x8xbf16>, vector<8x8xf32> -> vector<8x8xf32>
    %cst_68 = arith.constant 0.353553385 : f32
    %96 = vector.broadcast %cst_68 : f32 to vector<8x8xf32>
    %97 = arith.mulf %95, %96 : vector<8x8xf32>
    %98 = vector.broadcast %11 : vector<1x8xf32> to vector<8x8xf32>
    %99 = arith.addf %97, %98 : vector<8x8xf32>
    %cst_69 = arith.constant dense<0xFF800000> : vector<8xf32>
    %100 = vector.multi_reduction <maximumf>, %99, %cst_69 [1] : vector<8x8xf32> to vector<8xf32>
    %101 = vector.shape_cast %100 : vector<8xf32> to vector<8x1xf32>
    %102 = vector.broadcast %101 : vector<8x1xf32> to vector<8x8xf32>
    %103 = arith.subf %99, %102 : vector<8x8xf32>
    %104 = math.exp %103 : vector<8x8xf32>
    %cst_70 = arith.constant dense<0.000000e+00> : vector<8xf32>
    %105 = vector.multi_reduction <add>, %104, %cst_70 [1] : vector<8x8xf32> to vector<8xf32>
    %106 = vector.shape_cast %105 : vector<8xf32> to vector<8x1xf32>
    %107 = vector.broadcast %106 : vector<8x1xf32> to vector<8x8xf32>
    %108 = arith.divf %104, %107 : vector<8x8xf32>
    %c0_71 = arith.constant 0 : index
    %c3 = arith.constant 3 : index
    %c0_72 = arith.constant 0 : index
    %c0_73 = arith.constant 0 : index
    %109 = vector.load %arg11[%c0_71, %c3, %c0_72, %c0_73] : memref<1x4x8x8xf32, #tpu.memory_space<vmem>>, vector<1x1x8x8xf32>
    %110 = vector.shape_cast %109 : vector<1x1x8x8xf32> to vector<8x8xf32>
    %111 = vector.shape_cast %108 : vector<8x8xf32> to vector<1x1x8x8xf32>
    tpu.vector_store %arg11[%c0_71, %c3, %c0_72, %c0_73], %111 {strides = array<i32>} : memref<1x4x8x8xf32, #tpu.memory_space<vmem>>, vector<1x1x8x8xf32>,
    %112 = arith.truncf %108 : vector<8x8xf32> to vector<8x8xbf16>
    %cst_74 = arith.constant dense<0.000000e+00> : vector<8x8xf32>
    %113 = tpu.matmul %112, %94, %cst_74 {dimension_numbers = #tpu.dot_dimension_numbers<[1], [0], [0], [1], [0, 0, 1, 1], [], []>} : vector<8x8xbf16>, vector<8x8xbf16>, vector<8x8xf32> -> vector<8x8xf32>
    %114 = arith.truncf %113 : vector<8x8xf32> to vector<8x8xbf16>
    %c0_75 = arith.constant 0 : index
    %c24_76 = arith.constant 24 : index
    %115 = vector.load %arg13[%c0_75, %c24_76] : memref<8x32xbf16, #tpu.memory_space<vmem>>, vector<8x8xbf16>
    tpu.vector_store %arg13[%c0_75, %c24_76], %114 {strides = array<i32>} : memref<8x32xbf16, #tpu.memory_space<vmem>>, vector<8x8xbf16>,
    %c0_77 = arith.constant 0 : index
    %c0_78 = arith.constant 0 : index
    %116 = vector.load %arg13[%c0_77, %c0_78] : memref<8x32xbf16, #tpu.memory_space<vmem>>, vector<8x32xbf16>
    %c0_79 = arith.constant 0 : index
    %c0_80 = arith.constant 0 : index
    %117 = vector.load %arg6[%c0_79, %c0_80] : memref<32x32xbf16, #tpu.memory_space<vmem>>, vector<32x32xbf16>
    %cst_81 = arith.constant dense<0.000000e+00> : vector<8x32xf32>
    %118 = tpu.matmul %116, %117, %cst_81 {dimension_numbers = #tpu.dot_dimension_numbers<[1], [0], [0], [1], [0, 0, 1, 1], [], []>} : vector<8x32xbf16>, vector<32x32xbf16>, vector<8x32xf32> -> vector<8x32xf32>
    %c0_82 = arith.constant 0 : index
    %c0_83 = arith.constant 0 : index
    %119 = vector.load %arg7[%c0_82, %c0_83] : memref<1x32xf32, #tpu.memory_space<vmem>>, vector<1x32xf32>
    %120 = vector.broadcast %119 : vector<1x32xf32> to vector<8x32xf32>
    %121 = arith.addf %118, %120 : vector<8x32xf32>
    %c0_84 = arith.constant 0 : index
    %c0_85 = arith.constant 0 : index
    %c0_86 = arith.constant 0 : index
    %122 = vector.load %arg1[%c0_84, %c0_85, %c0_86] : memref<1x8x32xf32, #tpu.memory_space<vmem>>, vector<1x8x32xf32>
    %123 = vector.shape_cast %122 : vector<1x8x32xf32> to vector<8x32xf32>
    %124 = arith.addf %121, %123 : vector<8x32xf32>
    %c0_87 = arith.constant 0 : index
    %c0_88 = arith.constant 0 : index
    %125 = vector.load %arg8[%c0_87, %c0_88] : memref<1x32xf32, #tpu.memory_space<vmem>>, vector<1x32xf32>
    %c0_89 = arith.constant 0 : index
    %c0_90 = arith.constant 0 : index
    %126 = vector.load %arg9[%c0_89, %c0_90] : memref<1x32xf32, #tpu.memory_space<vmem>>, vector<1x32xf32>
    %cst_91 = arith.constant dense<0.000000e+00> : vector<8xf32>
    %127 = vector.multi_reduction <add>, %124, %cst_91 [1] : vector<8x32xf32> to vector<8xf32>
    %128 = vector.shape_cast %127 : vector<8xf32> to vector<8x1xf32>
    %cst_92 = arith.constant 3.200000e+01 : f32
    %129 = vector.broadcast %cst_92 : f32 to vector<8x1xf32>
    %130 = arith.divf %128, %129 : vector<8x1xf32>
    %131 = vector.broadcast %130 : vector<8x1xf32> to vector<8x32xf32>
    %132 = arith.subf %124, %131 : vector<8x32xf32>
    %133 = arith.mulf %132, %132 : vector<8x32xf32>
    %cst_93 = arith.constant dense<0.000000e+00> : vector<8xf32>
    %134 = vector.multi_reduction <add>, %133, %cst_93 [1] : vector<8x32xf32> to vector<8xf32>
    %135 = vector.shape_cast %134 : vector<8xf32> to vector<8x1xf32>
    %cst_94 = arith.constant 3.200000e+01 : f32
    %136 = vector.broadcast %cst_94 : f32 to vector<8x1xf32>
    %137 = arith.divf %135, %136 : vector<8x1xf32>
    %138 = vector.broadcast %130 : vector<8x1xf32> to vector<8x32xf32>
    %139 = arith.subf %124, %138 : vector<8x32xf32>
    %cst_95 = arith.constant 9.99999974E-6 : f32
    %140 = vector.broadcast %cst_95 : f32 to vector<8x1xf32>
    %141 = arith.addf %137, %140 : vector<8x1xf32>
    %142 = math.rsqrt %141 : vector<8x1xf32>
    %143 = vector.broadcast %142 : vector<8x1xf32> to vector<8x32xf32>
    %144 = arith.mulf %139, %143 : vector<8x32xf32>
    %145 = vector.broadcast %125 : vector<1x32xf32> to vector<8x32xf32>
    %146 = arith.mulf %144, %145 : vector<8x32xf32>
    %147 = vector.broadcast %126 : vector<1x32xf32> to vector<8x32xf32>
    %148 = arith.addf %146, %147 : vector<8x32xf32>
    %c0_96 = arith.constant 0 : index
    %c0_97 = arith.constant 0 : index
    %c0_98 = arith.constant 0 : index
    %149 = vector.load %arg10[%c0_96, %c0_97, %c0_98] : memref<1x8x32xf32, #tpu.memory_space<vmem>>, vector<1x8x32xf32>
    %150 = vector.shape_cast %149 : vector<1x8x32xf32> to vector<8x32xf32>
    %151 = vector.shape_cast %148 : vector<8x32xf32> to vector<1x8x32xf32>
    tpu.vector_store %arg10[%c0_96, %c0_97, %c0_98], %151 {strides = array<i32>} : memref<1x8x32xf32, #tpu.memory_space<vmem>>, vector<1x8x32xf32>,
    return
  }
  func.func @transform_0(%arg0: i32) -> (i32, i32, i32) {
    %c0_i32 = arith.constant 0 : i32
    %c0_i32_0 = arith.constant 0 : i32
    %c0_i32_1 = arith.constant 0 : i32
    return %arg0, %c0_i32, %c0_i32_0 : i32, i32, i32
  }
  func.func @transform_1(%arg0: i32) -> (i32, i32, i32) {
    %c0_i32 = arith.constant 0 : i32
    %c0_i32_0 = arith.constant 0 : i32
    %c0_i32_1 = arith.constant 0 : i32
    return %arg0, %c0_i32, %c0_i32_0 : i32, i32, i32
  }
  func.func @transform_2(%arg0: i32) -> (i32, i32, i32) {
    %c0_i32 = arith.constant 0 : i32
    %c0_i32_0 = arith.constant 0 : i32
    %c0_i32_1 = arith.constant 0 : i32
    return %arg0, %c0_i32, %c0_i32_0 : i32, i32, i32
  }
  func.func @transform_3(%arg0: i32) -> (i32, i32) {
    %c0_i32 = arith.constant 0 : i32
    %c0_i32_0 = arith.constant 0 : i32
    %c0_i32_1 = arith.constant 0 : i32
    return %c0_i32, %c0_i32_0 : i32, i32
  }
  func.func @transform_4(%arg0: i32) -> (i32, i32) {
    %c0_i32 = arith.constant 0 : i32
    %c0_i32_0 = arith.constant 0 : i32
    %c0_i32_1 = arith.constant 0 : i32
    return %c0_i32, %c0_i32_0 : i32, i32
  }
  func.func @transform_5(%arg0: i32) -> (i32, i32) {
    %c0_i32 = arith.constant 0 : i32
    %c0_i32_0 = arith.constant 0 : i32
    %c0_i32_1 = arith.constant 0 : i32
    return %c0_i32, %c0_i32_0 : i32, i32
  }
  func.func @transform_6(%arg0: i32) -> (i32, i32) {
    %c0_i32 = arith.constant 0 : i32
    %c0_i32_0 = arith.constant 0 : i32
    %c0_i32_1 = arith.constant 0 : i32
    return %c0_i32, %c0_i32_0 : i32, i32
  }
  func.func @transform_7(%arg0: i32) -> (i32, i32) {
    %c0_i32 = arith.constant 0 : i32
    %c0_i32_0 = arith.constant 0 : i32
    %c0_i32_1 = arith.constant 0 : i32
    return %c0_i32, %c0_i32_0 : i32, i32
  }
  func.func @transform_8(%arg0: i32) -> (i32, i32) {
    %c0_i32 = arith.constant 0 : i32
    %c0_i32_0 = arith.constant 0 : i32
    %c0_i32_1 = arith.constant 0 : i32
    return %c0_i32, %c0_i32_0 : i32, i32
  }
  func.func @transform_9(%arg0: i32) -> (i32, i32, i32) {
    %c0_i32 = arith.constant 0 : i32
    %c0_i32_0 = arith.constant 0 : i32
    %c0_i32_1 = arith.constant 0 : i32
    return %arg0, %c0_i32, %c0_i32_0 : i32, i32, i32
  }
  func.func @transform_10(%arg0: i32) -> (i32, i32, i32, i32) {
    %c0_i32 = arith.constant 0 : i32
    %c0_i32_0 = arith.constant 0 : i32
    %c0_i32_1 = arith.constant 0 : i32
    %c0_i32_2 = arith.constant 0 : i32
    return %arg0, %c0_i32, %c0_i32_0, %c0_i32_1 : i32, i32, i32, i32
  }
}

module attributes {stable_mosaic.version = 11 : i64} {
  func.func @_matmul_kernel(%arg0: i32, %arg1: i32, %arg2: i32, %arg3: memref<16x32xf32, #tpu.memory_space<vmem>>, %arg4: memref<32x64xbf16, #tpu.memory_space<vmem>>, %arg5: memref<1x64xf32, #tpu.memory_space<vmem>>, %arg6: memref<16x64xbf16, #tpu.memory_space<vmem>>, %arg7: memref<16x64xf32, #tpu.memory_space<vmem>>) attributes {dimension_semantics = [#tpu.dimension_semantics<parallel>, #tpu.dimension_semantics<parallel>, #tpu.dimension_semantics<arbitrary>], iteration_bounds = array<i64: 1, 1, 1>, scalar_prefetch = 0 : i64, scratch_operands = 1 : i64, tpu.core_type = #tpu.core_type<tc>, window_params = [{transform_indices = @transform_0, window_bounds = array<i64: 16, 32>}, {transform_indices = @transform_1, window_bounds = array<i64: 32, 64>}, {transform_indices = @transform_2, window_bounds = array<i64: 1, 64>}, {transform_indices = @transform_3, window_bounds = array<i64: 16, 64>}]} {
    %c0_i32 = arith.constant 0 : i32
    %0 = arith.cmpi eq, %arg2, %c0_i32 : i32
    %1 = arith.extui %0 : i1 to i32
    %c0_i32_0 = arith.constant 0 : i32
    %2 = arith.cmpi ne, %1, %c0_i32_0 : i32
    scf.if %2 {
      %cst_10 = arith.constant 0.000000e+00 : f32
      %13 = vector.broadcast %cst_10 : f32 to vector<16x64xf32>
      %c0_11 = arith.constant 0 : index
      %c0_12 = arith.constant 0 : index
      %14 = vector.load %arg7[%c0_11, %c0_12] : memref<16x64xf32, #tpu.memory_space<vmem>>, vector<16x64xf32>
      tpu.vector_store %arg7[%c0_11, %c0_12], %13 {strides = array<i32>} : memref<16x64xf32, #tpu.memory_space<vmem>>, vector<16x64xf32>,
    } else {
    }
    %c0 = arith.constant 0 : index
    %c0_1 = arith.constant 0 : index
    %3 = vector.load %arg7[%c0, %c0_1] : memref<16x64xf32, #tpu.memory_space<vmem>>, vector<16x64xf32>
    %c0_2 = arith.constant 0 : index
    %c0_3 = arith.constant 0 : index
    %4 = vector.load %arg3[%c0_2, %c0_3] : memref<16x32xf32, #tpu.memory_space<vmem>>, vector<16x32xf32>
    %5 = arith.truncf %4 : vector<16x32xf32> to vector<16x32xbf16>
    %c0_4 = arith.constant 0 : index
    %c0_5 = arith.constant 0 : index
    %6 = vector.load %arg4[%c0_4, %c0_5] : memref<32x64xbf16, #tpu.memory_space<vmem>>, vector<32x64xbf16>
    %cst = arith.constant dense<0.000000e+00> : vector<16x64xf32>
    %7 = tpu.matmul %5, %6, %cst {dimension_numbers = #tpu.dot_dimension_numbers<[1], [0], [0], [1], [0, 0, 1, 1], [], []>} : vector<16x32xbf16>, vector<32x64xbf16>, vector<16x64xf32> -> vector<16x64xf32>
    %8 = arith.addf %3, %7 : vector<16x64xf32>
    %c0_6 = arith.constant 0 : index
    %c0_7 = arith.constant 0 : index
    %9 = vector.load %arg7[%c0_6, %c0_7] : memref<16x64xf32, #tpu.memory_space<vmem>>, vector<16x64xf32>
    tpu.vector_store %arg7[%c0_6, %c0_7], %8 {strides = array<i32>} : memref<16x64xf32, #tpu.memory_space<vmem>>, vector<16x64xf32>,
    %c0_i32_8 = arith.constant 0 : i32
    %10 = arith.cmpi eq, %arg2, %c0_i32_8 : i32
    %11 = arith.extui %10 : i1 to i32
    %c0_i32_9 = arith.constant 0 : i32
    %12 = arith.cmpi ne, %11, %c0_i32_9 : i32
    scf.if %12 {
      %c0_10 = arith.constant 0 : index
      %c0_11 = arith.constant 0 : index
      %13 = vector.load %arg7[%c0_10, %c0_11] : memref<16x64xf32, #tpu.memory_space<vmem>>, vector<16x64xf32>
      %c0_12 = arith.constant 0 : index
      %c0_13 = arith.constant 0 : index
      %14 = vector.load %arg5[%c0_12, %c0_13] : memref<1x64xf32, #tpu.memory_space<vmem>>, vector<1x64xf32>
      %15 = vector.broadcast %14 : vector<1x64xf32> to vector<16x64xf32>
      %16 = arith.addf %13, %15 : vector<16x64xf32>
      %cst_14 = arith.constant 0.000000e+00 : f32
      %17 = vector.broadcast %cst_14 : f32 to vector<16x64xf32>
      %18 = arith.maximumf %16, %17 : vector<16x64xf32>
      %19 = arith.truncf %18 : vector<16x64xf32> to vector<16x64xbf16>
      %c0_15 = arith.constant 0 : index
      %c0_16 = arith.constant 0 : index
      %20 = vector.load %arg6[%c0_15, %c0_16] : memref<16x64xbf16, #tpu.memory_space<vmem>>, vector<16x64xbf16>
      tpu.vector_store %arg6[%c0_15, %c0_16], %19 {strides = array<i32>} : memref<16x64xbf16, #tpu.memory_space<vmem>>, vector<16x64xbf16>,
    } else {
    }
    return
  }
  func.func @transform_0(%arg0: i32, %arg1: i32, %arg2: i32) -> (i32, i32) {
    %c0_i32 = arith.constant 0 : i32
    return %arg0, %arg2 : i32, i32
  }
  func.func @transform_1(%arg0: i32, %arg1: i32, %arg2: i32) -> (i32, i32) {
    %c0_i32 = arith.constant 0 : i32
    return %arg2, %arg1 : i32, i32
  }
  func.func @transform_2(%arg0: i32, %arg1: i32, %arg2: i32) -> (i32, i32) {
    %c0_i32 = arith.constant 0 : i32
    %c0_i32_0 = arith.constant 0 : i32
    return %c0_i32, %arg1 : i32, i32
  }
  func.func @transform_3(%arg0: i32, %arg1: i32, %arg2: i32) -> (i32, i32) {
    %c0_i32 = arith.constant 0 : i32
    return %arg0, %arg1 : i32, i32
  }
}

module attributes {stable_mosaic.version = 11 : i64} {
  func.func @_matmul_ln_kernel(%arg0: i32, %arg1: i32, %arg2: memref<16x64xbf16, #tpu.memory_space<vmem>>, %arg3: memref<64x32xbf16, #tpu.memory_space<vmem>>, %arg4: memref<1x32xf32, #tpu.memory_space<vmem>>, %arg5: memref<16x32xf32, #tpu.memory_space<vmem>>, %arg6: memref<1x32xf32, #tpu.memory_space<vmem>>, %arg7: memref<1x32xf32, #tpu.memory_space<vmem>>, %arg8: memref<16x32xf32, #tpu.memory_space<vmem>>, %arg9: memref<16x32xf32, #tpu.memory_space<vmem>>) attributes {dimension_semantics = [#tpu.dimension_semantics<parallel>, #tpu.dimension_semantics<arbitrary>], iteration_bounds = array<i64: 1, 1>, scalar_prefetch = 0 : i64, scratch_operands = 1 : i64, tpu.core_type = #tpu.core_type<tc>, window_params = [{transform_indices = @transform_0, window_bounds = array<i64: 16, 64>}, {transform_indices = @transform_1, window_bounds = array<i64: 64, 32>}, {pipeline_mode = #tpu.pipeline_mode<synchronous>, transform_indices = @transform_2, window_bounds = array<i64: 1, 32>}, {transform_indices = @transform_3, window_bounds = array<i64: 16, 32>}, {pipeline_mode = #tpu.pipeline_mode<synchronous>, transform_indices = @transform_4, window_bounds = array<i64: 1, 32>}, {pipeline_mode = #tpu.pipeline_mode<synchronous>, transform_indices = @transform_5, window_bounds = array<i64: 1, 32>}, {transform_indices = @transform_6, window_bounds = array<i64: 16, 32>}]} {
    %c0_i32 = arith.constant 0 : i32
    %0 = arith.cmpi eq, %arg1, %c0_i32 : i32
    %1 = arith.extui %0 : i1 to i32
    %c0_i32_0 = arith.constant 0 : i32
    %2 = arith.cmpi ne, %1, %c0_i32_0 : i32
    scf.if %2 {
      %cst_10 = arith.constant 0.000000e+00 : f32
      %12 = vector.broadcast %cst_10 : f32 to vector<16x32xf32>
      %c0_11 = arith.constant 0 : index
      %c0_12 = arith.constant 0 : index
      %13 = vector.load %arg9[%c0_11, %c0_12] : memref<16x32xf32, #tpu.memory_space<vmem>>, vector<16x32xf32>
      tpu.vector_store %arg9[%c0_11, %c0_12], %12 {strides = array<i32>} : memref<16x32xf32, #tpu.memory_space<vmem>>, vector<16x32xf32>,
    } else {
    }
    %c0 = arith.constant 0 : index
    %c0_1 = arith.constant 0 : index
    %3 = vector.load %arg9[%c0, %c0_1] : memref<16x32xf32, #tpu.memory_space<vmem>>, vector<16x32xf32>
    %c0_2 = arith.constant 0 : index
    %c0_3 = arith.constant 0 : index
    %4 = vector.load %arg2[%c0_2, %c0_3] : memref<16x64xbf16, #tpu.memory_space<vmem>>, vector<16x64xbf16>
    %c0_4 = arith.constant 0 : index
    %c0_5 = arith.constant 0 : index
    %5 = vector.load %arg3[%c0_4, %c0_5] : memref<64x32xbf16, #tpu.memory_space<vmem>>, vector<64x32xbf16>
    %cst = arith.constant dense<0.000000e+00> : vector<16x32xf32>
    %6 = tpu.matmul %4, %5, %cst {dimension_numbers = #tpu.dot_dimension_numbers<[1], [0], [0], [1], [0, 0, 1, 1], [], []>} : vector<16x64xbf16>, vector<64x32xbf16>, vector<16x32xf32> -> vector<16x32xf32>
    %7 = arith.addf %3, %6 : vector<16x32xf32>
    %c0_6 = arith.constant 0 : index
    %c0_7 = arith.constant 0 : index
    %8 = vector.load %arg9[%c0_6, %c0_7] : memref<16x32xf32, #tpu.memory_space<vmem>>, vector<16x32xf32>
    tpu.vector_store %arg9[%c0_6, %c0_7], %7 {strides = array<i32>} : memref<16x32xf32, #tpu.memory_space<vmem>>, vector<16x32xf32>,
    %c0_i32_8 = arith.constant 0 : i32
    %9 = arith.cmpi eq, %arg1, %c0_i32_8 : i32
    %10 = arith.extui %9 : i1 to i32
    %c0_i32_9 = arith.constant 0 : i32
    %11 = arith.cmpi ne, %10, %c0_i32_9 : i32
    scf.if %11 {
      %c0_10 = arith.constant 0 : index
      %c0_11 = arith.constant 0 : index
      %12 = vector.load %arg9[%c0_10, %c0_11] : memref<16x32xf32, #tpu.memory_space<vmem>>, vector<16x32xf32>
      %c0_12 = arith.constant 0 : index
      %c0_13 = arith.constant 0 : index
      %13 = vector.load %arg4[%c0_12, %c0_13] : memref<1x32xf32, #tpu.memory_space<vmem>>, vector<1x32xf32>
      %14 = vector.broadcast %13 : vector<1x32xf32> to vector<16x32xf32>
      %15 = arith.addf %12, %14 : vector<16x32xf32>
      %c0_14 = arith.constant 0 : index
      %c0_15 = arith.constant 0 : index
      %16 = vector.load %arg5[%c0_14, %c0_15] : memref<16x32xf32, #tpu.memory_space<vmem>>, vector<16x32xf32>
      %17 = arith.addf %15, %16 : vector<16x32xf32>
      %c0_16 = arith.constant 0 : index
      %c0_17 = arith.constant 0 : index
      %18 = vector.load %arg6[%c0_16, %c0_17] : memref<1x32xf32, #tpu.memory_space<vmem>>, vector<1x32xf32>
      %c0_18 = arith.constant 0 : index
      %c0_19 = arith.constant 0 : index
      %19 = vector.load %arg7[%c0_18, %c0_19] : memref<1x32xf32, #tpu.memory_space<vmem>>, vector<1x32xf32>
      %cst_20 = arith.constant dense<0.000000e+00> : vector<16xf32>
      %20 = vector.multi_reduction <add>, %17, %cst_20 [1] : vector<16x32xf32> to vector<16xf32>
      %21 = vector.shape_cast %20 : vector<16xf32> to vector<16x1xf32>
      %cst_21 = arith.constant 3.200000e+01 : f32
      %22 = vector.broadcast %cst_21 : f32 to vector<16x1xf32>
      %23 = arith.divf %21, %22 : vector<16x1xf32>
      %24 = vector.broadcast %23 : vector<16x1xf32> to vector<16x32xf32>
      %25 = arith.subf %17, %24 : vector<16x32xf32>
      %26 = arith.mulf %25, %25 : vector<16x32xf32>
      %cst_22 = arith.constant dense<0.000000e+00> : vector<16xf32>
      %27 = vector.multi_reduction <add>, %26, %cst_22 [1] : vector<16x32xf32> to vector<16xf32>
      %28 = vector.shape_cast %27 : vector<16xf32> to vector<16x1xf32>
      %cst_23 = arith.constant 3.200000e+01 : f32
      %29 = vector.broadcast %cst_23 : f32 to vector<16x1xf32>
      %30 = arith.divf %28, %29 : vector<16x1xf32>
      %31 = vector.broadcast %23 : vector<16x1xf32> to vector<16x32xf32>
      %32 = arith.subf %17, %31 : vector<16x32xf32>
      %cst_24 = arith.constant 9.99999974E-6 : f32
      %33 = vector.broadcast %cst_24 : f32 to vector<16x1xf32>
      %34 = arith.addf %30, %33 : vector<16x1xf32>
      %35 = math.rsqrt %34 : vector<16x1xf32>
      %36 = vector.broadcast %35 : vector<16x1xf32> to vector<16x32xf32>
      %37 = arith.mulf %32, %36 : vector<16x32xf32>
      %38 = vector.broadcast %18 : vector<1x32xf32> to vector<16x32xf32>
      %39 = arith.mulf %37, %38 : vector<16x32xf32>
      %40 = vector.broadcast %19 : vector<1x32xf32> to vector<16x32xf32>
      %41 = arith.addf %39, %40 : vector<16x32xf32>
      %c0_25 = arith.constant 0 : index
      %c0_26 = arith.constant 0 : index
      %42 = vector.load %arg8[%c0_25, %c0_26] : memref<16x32xf32, #tpu.memory_space<vmem>>, vector<16x32xf32>
      tpu.vector_store %arg8[%c0_25, %c0_26], %41 {strides = array<i32>} : memref<16x32xf32, #tpu.memory_space<vmem>>, vector<16x32xf32>,
    } else {
    }
    return
  }
  func.func @transform_0(%arg0: i32, %arg1: i32) -> (i32, i32) {
    %c0_i32 = arith.constant 0 : i32
    return %arg0, %arg1 : i32, i32
  }
  func.func @transform_1(%arg0: i32, %arg1: i32) -> (i32, i32) {
    %c0_i32 = arith.constant 0 : i32
    %c0_i32_0 = arith.constant 0 : i32
    return %arg1, %c0_i32 : i32, i32
  }
  func.func @transform_2(%arg0: i32, %arg1: i32) -> (i32, i32) {
    %c0_i32 = arith.constant 0 : i32
    %c0_i32_0 = arith.constant 0 : i32
    %c0_i32_1 = arith.constant 0 : i32
    return %c0_i32, %c0_i32_0 : i32, i32
  }
  func.func @transform_3(%arg0: i32, %arg1: i32) -> (i32, i32) {
    %c0_i32 = arith.constant 0 : i32
    %c0_i32_0 = arith.constant 0 : i32
    return %arg0, %c0_i32 : i32, i32
  }
  func.func @transform_4(%arg0: i32, %arg1: i32) -> (i32, i32) {
    %c0_i32 = arith.constant 0 : i32
    %c0_i32_0 = arith.constant 0 : i32
    %c0_i32_1 = arith.constant 0 : i32
    return %c0_i32, %c0_i32_0 : i32, i32
  }
  func.func @transform_5(%arg0: i32, %arg1: i32) -> (i32, i32) {
    %c0_i32 = arith.constant 0 : i32
    %c0_i32_0 = arith.constant 0 : i32
    %c0_i32_1 = arith.constant 0 : i32
    return %c0_i32, %c0_i32_0 : i32, i32
  }
  func.func @transform_6(%arg0: i32, %arg1: i32) -> (i32, i32) {
    %c0_i32 = arith.constant 0 : i32
    %c0_i32_0 = arith.constant 0 : i32
    return %arg0, %c0_i32 : i32, i32
  }
}

</mosaic_0001>

<llo_original>
// kernel: transformer_decoder_layer.6
$region0: #{transformer_decoder_layer.6}
  #allocation0 [shape = 'u32[]', space=smem, size = 0x4, offset = 0x4, fixed_abs, tag = 'smem constant byte address 0x4 - core index']
  #allocation1 [shape = 'u32[144,128]{1,0:T(1,128)}', space=vmem, size = 0x12000, scoped, tag = 'internal scratch']
  #allocation2 [shape = 'f32[16,96]{1,0:T(8,128)}', space=vmem, size = 0x2000, scoped, tag = 'scratch operand']
  %s0 = inlined_call_operand.vmem [shape: f32[16,32], index: 0, kind: input, shape index: {}]
  %s1 = inlined_call_operand.vmem [shape: bf16[32,96], index: 1, kind: input, shape index: {}]
  %s2 = inlined_call_operand.vmem [shape: f32[1,96], index: 2, kind: input, shape index: {}]
  %s3 = inlined_call_operand.vmem [shape: bf16[16,96], index: 3, kind: output, shape index: {}]
  %s4 = sld [smem:[#allocation0]]
  $region30: #{transformer_decoder_layer.6} parent=0
    _
  %s6 = ssub.s32 1, %s4
  %s7 = scalar_select 0, %s6, %s4
  // Predicated region
  $region2: #{transformer_decoder_layer.6} parent=0 // pred_check
    _
  $region3: #{transformer_decoder_layer.6} parent=0 // pred_check_branch
    %9 = sbr.rel (0) target = $region5
  $region4: #{transformer_decoder_layer.6} parent=0 // pred_region
    _
  $region5: #{transformer_decoder_layer.6} parent=0 // pred_fallthru
    _
  // Predicated region
  $region6: #{transformer_decoder_layer.6} parent=0 // pred_check
    _
  $region7: #{transformer_decoder_layer.6} parent=0 // pred_check_branch
    %11 = sbr.rel (0) target = $region9
  $region8: #{transformer_decoder_layer.6} parent=0 // pred_region
    _
  $region9: #{transformer_decoder_layer.6} parent=0 // pred_fallthru
    _
  // Predicated region
  $region10: #{transformer_decoder_layer.6} parent=0 // pred_check
    _
  $region11: #{transformer_decoder_layer.6} parent=0 // pred_check_branch
    %13 = sbr.rel (0) target = $region13
  $region12: #{transformer_decoder_layer.6} parent=0 // pred_region
    _
  $region13: #{transformer_decoder_layer.6} parent=0 // pred_fallthru
    _
  %p15 = scmp.eq.s32.totalorder 0, 0
  // Predicated region
  $region14: #{transformer_decoder_layer.6} parent=0 // pred_check
    %p16 = pneg %p15
  $region15: #{transformer_decoder_layer.6} parent=0 // pred_check_branch
    %18 = sbr.rel (%p16) target = $region17
  $region16: #{transformer_decoder_layer.6} parent=0 // pred_region
    %vm19 = vcmask 785408
    %20 = vst.msk [vmem:[#allocation2] sm:$0xff] %vm19, 0.0
    %21 = vst.msk [vmem:[#allocation2 + $0x8] sm:$0xff] %vm19, 0.0
  $region17: #{transformer_decoder_layer.6} parent=0 // pred_fallthru
    _
  %v22 = vld [vmem:[#allocation2] sm:$0xff]
  %v23 = vld [vmem:[#allocation2 + $0x8] sm:$0xff]
  %v24 = vld [vmem:[%s0] sm:$0xff]
  %v25 = vld [vmem:[%s0 + $0x8] sm:$0xff]
  %v26 = vpack.c.bf16 %v25, %v24
  %v27 = vld [vmem:[%s1] sm:$0xf]
  %v28 = vld [vmem:[%s1 + $0x4] sm:$0xf]
  %v29 = vld [vmem:[%s1 + $0x8] sm:$0xf]
  %v30 = vld [vmem:[%s1 + $0xc] sm:$0xf]
  %v35 = vunpack.c.l.b16 %v27
  %v36 = vunpack.c.l.b16 %v28
  %v37 = vunpack.c.l.b16 %v29
  %v38 = vunpack.c.l.b16 %v30
  %v39 = vpack.c.b16 %v36, %v35
  %v40 = vpack.c.b16 %v38, %v37
  %vm43 = vcmask 261120
  %v45 = vsel %vm43, %v26, 0
  %47 = vmatprep.subr.bf16.mxu0 0
  %48 = vmatpush1.bf16.msra.mxu0 0
  %49 = vmatprep.subr.bf16.mxu0 0
  %50 = vmatpush1.bf16.msra.mxu0 0
  %51 = vmatprep.subr.bf16.mxu0 0
  %52 = vmatpush1.bf16.msra.mxu0 0
  %53 = vmatprep.subr.bf16.mxu0 0
  %54 = vmatpush1.bf16.msra.mxu0 0
  %55 = vmatprep.subr.bf16.mxu0 0
  %56 = vmatpush1.bf16.msra.mxu0 0
  %57 = vmatprep.subr.bf16.mxu0 0
  %58 = vmatpush1.bf16.msra.mxu0 0
  %59 = vmatprep.subr.bf16.mxu0 0
  %60 = vmatpush1.bf16.msra.mxu0 %v40
  %61 = vmatprep.subr.bf16.mxu0 0
  %62 = vmatpush1.bf16.msra.mxu0 %v39
  %63 = vmatprep.subr.bf16.mxu0 0
  %64 = vmatpush2.bf16.msra.mxu0 0
  %65 = vmatprep.subr.bf16.mxu0 0
  %66 = vmatpush2.bf16.msra.mxu0 0
  %67 = vmatprep.subr.bf16.mxu0 0
  %68 = vmatpush2.bf16.msra.mxu0 0
  %69 = vmatprep.subr.bf16.mxu0 0
  %70 = vmatpush2.bf16.msra.mxu0 0
  %71 = vmatprep.subr.bf16.mxu0 0
  %72 = vmatpush2.bf16.msra.mxu0 0
  %73 = vmatprep.subr.bf16.mxu0 0
  %74 = vmatpush2.bf16.msra.mxu0 0
  %75 = vmatprep.subr.bf16.mxu0 0
  %76 = vmatpush2.bf16.msra.mxu0 0
  %77 = vmatprep.subr.bf16.mxu0 0
  %78 = vmatpush2.bf16.msra.mxu0 0
  %79 = vmatprep.mubr.bf16.mxu0 0
  %80 = vmatmul.mubr.bf16.gmra.mxu0 %v45
  %v81 = vpop.f32.mrf.mxu0
  %v82 = vadd.f32 0.0, %v81
  %v83 = vpop.f32.mrf.mxu0
  %v84 = vpop.f32.mrf.mxu0
  %v85 = vadd.f32 0.0, %v84
  %v86 = vpop.f32.mrf.mxu0
  %87 = vdwg.mxu0
  %v88 = vadd.f32 %v22, %v82
  %v89 = vadd.f32 %v23, %v85
  %vm90 = vcmask 785408
  %91 = vst.msk [vmem:[#allocation2] sm:$0xff] %vm90, %v88
  %92 = vst.msk [vmem:[#allocation2 + $0x8] sm:$0xff] %vm90, %v89
  // Predicated region
  $region18: #{transformer_decoder_layer.6} parent=0 // pred_check
    %p93 = pneg %p15
  $region19: #{transformer_decoder_layer.6} parent=0 // pred_check_branch
    %95 = sbr.rel (%p93) target = $region21
  $region20: #{transformer_decoder_layer.6} parent=0 // pred_region
    %v96 = vld [vmem:[#allocation2] sm:$0xff]
    %v97 = vld [vmem:[#allocation2 + $0x8] sm:$0xff]
    %v98 = vld [vmem:[%s2] sm:$0x1]
    %v100 = vlaneseq
    %v101 = vshrl.u32 %v100, 7
    %v102 = vsub.s32 0, %v101
    %v103 = vrot.slane %v98, %v102
    %v105 = vadd.f32 %v96, %v103
    %v106 = vadd.f32 %v97, %v103
    %v107 = vpack.c.bf16 %v106, %v105
    %v109 = vunpack.c.l.b16 %v107
    %v110 = vunpack.c.h.b16 %v107
    %v111 = vpack.c.b16 %v109, %v109
    %v112 = vpack.c.b16 %v110, %v110
    %vm115 = vcmask 781312
    %116 = vst.msk [vmem:[%s3] sm:$0xf] %vm115, %v111
    %117 = vst.msk [vmem:[%s3 + $0x4] sm:$0xf] %vm115, %v112
  $region21: #{transformer_decoder_layer.6} parent=0 // pred_fallthru
    _
  // Predicated region
  $region22: #{transformer_decoder_layer.6} parent=0 // pred_check
    _
  $region23: #{transformer_decoder_layer.6} parent=0 // pred_check_branch
    %119 = sbr.rel (0) target = $region25
  $region24: #{transformer_decoder_layer.6} parent=0 // pred_region
    _
  $region25: #{transformer_decoder_layer.6} parent=0 // pred_fallthru
    _
  // Predicated region
  $region26: #{transformer_decoder_layer.6} parent=0 // pred_check
    _
  $region27: #{transformer_decoder_layer.6} parent=0 // pred_check_branch
    %121 = sbr.rel (0) target = $region29
  $region28: #{transformer_decoder_layer.6} parent=0 // pred_region
    _
  $region29: #{transformer_decoder_layer.6} parent=0 // pred_fallthru
    _

// kernel: transformer_decoder_layer.8
$region0: #{transformer_decoder_layer.8}
  #allocation0 [shape = 'u32[]', space=smem, size = 0x4, offset = 0x4, fixed_abs, tag = 'smem constant byte address 0x4 - core index']
  #allocation1 [shape = 'u32[144,128]{1,0:T(1,128)}', space=vmem, size = 0x12000, scoped, tag = 'internal scratch']
  #allocation2 [shape = 'f32[16,64]{1,0:T(8,128)}', space=vmem, size = 0x2000, scoped, tag = 'scratch operand']
  %s0 = inlined_call_operand.vmem [shape: f32[16,32], index: 0, kind: input, shape index: {}]
  %s1 = inlined_call_operand.vmem [shape: bf16[32,64], index: 1, kind: input, shape index: {}]
  %s2 = inlined_call_operand.vmem [shape: f32[1,64], index: 2, kind: input, shape index: {}]
  %s3 = inlined_call_operand.vmem [shape: bf16[16,64], index: 3, kind: output, shape index: {}]
  %s4 = sld [smem:[#allocation0]]
  $region30: #{transformer_decoder_layer.8} parent=0
    _
  %s6 = ssub.s32 1, %s4
  %s7 = scalar_select 0, %s6, %s4
  // Predicated region
  $region2: #{transformer_decoder_layer.8} parent=0 // pred_check
    _
  $region3: #{transformer_decoder_layer.8} parent=0 // pred_check_branch
    %9 = sbr.rel (0) target = $region5
  $region4: #{transformer_decoder_layer.8} parent=0 // pred_region
    _
  $region5: #{transformer_decoder_layer.8} parent=0 // pred_fallthru
    _
  // Predicated region
  $region6: #{transformer_decoder_layer.8} parent=0 // pred_check
    _
  $region7: #{transformer_decoder_layer.8} parent=0 // pred_check_branch
    %11 = sbr.rel (0) target = $region9
  $region8: #{transformer_decoder_layer.8} parent=0 // pred_region
    _
  $region9: #{transformer_decoder_layer.8} parent=0 // pred_fallthru
    _
  // Predicated region
  $region10: #{transformer_decoder_layer.8} parent=0 // pred_check
    _
  $region11: #{transformer_decoder_layer.8} parent=0 // pred_check_branch
    %13 = sbr.rel (0) target = $region13
  $region12: #{transformer_decoder_layer.8} parent=0 // pred_region
    _
  $region13: #{transformer_decoder_layer.8} parent=0 // pred_fallthru
    _
  %p15 = scmp.eq.s32.totalorder 0, 0
  // Predicated region
  $region14: #{transformer_decoder_layer.8} parent=0 // pred_check
    %p16 = pneg %p15
  $region15: #{transformer_decoder_layer.8} parent=0 // pred_check_branch
    %18 = sbr.rel (%p16) target = $region17
  $region16: #{transformer_decoder_layer.8} parent=0 // pred_region
    %vm19 = vcmask 523264
    %20 = vst.msk [vmem:[#allocation2] sm:$0xff] %vm19, 0.0
    %21 = vst.msk [vmem:[#allocation2 + $0x8] sm:$0xff] %vm19, 0.0
  $region17: #{transformer_decoder_layer.8} parent=0 // pred_fallthru
    _
  %v22 = vld [vmem:[#allocation2] sm:$0xff]
  %v23 = vld [vmem:[#allocation2 + $0x8] sm:$0xff]
  %v24 = vld [vmem:[%s0] sm:$0xff]
  %v25 = vld [vmem:[%s0 + $0x8] sm:$0xff]
  %v26 = vpack.c.bf16 %v25, %v24
  %v27 = vld [vmem:[%s1] sm:$0xf]
  %v28 = vld [vmem:[%s1 + $0x4] sm:$0xf]
  %v29 = vld [vmem:[%s1 + $0x8] sm:$0xf]
  %v30 = vld [vmem:[%s1 + $0xc] sm:$0xf]
  %v35 = vunpack.c.l.b16 %v27
  %v36 = vunpack.c.l.b16 %v28
  %v37 = vunpack.c.l.b16 %v29
  %v38 = vunpack.c.l.b16 %v30
  %v39 = vpack.c.b16 %v36, %v35
  %v40 = vpack.c.b16 %v38, %v37
  %vm43 = vcmask 261120
  %v45 = vsel %vm43, %v26, 0
  %47 = vmatprep.subr.bf16.mxu0 0
  %48 = vmatpush1.bf16.msra.mxu0 0
  %49 = vmatprep.subr.bf16.mxu0 0
  %50 = vmatpush1.bf16.msra.mxu0 0
  %51 = vmatprep.subr.bf16.mxu0 0
  %52 = vmatpush1.bf16.msra.mxu0 0
  %53 = vmatprep.subr.bf16.mxu0 0
  %54 = vmatpush1.bf16.msra.mxu0 0
  %55 = vmatprep.subr.bf16.mxu0 0
  %56 = vmatpush1.bf16.msra.mxu0 0
  %57 = vmatprep.subr.bf16.mxu0 0
  %58 = vmatpush1.bf16.msra.mxu0 0
  %59 = vmatprep.subr.bf16.mxu0 0
  %60 = vmatpush1.bf16.msra.mxu0 %v40
  %61 = vmatprep.subr.bf16.mxu0 0
  %62 = vmatpush1.bf16.msra.mxu0 %v39
  %63 = vmatprep.subr.bf16.mxu0 0
  %64 = vmatpush2.bf16.msra.mxu0 0
  %65 = vmatprep.subr.bf16.mxu0 0
  %66 = vmatpush2.bf16.msra.mxu0 0
  %67 = vmatprep.subr.bf16.mxu0 0
  %68 = vmatpush2.bf16.msra.mxu0 0
  %69 = vmatprep.subr.bf16.mxu0 0
  %70 = vmatpush2.bf16.msra.mxu0 0
  %71 = vmatprep.subr.bf16.mxu0 0
  %72 = vmatpush2.bf16.msra.mxu0 0
  %73 = vmatprep.subr.bf16.mxu0 0
  %74 = vmatpush2.bf16.msra.mxu0 0
  %75 = vmatprep.subr.bf16.mxu0 0
  %76 = vmatpush2.bf16.msra.mxu0 0
  %77 = vmatprep.subr.bf16.mxu0 0
  %78 = vmatpush2.bf16.msra.mxu0 0
  %79 = vmatprep.mubr.bf16.mxu0 0
  %80 = vmatmul.mubr.bf16.gmra.mxu0 %v45
  %v81 = vpop.f32.mrf.mxu0
  %v82 = vadd.f32 0.0, %v81
  %v83 = vpop.f32.mrf.mxu0
  %v84 = vpop.f32.mrf.mxu0
  %v85 = vadd.f32 0.0, %v84
  %v86 = vpop.f32.mrf.mxu0
  %87 = vdwg.mxu0
  %v88 = vadd.f32 %v22, %v82
  %v89 = vadd.f32 %v23, %v85
  %vm90 = vcmask 523264
  %91 = vst.msk [vmem:[#allocation2] sm:$0xff] %vm90, %v88
  %92 = vst.msk [vmem:[#allocation2 + $0x8] sm:$0xff] %vm90, %v89
  // Predicated region
  $region18: #{transformer_decoder_layer.8} parent=0 // pred_check
    %p93 = pneg %p15
  $region19: #{transformer_decoder_layer.8} parent=0 // pred_check_branch
    %95 = sbr.rel (%p93) target = $region21
  $region20: #{transformer_decoder_layer.8} parent=0 // pred_region
    %v96 = vld [vmem:[#allocation2] sm:$0xff]
    %v97 = vld [vmem:[#allocation2 + $0x8] sm:$0xff]
    %v98 = vld [vmem:[%s2] sm:$0x1]
    %v100 = vlaneseq
    %v101 = vshrl.u32 %v100, 7
    %v102 = vsub.s32 0, %v101
    %v103 = vrot.slane %v98, %v102
    %v105 = vadd.f32 %v96, %v103
    %v106 = vadd.f32 %v97, %v103
    %v107 = vpack.c.bf16 %v106, %v105
    %v109 = vunpack.c.l.b16 %v107
    %v110 = vunpack.c.h.b16 %v107
    %v111 = vpack.c.b16 %v109, %v109
    %v112 = vpack.c.b16 %v110, %v110
    %vm115 = vcmask 519168
    %116 = vst.msk [vmem:[%s3] sm:$0xf] %vm115, %v111
    %117 = vst.msk [vmem:[%s3 + $0x4] sm:$0xf] %vm115, %v112
  $region21: #{transformer_decoder_layer.8} parent=0 // pred_fallthru
    _
  // Predicated region
  $region22: #{transformer_decoder_layer.8} parent=0 // pred_check
    _
  $region23: #{transformer_decoder_layer.8} parent=0 // pred_check_branch
    %119 = sbr.rel (0) target = $region25
  $region24: #{transformer_decoder_layer.8} parent=0 // pred_region
    _
  $region25: #{transformer_decoder_layer.8} parent=0 // pred_fallthru
    _
  // Predicated region
  $region26: #{transformer_decoder_layer.8} parent=0 // pred_check
    _
  $region27: #{transformer_decoder_layer.8} parent=0 // pred_check_branch
    %121 = sbr.rel (0) target = $region29
  $region28: #{transformer_decoder_layer.8} parent=0 // pred_region
    _
  $region29: #{transformer_decoder_layer.8} parent=0 // pred_fallthru
    _

// kernel: transformer_decoder_layer.7
$region0: #{transformer_decoder_layer.7}
  #allocation0 [shape = 'u32[]', space=smem, size = 0x4, offset = 0x4, fixed_abs, tag = 'smem constant byte address 0x4 - core index']
  #allocation1 [shape = 'u32[144,128]{1,0:T(1,128)}', space=vmem, size = 0x12000, scoped, tag = 'internal scratch']
  #allocation2 [shape = 'bf16[8,32]{1,0:T(8,128)(2,1)}', space=vmem, size = 0x800, scoped, tag = 'scratch operand']
  %s0 = inlined_call_operand.vmem [shape: bf16[2,8,96], index: 0, kind: input, shape index: {}]
  %s1 = inlined_call_operand.vmem [shape: f32[2,1,8], index: 1, kind: input, shape index: {}]
  %s2 = inlined_call_operand.vmem [shape: f32[8,8], index: 2, kind: input, shape index: {}]
  %s3 = inlined_call_operand.vmem [shape: bf16[32,32], index: 3, kind: input, shape index: {}]
  %s4 = inlined_call_operand.vmem [shape: f32[1,32], index: 4, kind: input, shape index: {}]
  %s5 = inlined_call_operand.vmem [shape: f32[2,8,32], index: 5, kind: input, shape index: {}]
  %s6 = inlined_call_operand.vmem [shape: f32[1,32], index: 6, kind: input, shape index: {}]
  %s7 = inlined_call_operand.vmem [shape: f32[1,32], index: 7, kind: input, shape index: {}]
  %s8 = inlined_call_operand.vmem [shape: f32[2,8,32], index: 8, kind: output, shape index: {}]
  %s9 = sld [smem:[#allocation0]]
  $region65: #{transformer_decoder_layer.7} parent=0
    _
  %s11 = ssub.s32 1, %s9
  %s12 = scalar_select 0, %s11, %s9
  loop: start=0, step=1, limit=4
  $region2: #{transformer_decoder_layer.7} parent=0 // loop_pre_header
    _
  $region3: #{transformer_decoder_layer.7} parent=0 // loop_header
    %s14 = sphi 0, %s18
    %p15 = scmp.ge.s32.totalorder %s14, 4
    %s24 = sphi 0, %s26
    %s27 = sphi 0, %s24
    %s28 = sphi 0, %s27
    %s44 = sphi 0, %s28
    %s50 = sphi 0, %s52
    %s53 = sphi 0, %s50
    %s54 = sphi 0, %s53
    %s70 = sphi 0, %s54
    %s74 = sphi 0, %s74
    %s76 = sphi 0, %s74
    %s77 = sphi 0, %s76
    %s91 = sphi 0, %s77
    %s95 = sphi 0, %s95
    %s97 = sphi 0, %s95
    %s98 = sphi 0, %s97
    %s112 = sphi 0, %s98
    %s116 = sphi 0, %s116
    %s118 = sphi 0, %s116
    %s119 = sphi 0, %s118
    %s133 = sphi 0, %s119
    %s139 = sphi 0, %s141
    %s142 = sphi 0, %s139
    %s143 = sphi 0, %s142
    %s159 = sphi 0, %s143
    %s163 = sphi 0, %s163
    %s165 = sphi 0, %s163
    %s166 = sphi 0, %s165
    %s180 = sphi 0, %s166
    %s184 = sphi 0, %s184
    %s186 = sphi 0, %s184
    %s187 = sphi 0, %s186
    %s201 = sphi 0, %s187
    %s207 = sphi 0, %s209
    %s210 = sphi 0, %s207
    %s211 = sphi 0, %s210
    %s227 = sphi 0, %s211
  $region4: #{transformer_decoder_layer.7} parent=0 // loop_header_branch
    %17 = sbr.rel (%p15) target = $region8
  $region5: #{transformer_decoder_layer.7} parent=0 // loop_body
    %s19 = ssub.s32 %s14, 1
    %s20 = ssub.s32 %s14, 2
    %s21 = sadd.s32 %s14, 1
    %s22 = ssub.s32 %s14, %s21
    %p23 = scmp.eq.s32.totalorder %s22, 0
    %s25 = sadd.s32 %s24, 1
    %s26 = scalar_select %p23, %s24, %s25
    %p29 = pneg %p23
    %p30 = scmp.eq.s32.totalorder %s14, 1
    %p31 = por %p29, %p30
    %p32 = scmp.ne.s32.totalorder %s24, %s27
    %p33 = scmp.eq.s32.totalorder %s14, 0
    %p34 = por %p32, %p33
    %p35 = scmp.ne.s32.totalorder %s24, %s27
    %p36 = scmp.eq.s32.totalorder %s19, 1
    %p37 = por %p35, %p36
    %p38 = scmp.ne.s32.totalorder %s27, %s28
    %p39 = scmp.eq.s32.totalorder %s19, 0
    %p40 = por %p38, %p39
    %p41 = scmp.ne.s32.totalorder %s27, %s28
    %p42 = scmp.eq.s32.totalorder %s20, 1
    %p43 = por %p41, %p42
    %p45 = scmp.ne.s32.totalorder %s28, %s44
    %p46 = scmp.eq.s32.totalorder %s20, 0
    %p47 = por %p45, %p46
    %s48 = ssub.s32 %s14, %s21
    %p49 = scmp.eq.s32.totalorder %s48, 0
    %s51 = sadd.s32 %s50, 1
    %s52 = scalar_select %p49, %s50, %s51
    %p55 = pneg %p49
    %p56 = scmp.eq.s32.totalorder %s14, 1
    %p57 = por %p55, %p56
    %p58 = scmp.ne.s32.totalorder %s50, %s53
    %p59 = scmp.eq.s32.totalorder %s14, 0
    %p60 = por %p58, %p59
    %p61 = scmp.ne.s32.totalorder %s50, %s53
    %p62 = scmp.eq.s32.totalorder %s19, 1
    %p63 = por %p61, %p62
    %p64 = scmp.ne.s32.totalorder %s53, %s54
    %p65 = scmp.eq.s32.totalorder %s19, 0
    %p66 = por %p64, %p65
    %p67 = scmp.ne.s32.totalorder %s53, %s54
    %p68 = scmp.eq.s32.totalorder %s20, 1
    %p69 = por %p67, %p68
    %p71 = scmp.ne.s32.totalorder %s54, %s70
    %p72 = scmp.eq.s32.totalorder %s20, 0
    %p73 = por %p71, %p72
    %s75 = sadd.s32 %s74, 1
    %p78 = scmp.eq.s32.totalorder %s14, 1
    %p79 = scmp.ne.s32.totalorder %s74, %s76
    %p80 = scmp.eq.s32.totalorder %s14, 0
    %p81 = por %p79, %p80
    %p82 = scmp.ne.s32.totalorder %s74, %s76
    %p83 = scmp.eq.s32.totalorder %s19, 1
    %p84 = por %p82, %p83
    %p85 = scmp.ne.s32.totalorder %s76, %s77
    %p86 = scmp.eq.s32.totalorder %s19, 0
    %p87 = por %p85, %p86
    %p88 = scmp.ne.s32.totalorder %s76, %s77
    %p89 = scmp.eq.s32.totalorder %s20, 1
    %p90 = por %p88, %p89
    %p92 = scmp.ne.s32.totalorder %s77, %s91
    %p93 = scmp.eq.s32.totalorder %s20, 0
    %p94 = por %p92, %p93
    %s96 = sadd.s32 %s95, 1
    %p99 = scmp.eq.s32.totalorder %s14, 1
    %p100 = scmp.ne.s32.totalorder %s95, %s97
    %p101 = scmp.eq.s32.totalorder %s14, 0
    %p102 = por %p100, %p101
    %p103 = scmp.ne.s32.totalorder %s95, %s97
    %p104 = scmp.eq.s32.totalorder %s19, 1
    %p105 = por %p103, %p104
    %p106 = scmp.ne.s32.totalorder %s97, %s98
    %p107 = scmp.eq.s32.totalorder %s19, 0
    %p108 = por %p106, %p107
    %p109 = scmp.ne.s32.totalorder %s97, %s98
    %p110 = scmp.eq.s32.totalorder %s20, 1
    %p111 = por %p109, %p110
    %p113 = scmp.ne.s32.totalorder %s98, %s112
    %p114 = scmp.eq.s32.totalorder %s20, 0
    %p115 = por %p113, %p114
    %s117 = sadd.s32 %s116, 1
    %p120 = scmp.eq.s32.totalorder %s14, 1
    %p121 = scmp.ne.s32.totalorder %s116, %s118
    %p122 = scmp.eq.s32.totalorder %s14, 0
    %p123 = por %p121, %p122
    %p124 = scmp.ne.s32.totalorder %s116, %s118
    %p125 = scmp.eq.s32.totalorder %s19, 1
    %p126 = por %p124, %p125
    %p127 = scmp.ne.s32.totalorder %s118, %s119
    %p128 = scmp.eq.s32.totalorder %s19, 0
    %p129 = por %p127, %p128
    %p130 = scmp.ne.s32.totalorder %s118, %s119
    %p131 = scmp.eq.s32.totalorder %s20, 1
    %p132 = por %p130, %p131
    %p134 = scmp.ne.s32.totalorder %s119, %s133
    %p135 = scmp.eq.s32.totalorder %s20, 0
    %p136 = por %p134, %p135
    %s137 = ssub.s32 %s14, %s21
    %p138 = scmp.eq.s32.totalorder %s137, 0
    %s140 = sadd.s32 %s139, 1
    %s141 = scalar_select %p138, %s139, %s140
    %p144 = pneg %p138
    %p145 = scmp.eq.s32.totalorder %s14, 1
    %p146 = por %p144, %p145
    %p147 = scmp.ne.s32.totalorder %s139, %s142
    %p148 = scmp.eq.s32.totalorder %s14, 0
    %p149 = por %p147, %p148
    %p150 = scmp.ne.s32.totalorder %s139, %s142
    %p151 = scmp.eq.s32.totalorder %s19, 1
    %p152 = por %p150, %p151
    %p153 = scmp.ne.s32.totalorder %s142, %s143
    %p154 = scmp.eq.s32.totalorder %s19, 0
    %p155 = por %p153, %p154
    %p156 = scmp.ne.s32.totalorder %s142, %s143
    %p157 = scmp.eq.s32.totalorder %s20, 1
    %p158 = por %p156, %p157
    %p160 = scmp.ne.s32.totalorder %s143, %s159
    %p161 = scmp.eq.s32.totalorder %s20, 0
    %p162 = por %p160, %p161
    %s164 = sadd.s32 %s163, 1
    %p167 = scmp.eq.s32.totalorder %s14, 1
    %p168 = scmp.ne.s32.totalorder %s163, %s165
    %p169 = scmp.eq.s32.totalorder %s14, 0
    %p170 = por %p168, %p169
    %p171 = scmp.ne.s32.totalorder %s163, %s165
    %p172 = scmp.eq.s32.totalorder %s19, 1
    %p173 = por %p171, %p172
    %p174 = scmp.ne.s32.totalorder %s165, %s166
    %p175 = scmp.eq.s32.totalorder %s19, 0
    %p176 = por %p174, %p175
    %p177 = scmp.ne.s32.totalorder %s165, %s166
    %p178 = scmp.eq.s32.totalorder %s20, 1
    %p179 = por %p177, %p178
    %p181 = scmp.ne.s32.totalorder %s166, %s180
    %p182 = scmp.eq.s32.totalorder %s20, 0
    %p183 = por %p181, %p182
    %s185 = sadd.s32 %s184, 1
    %p188 = scmp.eq.s32.totalorder %s14, 1
    %p189 = scmp.ne.s32.totalorder %s184, %s186
    %p190 = scmp.eq.s32.totalorder %s14, 0
    %p191 = por %p189, %p190
    %p192 = scmp.ne.s32.totalorder %s184, %s186
    %p193 = scmp.eq.s32.totalorder %s19, 1
    %p194 = por %p192, %p193
    %p195 = scmp.ne.s32.totalorder %s186, %s187
    %p196 = scmp.eq.s32.totalorder %s19, 0
    %p197 = por %p195, %p196
    %p198 = scmp.ne.s32.totalorder %s186, %s187
    %p199 = scmp.eq.s32.totalorder %s20, 1
    %p200 = por %p198, %p199
    %p202 = scmp.ne.s32.totalorder %s187, %s201
    %p203 = scmp.eq.s32.totalorder %s20, 0
    %p204 = por %p202, %p203
    %s205 = ssub.s32 %s14, %s21
    %p206 = scmp.eq.s32.totalorder %s205, 0
    %s208 = sadd.s32 %s207, 1
    %s209 = scalar_select %p206, %s207, %s208
    %p212 = pneg %p206
    %p213 = scmp.eq.s32.totalorder %s14, 1
    %p214 = por %p212, %p213
    %p215 = scmp.ne.s32.totalorder %s207, %s210
    %p216 = scmp.eq.s32.totalorder %s14, 0
    %p217 = por %p215, %p216
    %p218 = scmp.ne.s32.totalorder %s207, %s210
    %p219 = scmp.eq.s32.totalorder %s19, 1
    %p220 = por %p218, %p219
    %p221 = scmp.ne.s32.totalorder %s210, %s211
    %p222 = scmp.eq.s32.totalorder %s19, 0
    %p223 = por %p221, %p222
    %p224 = scmp.ne.s32.totalorder %s210, %s211
    %p225 = scmp.eq.s32.totalorder %s20, 1
    %p226 = por %p224, %p225
    %p228 = scmp.ne.s32.totalorder %s211, %s227
    %p229 = scmp.eq.s32.totalorder %s20, 0
    %p230 = por %p228, %p229
    %p231 = scmp.le.s32.totalorder 1, %s14
    %p232 = scmp.lt.s32.totalorder %s14, 3
    %p233 = pnand %p231, %p232
    %p234 = pneg %p233
    // Predicated region
    $region9: #{transformer_decoder_layer.7} parent=5 // pred_check
      _
    $region10: #{transformer_decoder_layer.7} parent=5 // pred_check_branch
      %236 = sbr.rel (%p233) target = $region12
    $region11: #{transformer_decoder_layer.7} parent=5 // pred_region
      %s237 = ssub.s32 %s14, 1
      // Predicated region
      $region13: #{transformer_decoder_layer.7} parent=11 // pred_check
        %p238 = pneg %p87
      $region14: #{transformer_decoder_layer.7} parent=11 // pred_check_branch
        %240 = sbr.rel (%p238) target = $region16
      $region15: #{transformer_decoder_layer.7} parent=11 // pred_region
        _
      $region16: #{transformer_decoder_layer.7} parent=11 // pred_fallthru
        _
      // Predicated region
      $region17: #{transformer_decoder_layer.7} parent=11 // pred_check
        %p241 = pneg %p108
      $region18: #{transformer_decoder_layer.7} parent=11 // pred_check_branch
        %243 = sbr.rel (%p241) target = $region20
      $region19: #{transformer_decoder_layer.7} parent=11 // pred_region
        _
      $region20: #{transformer_decoder_layer.7} parent=11 // pred_fallthru
        _
      // Predicated region
      $region21: #{transformer_decoder_layer.7} parent=11 // pred_check
        %p244 = pneg %p129
      $region22: #{transformer_decoder_layer.7} parent=11 // pred_check_branch
        %246 = sbr.rel (%p244) target = $region24
      $region23: #{transformer_decoder_layer.7} parent=11 // pred_region
        _
      $region24: #{transformer_decoder_layer.7} parent=11 // pred_fallthru
        _
      // Predicated region
      $region25: #{transformer_decoder_layer.7} parent=11 // pred_check
        %p247 = pneg %p176
      $region26: #{transformer_decoder_layer.7} parent=11 // pred_check_branch
        %249 = sbr.rel (%p247) target = $region28
      $region27: #{transformer_decoder_layer.7} parent=11 // pred_region
        _
      $region28: #{transformer_decoder_layer.7} parent=11 // pred_fallthru
        _
      // Predicated region
      $region29: #{transformer_decoder_layer.7} parent=11 // pred_check
        %p250 = pneg %p197
      $region30: #{transformer_decoder_layer.7} parent=11 // pred_check_branch
        %252 = sbr.rel (%p250) target = $region32
      $region31: #{transformer_decoder_layer.7} parent=11 // pred_region
        _
      $region32: #{transformer_decoder_layer.7} parent=11 // pred_fallthru
        _
    $region12: #{transformer_decoder_layer.7} parent=5 // pred_fallthru
      _
    %p253 = scmp.lt.s32.totalorder %s14, 2
    // Predicated region
    $region33: #{transformer_decoder_layer.7} parent=5 // pred_check
      %p254 = pneg %p253
    $region34: #{transformer_decoder_layer.7} parent=5 // pred_check_branch
      %256 = sbr.rel (%p254) target = $region36
    $region35: #{transformer_decoder_layer.7} parent=5 // pred_region
      // Predicated region
      $region37: #{transformer_decoder_layer.7} parent=35 // pred_check
        %p257 = pneg %p34
      $region38: #{transformer_decoder_layer.7} parent=35 // pred_check_branch
        %259 = sbr.rel (%p257) target = $region40
      $region39: #{transformer_decoder_layer.7} parent=35 // pred_region
        %p260 = scmp.lt.s32.totalorder %s14, 1
        %s261 = scalar_select %p260, %s14, 1
        %s262 = smul.addr %s261, 4
        %s263 = scalar_lea.vmem %s0, %s262
      $region40: #{transformer_decoder_layer.7} parent=35 // pred_fallthru
        _
      // Predicated region
      $region41: #{transformer_decoder_layer.7} parent=35 // pred_check
        %p264 = pneg %p60
      $region42: #{transformer_decoder_layer.7} parent=35 // pred_check_branch
        %266 = sbr.rel (%p264) target = $region44
      $region43: #{transformer_decoder_layer.7} parent=35 // pred_region
        %p267 = scmp.lt.s32.totalorder %s14, 1
        %s268 = scalar_select %p267, %s14, 1
        %s269 = scalar_lea.vmem %s1, %s268
      $region44: #{transformer_decoder_layer.7} parent=35 // pred_fallthru
        _
      // Predicated region
      $region45: #{transformer_decoder_layer.7} parent=35 // pred_check
        %p270 = pneg %p149
      $region46: #{transformer_decoder_layer.7} parent=35 // pred_check_branch
        %272 = sbr.rel (%p270) target = $region48
      $region47: #{transformer_decoder_layer.7} parent=35 // pred_region
        %p273 = scmp.lt.s32.totalorder %s14, 1
        %s274 = scalar_select %p273, %s14, 1
        %s275 = smul.addr %s274, 8
        %s276 = scalar_lea.vmem %s5, %s275
      $region48: #{transformer_decoder_layer.7} parent=35 // pred_fallthru
        _
    $region36: #{transformer_decoder_layer.7} parent=5 // pred_fallthru
      _
    %p277 = scmp.le.s32.totalorder 1, %s14
    %p278 = scmp.lt.s32.totalorder %s14, 3
    %p279 = pnand %p277, %p278
    %p280 = pneg %p279
    // Predicated region
    $region49: #{transformer_decoder_layer.7} parent=5 // pred_check
      _
    $region50: #{transformer_decoder_layer.7} parent=5 // pred_check_branch
      %282 = sbr.rel (%p279) target = $region52
    $region51: #{transformer_decoder_layer.7} parent=5 // pred_region
      %s283 = ssub.s32 %s14, 1
      %p284 = scmp.lt.s32.totalorder %s19, 1
      %s285 = scalar_select %p284, %s19, 1
      %s286 = smul.addr %s285, 4
      %s287 = scalar_lea.vmem %s0, %s286
      %p288 = pneg %p40
      %p289 = pneg %p37
      %p290 = scmp.lt.s32.totalorder %s19, 1
      %s291 = scalar_select %p290, %s19, 1
      %s292 = scalar_lea.vmem %s1, %s291
      %p293 = pneg %p66
      %p294 = pneg %p63
      %p295 = pneg %p87
      %p296 = pneg %p84
      %p297 = pneg %p108
      %p298 = pneg %p105
      %p299 = pneg %p129
      %p300 = pneg %p126
      %p301 = scmp.lt.s32.totalorder %s19, 1
      %s302 = scalar_select %p301, %s19, 1
      %s303 = smul.addr %s302, 8
      %s304 = scalar_lea.vmem %s5, %s303
      %p305 = pneg %p155
      %p306 = pneg %p152
      %p307 = pneg %p176
      %p308 = pneg %p173
      %p309 = pneg %p197
      %p310 = pneg %p194
      %p311 = pneg %p223
      %p312 = pneg %p220
      %p313 = scmp.lt.s32.totalorder %s19, 1
      %s314 = scalar_select %p313, %s19, 1
      %s315 = smul.addr %s314, 8
      %s316 = scalar_lea.vmem %s8, %s315
      %p317 = scmp.lt.s32.totalorder %s19, 1
      %s318 = scalar_select %p317, %s19, 1
      %s319 = smul.addr %s318, 4
      %s320 = scalar_lea.vmem %s0, %s319
      %p321 = scmp.lt.s32.totalorder %s19, 1
      %s322 = scalar_select %p321, %s19, 1
      %s323 = scalar_lea.vmem %s1, %s322
      %p324 = scmp.lt.s32.totalorder %s19, 1
      %s325 = scalar_select %p324, %s19, 1
      %s326 = smul.addr %s325, 8
      %s327 = scalar_lea.vmem %s5, %s326
      %p328 = scmp.lt.s32.totalorder %s19, 1
      %s329 = scalar_select %p328, %s19, 1
      %s330 = smul.addr %s329, 8
      %s331 = scalar_lea.vmem %s8, %s330
      %v333 = vld [vmem:[%s323] sm:$0x1]
      %v334 = vld [vmem:[%s2] sm:$0xff]
      %v336 = vlaneseq
      %v337 = vshrl.u32 %v336, 7
      %v338 = vsub.s32 0, %v337
      %v339 = vrot.slane %v333, %v338
      %v341 = vadd.f32 %v339, %v334
      %v342 = vld [vmem:[%s320] sm:$0xf]
      %v344 = vunpack.c.l.b16 %v342
      %v345 = vpack.c.b16 %v344, %v344
      %346 = vrot.lane.b32.xlu0 %v345, 96
      %v347 = vpop.permute.xlu0 %346
      %vm348 = vcmask 64512
      %v350 = vsel %vm348, %v342, 0
      %v353 = vsel %vm348, %v347, 0
      %355 = vmatprep.subr.bf16.mxu0 0
      %356 = vmatpush1.bf16.xpose.msra.mxu0 0
      %357 = vmatprep.subr.bf16.mxu0 0
      %358 = vmatpush1.bf16.xpose.msra.mxu0 0
      %359 = vmatprep.subr.bf16.mxu0 0
      %360 = vmatpush1.bf16.xpose.msra.mxu0 0
      %361 = vmatprep.subr.bf16.mxu0 0
      %362 = vmatpush1.bf16.xpose.msra.mxu0 0
      %363 = vmatprep.subr.bf16.mxu0 0
      %364 = vmatpush1.bf16.xpose.msra.mxu0 0
      %365 = vmatprep.subr.bf16.mxu0 0
      %366 = vmatpush1.bf16.xpose.msra.mxu0 0
      %367 = vmatprep.subr.bf16.mxu0 0
      %368 = vmatpush1.bf16.xpose.msra.mxu0 0
      %369 = vmatprep.subr.bf16.mxu0 0
      %370 = vmatpush1.bf16.xpose.msra.mxu0 %v353
      %371 = vmatprep.subr.bf16.mxu0 0
      %372 = vmatpush2.bf16.xpose.msra.mxu0 0
      %373 = vmatprep.subr.bf16.mxu0 0
      %374 = vmatpush2.bf16.xpose.msra.mxu0 0
      %375 = vmatprep.subr.bf16.mxu0 0
      %376 = vmatpush2.bf16.xpose.msra.mxu0 0
      %377 = vmatprep.subr.bf16.mxu0 0
      %378 = vmatpush2.bf16.xpose.msra.mxu0 0
      %379 = vmatprep.subr.bf16.mxu0 0
      %380 = vmatpush2.bf16.xpose.msra.mxu0 0
      %381 = vmatprep.subr.bf16.mxu0 0
      %382 = vmatpush2.bf16.xpose.msra.mxu0 0
      %383 = vmatprep.subr.bf16.mxu0 0
      %384 = vmatpush2.bf16.xpose.msra.mxu0 0
      %385 = vmatprep.subr.bf16.mxu0 0
      %386 = vmatpush2.bf16.xpose.msra.mxu0 0
      %387 = vmatprep.mubr.bf16.mxu0 0
      %388 = vmatmul.mubr.bf16.gmra.mxu0 %v350
      %v389 = vpop.f32.mrf.mxu0
      %v390 = vadd.f32 0.0, %v389
      %v391 = vpop.f32.mrf.mxu0
      %v392 = vpop.f32.mrf.mxu0
      %v393 = vpop.f32.mrf.mxu0
      %394 = vdwg.mxu0
      %v395 = vmul.f32 %v390, 0.35355338
      %v396 = vadd.f32 %v395, %v341
      %v397 = vsel %vm348, %v396, -inf
      %398 = vmax.xlane.f32.xlu0 %v397
      %v399 = vpop.xlane.xlu0 %398
      %v400 = vsub.f32 %v396, %v399
      %v401 = vmul.f32 %v400, 1.442695
      %v402 = vpow.pop %v401
      %v403 = vsel %vm348, %v402, 0.0
      %404 = vadd.xlane.f32.xlu0 %v403
      %v405 = vpop.xlane.xlu0 %404
      %v406 = vrcp.pop %v405
      %v407 = vmul.f32 %v402, %v406
      %v408 = vpack.c.bf16 %v407, %v407
      %409 = vrot.lane.b32.xlu0 %v345, 64
      %v410 = vpop.permute.xlu0 %409
      %v412 = vsel %vm348, %v408, 0
      %vm414 = vcmask 1043456
      %v416 = vsel %vm414, %v410, 0
      %418 = vmatprep.subr.bf16.mxu0 0
      %419 = vmatpush1.bf16.msra.mxu0 0
      %420 = vmatprep.subr.bf16.mxu0 0
      %421 = vmatpush1.bf16.msra.mxu0 0
      %422 = vmatprep.subr.bf16.mxu0 0
      %423 = vmatpush1.bf16.msra.mxu0 0
      %424 = vmatprep.subr.bf16.mxu0 0
      %425 = vmatpush1.bf16.msra.mxu0 0
      %426 = vmatprep.subr.bf16.mxu0 0
      %427 = vmatpush1.bf16.msra.mxu0 0
      %428 = vmatprep.subr.bf16.mxu0 0
      %429 = vmatpush1.bf16.msra.mxu0 0
      %430 = vmatprep.subr.bf16.mxu0 0
      %431 = vmatpush1.bf16.msra.mxu0 0
      %432 = vmatprep.subr.bf16.mxu0 0
      %433 = vmatpush1.bf16.msra.mxu0 %v416
      %434 = vmatprep.subr.bf16.mxu0 0
      %435 = vmatpush2.bf16.msra.mxu0 0
      %436 = vmatprep.subr.bf16.mxu0 0
      %437 = vmatpush2.bf16.msra.mxu0 0
      %438 = vmatprep.subr.bf16.mxu0 0
      %439 = vmatpush2.bf16.msra.mxu0 0
      %440 = vmatprep.subr.bf16.mxu0 0
      %441 = vmatpush2.bf16.msra.mxu0 0
      %442 = vmatprep.subr.bf16.mxu0 0
      %443 = vmatpush2.bf16.msra.mxu0 0
      %444 = vmatprep.subr.bf16.mxu0 0
      %445 = vmatpush2.bf16.msra.mxu0 0
      %446 = vmatprep.subr.bf16.mxu0 0
      %447 = vmatpush2.bf16.msra.mxu0 0
      %448 = vmatprep.subr.bf16.mxu0 0
      %449 = vmatpush2.bf16.msra.mxu0 0
      %450 = vmatprep.mubr.bf16.mxu0 0
      %451 = vmatmul.mubr.bf16.gmra.mxu0 %v412
      %v452 = vpop.f32.mrf.mxu0
      %v453 = vadd.f32 0.0, %v452
      %v454 = vpop.f32.mrf.mxu0
      %v455 = vpop.f32.mrf.mxu0
      %v456 = vpop.f32.mrf.mxu0
      %457 = vdwg.mxu0
      %v458 = vpack.c.bf16 %v453, %v453
      %vm459 = vcmask 60416
      %460 = vst.msk [vmem:[#allocation2] sm:$0xf] %vm459, %v458
      %v461 = vld [vmem:[%s320] sm:$0xf]
      %v463 = vunpack.c.l.b16 %v461
      %v464 = vpack.c.b16 %v463, %v463
      %465 = vrot.lane.b32.xlu0 %v464, 120
      %v466 = vpop.permute.xlu0 %465
      %467 = vrot.lane.b32.xlu0 %v464, 88
      %v468 = vpop.permute.xlu0 %467
      %v470 = vsel %vm348, %v466, 0
      %v473 = vsel %vm348, %v468, 0
      %475 = vmatprep.subr.bf16.mxu0 0
      %476 = vmatpush1.bf16.xpose.msra.mxu0 0
      %477 = vmatprep.subr.bf16.mxu0 0
      %478 = vmatpush1.bf16.xpose.msra.mxu0 0
      %479 = vmatprep.subr.bf16.mxu0 0
      %480 = vmatpush1.bf16.xpose.msra.mxu0 0
      %481 = vmatprep.subr.bf16.mxu0 0
      %482 = vmatpush1.bf16.xpose.msra.mxu0 0
      %483 = vmatprep.subr.bf16.mxu0 0
      %484 = vmatpush1.bf16.xpose.msra.mxu0 0
      %485 = vmatprep.subr.bf16.mxu0 0
      %486 = vmatpush1.bf16.xpose.msra.mxu0 0
      %487 = vmatprep.subr.bf16.mxu0 0
      %488 = vmatpush1.bf16.xpose.msra.mxu0 0
      %489 = vmatprep.subr.bf16.mxu0 0
      %490 = vmatpush1.bf16.xpose.msra.mxu0 %v473
      %491 = vmatprep.subr.bf16.mxu0 0
      %492 = vmatpush2.bf16.xpose.msra.mxu0 0
      %493 = vmatprep.subr.bf16.mxu0 0
      %494 = vmatpush2.bf16.xpose.msra.mxu0 0
      %495 = vmatprep.subr.bf16.mxu0 0
      %496 = vmatpush2.bf16.xpose.msra.mxu0 0
      %497 = vmatprep.subr.bf16.mxu0 0
      %498 = vmatpush2.bf16.xpose.msra.mxu0 0
      %499 = vmatprep.subr.bf16.mxu0 0
      %500 = vmatpush2.bf16.xpose.msra.mxu0 0
      %501 = vmatprep.subr.bf16.mxu0 0
      %502 = vmatpush2.bf16.xpose.msra.mxu0 0
      %503 = vmatprep.subr.bf16.mxu0 0
      %504 = vmatpush2.bf16.xpose.msra.mxu0 0
      %505 = vmatprep.subr.bf16.mxu0 0
      %506 = vmatpush2.bf16.xpose.msra.mxu0 0
      %507 = vmatprep.mubr.bf16.mxu0 0
      %508 = vmatmul.mubr.bf16.gmra.mxu0 %v470
      %v509 = vpop.f32.mrf.mxu0
      %v510 = vadd.f32 0.0, %v509
      %v511 = vpop.f32.mrf.mxu0
      %v512 = vpop.f32.mrf.mxu0
      %v513 = vpop.f32.mrf.mxu0
      %514 = vdwg.mxu0
      %v515 = vmul.f32 %v510, 0.35355338
      %v516 = vadd.f32 %v515, %v341
      %v517 = vsel %vm348, %v516, -inf
      %518 = vmax.xlane.f32.xlu0 %v517
      %v519 = vpop.xlane.xlu0 %518
      %v520 = vsub.f32 %v516, %v519
      %v521 = vmul.f32 %v520, 1.442695
      %v522 = vpow.pop %v521
      %v523 = vsel %vm348, %v522, 0.0
      %524 = vadd.xlane.f32.xlu0 %v523
      %v525 = vpop.xlane.xlu0 %524
      %v526 = vrcp.pop %v525
      %v527 = vmul.f32 %v522, %v526
      %v528 = vpack.c.bf16 %v527, %v527
      %529 = vrot.lane.b32.xlu0 %v464, 56
      %v530 = vpop.permute.xlu0 %529
      %v532 = vsel %vm348, %v528, 0
      %v535 = vsel %vm414, %v530, 0
      %537 = vmatprep.subr.bf16.mxu0 0
      %538 = vmatpush1.bf16.msra.mxu0 0
      %539 = vmatprep.subr.bf16.mxu0 0
      %540 = vmatpush1.bf16.msra.mxu0 0
      %541 = vmatprep.subr.bf16.mxu0 0
      %542 = vmatpush1.bf16.msra.mxu0 0
      %543 = vmatprep.subr.bf16.mxu0 0
      %544 = vmatpush1.bf16.msra.mxu0 0
      %545 = vmatprep.subr.bf16.mxu0 0
      %546 = vmatpush1.bf16.msra.mxu0 0
      %547 = vmatprep.subr.bf16.mxu0 0
      %548 = vmatpush1.bf16.msra.mxu0 0
      %549 = vmatprep.subr.bf16.mxu0 0
      %550 = vmatpush1.bf16.msra.mxu0 0
      %551 = vmatprep.subr.bf16.mxu0 0
      %552 = vmatpush1.bf16.msra.mxu0 %v535
      %553 = vmatprep.subr.bf16.mxu0 0
      %554 = vmatpush2.bf16.msra.mxu0 0
      %555 = vmatprep.subr.bf16.mxu0 0
      %556 = vmatpush2.bf16.msra.mxu0 0
      %557 = vmatprep.subr.bf16.mxu0 0
      %558 = vmatpush2.bf16.msra.mxu0 0
      %559 = vmatprep.subr.bf16.mxu0 0
      %560 = vmatpush2.bf16.msra.mxu0 0
      %561 = vmatprep.subr.bf16.mxu0 0
      %562 = vmatpush2.bf16.msra.mxu0 0
      %563 = vmatprep.subr.bf16.mxu0 0
      %564 = vmatpush2.bf16.msra.mxu0 0
      %565 = vmatprep.subr.bf16.mxu0 0
      %566 = vmatpush2.bf16.msra.mxu0 0
      %567 = vmatprep.subr.bf16.mxu0 0
      %568 = vmatpush2.bf16.msra.mxu0 0
      %569 = vmatprep.mubr.bf16.mxu0 0
      %570 = vmatmul.mubr.bf16.gmra.mxu0 %v532
      %v571 = vpop.f32.mrf.mxu0
      %v572 = vadd.f32 0.0, %v571
      %v573 = vpop.f32.mrf.mxu0
      %v574 = vpop.f32.mrf.mxu0
      %v575 = vpop.f32.mrf.mxu0
      %576 = vdwg.mxu0
      %v577 = vpack.c.bf16 %v572, %v572
      %v579 = vunpack.c.l.b16 %v577
      %v580 = vpack.c.b16 %v579, %v579
      %581 = vrot.lane.b32.xlu0 %v580, 8
      %v582 = vpop.permute.xlu0 %581
      %vm584 = vcmask 126016
      %585 = vst.msk [vmem:[#allocation2] sm:$0xf] %vm584, %v582
      %v586 = vld [vmem:[%s320] sm:$0xf]
      %v588 = vunpack.c.l.b16 %v586
      %v589 = vpack.c.b16 %v588, %v588
      %590 = vrot.lane.b32.xlu0 %v589, 112
      %v591 = vpop.permute.xlu0 %590
      %592 = vrot.lane.b32.xlu0 %v589, 80
      %v593 = vpop.permute.xlu0 %592
      %v595 = vsel %vm348, %v591, 0
      %v598 = vsel %vm348, %v593, 0
      %600 = vmatprep.subr.bf16.mxu0 0
      %601 = vmatpush1.bf16.xpose.msra.mxu0 0
      %602 = vmatprep.subr.bf16.mxu0 0
      %603 = vmatpush1.bf16.xpose.msra.mxu0 0
      %604 = vmatprep.subr.bf16.mxu0 0
      %605 = vmatpush1.bf16.xpose.msra.mxu0 0
      %606 = vmatprep.subr.bf16.mxu0 0
      %607 = vmatpush1.bf16.xpose.msra.mxu0 0
      %608 = vmatprep.subr.bf16.mxu0 0
      %609 = vmatpush1.bf16.xpose.msra.mxu0 0
      %610 = vmatprep.subr.bf16.mxu0 0
      %611 = vmatpush1.bf16.xpose.msra.mxu0 0
      %612 = vmatprep.subr.bf16.mxu0 0
      %613 = vmatpush1.bf16.xpose.msra.mxu0 0
      %614 = vmatprep.subr.bf16.mxu0 0
      %615 = vmatpush1.bf16.xpose.msra.mxu0 %v598
      %616 = vmatprep.subr.bf16.mxu0 0
      %617 = vmatpush2.bf16.xpose.msra.mxu0 0
      %618 = vmatprep.subr.bf16.mxu0 0
      %619 = vmatpush2.bf16.xpose.msra.mxu0 0
      %620 = vmatprep.subr.bf16.mxu0 0
      %621 = vmatpush2.bf16.xpose.msra.mxu0 0
      %622 = vmatprep.subr.bf16.mxu0 0
      %623 = vmatpush2.bf16.xpose.msra.mxu0 0
      %624 = vmatprep.subr.bf16.mxu0 0
      %625 = vmatpush2.bf16.xpose.msra.mxu0 0
      %626 = vmatprep.subr.bf16.mxu0 0
      %627 = vmatpush2.bf16.xpose.msra.mxu0 0
      %628 = vmatprep.subr.bf16.mxu0 0
      %629 = vmatpush2.bf16.xpose.msra.mxu0 0
      %630 = vmatprep.subr.bf16.mxu0 0
      %631 = vmatpush2.bf16.xpose.msra.mxu0 0
      %632 = vmatprep.mubr.bf16.mxu0 0
      %633 = vmatmul.mubr.bf16.gmra.mxu0 %v595
      %v634 = vpop.f32.mrf.mxu0
      %v635 = vadd.f32 0.0, %v634
      %v636 = vpop.f32.mrf.mxu0
      %v637 = vpop.f32.mrf.mxu0
      %v638 = vpop.f32.mrf.mxu0
      %639 = vdwg.mxu0
      %v640 = vmul.f32 %v635, 0.35355338
      %v641 = vadd.f32 %v640, %v341
      %v642 = vsel %vm348, %v641, -inf
      %643 = vmax.xlane.f32.xlu0 %v642
      %v644 = vpop.xlane.xlu0 %643
      %v645 = vsub.f32 %v641, %v644
      %v646 = vmul.f32 %v645, 1.442695
      %v647 = vpow.pop %v646
      %v648 = vsel %vm348, %v647, 0.0
      %649 = vadd.xlane.f32.xlu0 %v648
      %v650 = vpop.xlane.xlu0 %649
      %v651 = vrcp.pop %v650
      %v652 = vmul.f32 %v647, %v651
      %v653 = vpack.c.bf16 %v652, %v652
      %654 = vrot.lane.b32.xlu0 %v589, 48
      %v655 = vpop.permute.xlu0 %654
      %v657 = vsel %vm348, %v653, 0
      %v660 = vsel %vm414, %v655, 0
      %662 = vmatprep.subr.bf16.mxu0 0
      %663 = vmatpush1.bf16.msra.mxu0 0
      %664 = vmatprep.subr.bf16.mxu0 0
      %665 = vmatpush1.bf16.msra.mxu0 0
      %666 = vmatprep.subr.bf16.mxu0 0
      %667 = vmatpush1.bf16.msra.mxu0 0
      %668 = vmatprep.subr.bf16.mxu0 0
      %669 = vmatpush1.bf16.msra.mxu0 0
      %670 = vmatprep.subr.bf16.mxu0 0
      %671 = vmatpush1.bf16.msra.mxu0 0
      %672 = vmatprep.subr.bf16.mxu0 0
      %673 = vmatpush1.bf16.msra.mxu0 0
      %674 = vmatprep.subr.bf16.mxu0 0
      %675 = vmatpush1.bf16.msra.mxu0 0
      %676 = vmatprep.subr.bf16.mxu0 0
      %677 = vmatpush1.bf16.msra.mxu0 %v660
      %678 = vmatprep.subr.bf16.mxu0 0
      %679 = vmatpush2.bf16.msra.mxu0 0
      %680 = vmatprep.subr.bf16.mxu0 0
      %681 = vmatpush2.bf16.msra.mxu0 0
      %682 = vmatprep.subr.bf16.mxu0 0
      %683 = vmatpush2.bf16.msra.mxu0 0
      %684 = vmatprep.subr.bf16.mxu0 0
      %685 = vmatpush2.bf16.msra.mxu0 0
      %686 = vmatprep.subr.bf16.mxu0 0
      %687 = vmatpush2.bf16.msra.mxu0 0
      %688 = vmatprep.subr.bf16.mxu0 0
      %689 = vmatpush2.bf16.msra.mxu0 0
      %690 = vmatprep.subr.bf16.mxu0 0
      %691 = vmatpush2.bf16.msra.mxu0 0
      %692 = vmatprep.subr.bf16.mxu0 0
      %693 = vmatpush2.bf16.msra.mxu0 0
      %694 = vmatprep.mubr.bf16.mxu0 0
      %695 = vmatmul.mubr.bf16.gmra.mxu0 %v657
      %v696 = vpop.f32.mrf.mxu0
      %v697 = vadd.f32 0.0, %v696
      %v698 = vpop.f32.mrf.mxu0
      %v699 = vpop.f32.mrf.mxu0
      %v700 = vpop.f32.mrf.mxu0
      %701 = vdwg.mxu0
      %v702 = vpack.c.bf16 %v697, %v697
      %v704 = vunpack.c.l.b16 %v702
      %v705 = vpack.c.b16 %v704, %v704
      %706 = vrot.lane.b32.xlu0 %v705, 16
      %v707 = vpop.permute.xlu0 %706
      %vm709 = vcmask 191616
      %710 = vst.msk [vmem:[#allocation2] sm:$0xf] %vm709, %v707
      %v711 = vld [vmem:[%s320] sm:$0xf]
      %v713 = vunpack.c.l.b16 %v711
      %v714 = vpack.c.b16 %v713, %v713
      %715 = vrot.lane.b32.xlu0 %v714, 104
      %v716 = vpop.permute.xlu0 %715
      %717 = vrot.lane.b32.xlu0 %v714, 72
      %v718 = vpop.permute.xlu0 %717
      %v720 = vsel %vm348, %v716, 0
      %v723 = vsel %vm348, %v718, 0
      %725 = vmatprep.subr.bf16.mxu0 0
      %726 = vmatpush1.bf16.xpose.msra.mxu0 0
      %727 = vmatprep.subr.bf16.mxu0 0
      %728 = vmatpush1.bf16.xpose.msra.mxu0 0
      %729 = vmatprep.subr.bf16.mxu0 0
      %730 = vmatpush1.bf16.xpose.msra.mxu0 0
      %731 = vmatprep.subr.bf16.mxu0 0
      %732 = vmatpush1.bf16.xpose.msra.mxu0 0
      %733 = vmatprep.subr.bf16.mxu0 0
      %734 = vmatpush1.bf16.xpose.msra.mxu0 0
      %735 = vmatprep.subr.bf16.mxu0 0
      %736 = vmatpush1.bf16.xpose.msra.mxu0 0
      %737 = vmatprep.subr.bf16.mxu0 0
      %738 = vmatpush1.bf16.xpose.msra.mxu0 0
      %739 = vmatprep.subr.bf16.mxu0 0
      %740 = vmatpush1.bf16.xpose.msra.mxu0 %v723
      %741 = vmatprep.subr.bf16.mxu0 0
      %742 = vmatpush2.bf16.xpose.msra.mxu0 0
      %743 = vmatprep.subr.bf16.mxu0 0
      %744 = vmatpush2.bf16.xpose.msra.mxu0 0
      %745 = vmatprep.subr.bf16.mxu0 0
      %746 = vmatpush2.bf16.xpose.msra.mxu0 0
      %747 = vmatprep.subr.bf16.mxu0 0
      %748 = vmatpush2.bf16.xpose.msra.mxu0 0
      %749 = vmatprep.subr.bf16.mxu0 0
      %750 = vmatpush2.bf16.xpose.msra.mxu0 0
      %751 = vmatprep.subr.bf16.mxu0 0
      %752 = vmatpush2.bf16.xpose.msra.mxu0 0
      %753 = vmatprep.subr.bf16.mxu0 0
      %754 = vmatpush2.bf16.xpose.msra.mxu0 0
      %755 = vmatprep.subr.bf16.mxu0 0
      %756 = vmatpush2.bf16.xpose.msra.mxu0 0
      %757 = vmatprep.mubr.bf16.mxu0 0
      %758 = vmatmul.mubr.bf16.gmra.mxu0 %v720
      %v759 = vpop.f32.mrf.mxu0
      %v760 = vadd.f32 0.0, %v759
      %v761 = vpop.f32.mrf.mxu0
      %v762 = vpop.f32.mrf.mxu0
      %v763 = vpop.f32.mrf.mxu0
      %764 = vdwg.mxu0
      %v765 = vmul.f32 %v760, 0.35355338
      %v766 = vadd.f32 %v765, %v341
      %v767 = vsel %vm348, %v766, -inf
      %768 = vmax.xlane.f32.xlu0 %v767
      %v769 = vpop.xlane.xlu0 %768
      %v770 = vsub.f32 %v766, %v769
      %v771 = vmul.f32 %v770, 1.442695
      %v772 = vpow.pop %v771
      %v773 = vsel %vm348, %v772, 0.0
      %774 = vadd.xlane.f32.xlu0 %v773
      %v775 = vpop.xlane.xlu0 %774
      %v776 = vrcp.pop %v775
      %v777 = vmul.f32 %v772, %v776
      %v778 = vpack.c.bf16 %v777, %v777
      %779 = vrot.lane.b32.xlu0 %v714, 40
      %v780 = vpop.permute.xlu0 %779
      %v782 = vsel %vm348, %v778, 0
      %v785 = vsel %vm414, %v780, 0
      %787 = vmatprep.subr.bf16.mxu0 0
      %788 = vmatpush1.bf16.msra.mxu0 0
      %789 = vmatprep.subr.bf16.mxu0 0
      %790 = vmatpush1.bf16.msra.mxu0 0
      %791 = vmatprep.subr.bf16.mxu0 0
      %792 = vmatpush1.bf16.msra.mxu0 0
      %793 = vmatprep.subr.bf16.mxu0 0
      %794 = vmatpush1.bf16.msra.mxu0 0
      %795 = vmatprep.subr.bf16.mxu0 0
      %796 = vmatpush1.bf16.msra.mxu0 0
      %797 = vmatprep.subr.bf16.mxu0 0
      %798 = vmatpush1.bf16.msra.mxu0 0
      %799 = vmatprep.subr.bf16.mxu0 0
      %800 = vmatpush1.bf16.msra.mxu0 0
      %801 = vmatprep.subr.bf16.mxu0 0
      %802 = vmatpush1.bf16.msra.mxu0 %v785
      %803 = vmatprep.subr.bf16.mxu0 0
      %804 = vmatpush2.bf16.msra.mxu0 0
      %805 = vmatprep.subr.bf16.mxu0 0
      %806 = vmatpush2.bf16.msra.mxu0 0
      %807 = vmatprep.subr.bf16.mxu0 0
      %808 = vmatpush2.bf16.msra.mxu0 0
      %809 = vmatprep.subr.bf16.mxu0 0
      %810 = vmatpush2.bf16.msra.mxu0 0
      %811 = vmatprep.subr.bf16.mxu0 0
      %812 = vmatpush2.bf16.msra.mxu0 0
      %813 = vmatprep.subr.bf16.mxu0 0
      %814 = vmatpush2.bf16.msra.mxu0 0
      %815 = vmatprep.subr.bf16.mxu0 0
      %816 = vmatpush2.bf16.msra.mxu0 0
      %817 = vmatprep.subr.bf16.mxu0 0
      %818 = vmatpush2.bf16.msra.mxu0 0
      %819 = vmatprep.mubr.bf16.mxu0 0
      %820 = vmatmul.mubr.bf16.gmra.mxu0 %v782
      %v821 = vpop.f32.mrf.mxu0
      %v822 = vadd.f32 0.0, %v821
      %v823 = vpop.f32.mrf.mxu0
      %v824 = vpop.f32.mrf.mxu0
      %v825 = vpop.f32.mrf.mxu0
      %826 = vdwg.mxu0
      %v827 = vpack.c.bf16 %v822, %v822
      %v829 = vunpack.c.l.b16 %v827
      %v830 = vpack.c.b16 %v829, %v829
      %831 = vrot.lane.b32.xlu0 %v830, 24
      %v832 = vpop.permute.xlu0 %831
      %vm834 = vcmask 257216
      %835 = vst.msk [vmem:[#allocation2] sm:$0xf] %vm834, %v832
      %v836 = vld [vmem:[#allocation2] sm:$0xf]
      %v837 = vld [vmem:[%s3] sm:$0xf]
      %v838 = vld [vmem:[%s3 + $0x4] sm:$0xf]
      %v839 = vld [vmem:[%s3 + $0x8] sm:$0xf]
      %v840 = vld [vmem:[%s3 + $0xc] sm:$0xf]
      %v841 = vld [vmem:[%s4] sm:$0x1]
      %v843 = vlaneseq
      %v844 = vshrl.u32 %v843, 7
      %v845 = vsub.s32 0, %v844
      %v846 = vrot.slane %v841, %v845
      %v852 = vunpack.c.l.b16 %v837
      %v853 = vunpack.c.l.b16 %v838
      %v854 = vunpack.c.l.b16 %v839
      %v855 = vunpack.c.l.b16 %v840
      %v856 = vpack.c.b16 %v853, %v852
      %v857 = vpack.c.b16 %v855, %v854
      %vm860 = vcmask 261120
      %v862 = vsel %vm860, %v836, 0
      %864 = vmatprep.subr.bf16.mxu0 0
      %865 = vmatpush1.bf16.msra.mxu0 0
      %866 = vmatprep.subr.bf16.mxu0 0
      %867 = vmatpush1.bf16.msra.mxu0 0
      %868 = vmatprep.subr.bf16.mxu0 0
      %869 = vmatpush1.bf16.msra.mxu0 0
      %870 = vmatprep.subr.bf16.mxu0 0
      %871 = vmatpush1.bf16.msra.mxu0 0
      %872 = vmatprep.subr.bf16.mxu0 0
      %873 = vmatpush1.bf16.msra.mxu0 0
      %874 = vmatprep.subr.bf16.mxu0 0
      %875 = vmatpush1.bf16.msra.mxu0 0
      %876 = vmatprep.subr.bf16.mxu0 0
      %877 = vmatpush1.bf16.msra.mxu0 %v857
      %878 = vmatprep.subr.bf16.mxu0 0
      %879 = vmatpush1.bf16.msra.mxu0 %v856
      %880 = vmatprep.subr.bf16.mxu0 0
      %881 = vmatpush2.bf16.msra.mxu0 0
      %882 = vmatprep.subr.bf16.mxu0 0
      %883 = vmatpush2.bf16.msra.mxu0 0
      %884 = vmatprep.subr.bf16.mxu0 0
      %885 = vmatpush2.bf16.msra.mxu0 0
      %886 = vmatprep.subr.bf16.mxu0 0
      %887 = vmatpush2.bf16.msra.mxu0 0
      %888 = vmatprep.subr.bf16.mxu0 0
      %889 = vmatpush2.bf16.msra.mxu0 0
      %890 = vmatprep.subr.bf16.mxu0 0
      %891 = vmatpush2.bf16.msra.mxu0 0
      %892 = vmatprep.subr.bf16.mxu0 0
      %893 = vmatpush2.bf16.msra.mxu0 0
      %894 = vmatprep.subr.bf16.mxu0 0
      %895 = vmatpush2.bf16.msra.mxu0 0
      %896 = vmatprep.mubr.bf16.mxu0 0
      %897 = vmatmul.mubr.bf16.gmra.mxu0 %v862
      %v898 = vpop.f32.mrf.mxu0
      %v899 = vadd.f32 %v846, %v898
      %v900 = vpop.f32.mrf.mxu0
      %v901 = vpop.f32.mrf.mxu0
      %v902 = vpop.f32.mrf.mxu0
      %903 = vdwg.mxu0
      %v904 = vld [vmem:[%s327] sm:$0xff]
      %v905 = vadd.f32 %v899, %v904
      %v906 = vld [vmem:[%s6] sm:$0x1]
      %v907 = vld [vmem:[%s7] sm:$0x1]
      %v908 = vsel %vm860, %v905, 0.0
      %909 = vadd.xlane.f32.xlu0 %v908
      %v910 = vpop.xlane.xlu0 %909
      %v911 = vrcp.pop 32.0
      %v912 = vmul.f32 %v910, %v911
      %v913 = vsub.f32 %v905, %v912
      %v914 = vmul.f32 %v913, %v913
      %v915 = vsel %vm860, %v914, 0.0
      %916 = vadd.xlane.f32.xlu0 %v915
      %v917 = vpop.xlane.xlu0 %916
      %v918 = vmul.f32 %v917, %v911
      %v919 = vadd.f32 %v918, 1e-05
      %v920 = vrsqrt.pop %v919
      %v921 = vmul.f32 %v913, %v920
      %v923 = vlaneseq
      %v924 = vshrl.u32 %v923, 7
      %v925 = vsub.s32 0, %v924
      %v926 = vrot.slane %v906, %v925
      %v928 = vmul.f32 %v921, %v926
      %v930 = vlaneseq
      %v931 = vshrl.u32 %v930, 7
      %v932 = vsub.s32 0, %v931
      %v933 = vrot.slane %v907, %v932
      %v935 = vadd.f32 %v928, %v933
      %936 = vst.msk [vmem:[%s331] sm:$0xff] %vm860, %v935
      %p937 = scmp.lt.s32.totalorder %s19, 1
      %s938 = scalar_select %p937, %s19, 1
      %s939 = smul.addr %s938, 8
      %s940 = scalar_lea.vmem %s8, %s939
      // Predicated region
      $region53: #{transformer_decoder_layer.7} parent=51 // pred_check
        %p941 = pneg %p220
      $region54: #{transformer_decoder_layer.7} parent=51 // pred_check_branch
        %943 = sbr.rel (%p941) target = $region56
      $region55: #{transformer_decoder_layer.7} parent=51 // pred_region
        _
      $region56: #{transformer_decoder_layer.7} parent=51 // pred_fallthru
        _
    $region52: #{transformer_decoder_layer.7} parent=5 // pred_fallthru
      _
    %p944 = scmp.le.s32.totalorder 2, %s14
    // Predicated region
    $region57: #{transformer_decoder_layer.7} parent=5 // pred_check
      %p945 = pneg %p944
    $region58: #{transformer_decoder_layer.7} parent=5 // pred_check_branch
      %947 = sbr.rel (%p945) target = $region60
    $region59: #{transformer_decoder_layer.7} parent=5 // pred_region
      %s948 = ssub.s32 %s14, 2
      // Predicated region
      $region61: #{transformer_decoder_layer.7} parent=59 // pred_check
        %p949 = pneg %p226
      $region62: #{transformer_decoder_layer.7} parent=59 // pred_check_branch
        %951 = sbr.rel (%p949) target = $region64
      $region63: #{transformer_decoder_layer.7} parent=59 // pred_region
        %p952 = scmp.lt.s32.totalorder %s20, 1
        %s953 = scalar_select %p952, %s20, 1
        %s954 = smul.addr %s953, 8
        %s955 = scalar_lea.vmem %s8, %s954
      $region64: #{transformer_decoder_layer.7} parent=59 // pred_fallthru
        _
    $region60: #{transformer_decoder_layer.7} parent=5 // pred_fallthru
      _
  $region6: #{transformer_decoder_layer.7} parent=0 // loop_footer
    %s18 = sadd.s32 1, %s14
  $region7: #{transformer_decoder_layer.7} parent=0 // loop_footer_branch
    %13 = sbr.rel target = $region3
  $region8: #{transformer_decoder_layer.7} parent=0 // loop_exit
    _

// kernel: transformer_decoder_layer.10
$region0: #{transformer_decoder_layer.10}
  #allocation0 [shape = 'u32[]', space=smem, size = 0x4, offset = 0x4, fixed_abs, tag = 'smem constant byte address 0x4 - core index']
  #allocation1 [shape = 'u32[144,128]{1,0:T(1,128)}', space=vmem, size = 0x12000, scoped, tag = 'internal scratch']
  #allocation2 [shape = 'f32[16,64]{1,0:T(8,128)}', space=vmem, size = 0x2000, scoped, tag = 'scratch operand']
  %s0 = inlined_call_operand.vmem [shape: f32[16,32], index: 0, kind: input, shape index: {}]
  %s1 = inlined_call_operand.vmem [shape: bf16[32,64], index: 1, kind: input, shape index: {}]
  %s2 = inlined_call_operand.vmem [shape: f32[1,64], index: 2, kind: input, shape index: {}]
  %s3 = inlined_call_operand.vmem [shape: bf16[16,64], index: 3, kind: output, shape index: {}]
  %s4 = sld [smem:[#allocation0]]
  $region30: #{transformer_decoder_layer.10} parent=0
    _
  %s6 = ssub.s32 1, %s4
  %s7 = scalar_select 0, %s6, %s4
  // Predicated region
  $region2: #{transformer_decoder_layer.10} parent=0 // pred_check
    _
  $region3: #{transformer_decoder_layer.10} parent=0 // pred_check_branch
    %9 = sbr.rel (0) target = $region5
  $region4: #{transformer_decoder_layer.10} parent=0 // pred_region
    _
  $region5: #{transformer_decoder_layer.10} parent=0 // pred_fallthru
    _
  // Predicated region
  $region6: #{transformer_decoder_layer.10} parent=0 // pred_check
    _
  $region7: #{transformer_decoder_layer.10} parent=0 // pred_check_branch
    %11 = sbr.rel (0) target = $region9
  $region8: #{transformer_decoder_layer.10} parent=0 // pred_region
    _
  $region9: #{transformer_decoder_layer.10} parent=0 // pred_fallthru
    _
  // Predicated region
  $region10: #{transformer_decoder_layer.10} parent=0 // pred_check
    _
  $region11: #{transformer_decoder_layer.10} parent=0 // pred_check_branch
    %13 = sbr.rel (0) target = $region13
  $region12: #{transformer_decoder_layer.10} parent=0 // pred_region
    _
  $region13: #{transformer_decoder_layer.10} parent=0 // pred_fallthru
    _
  %p15 = scmp.eq.s32.totalorder 0, 0
  // Predicated region
  $region14: #{transformer_decoder_layer.10} parent=0 // pred_check
    %p16 = pneg %p15
  $region15: #{transformer_decoder_layer.10} parent=0 // pred_check_branch
    %18 = sbr.rel (%p16) target = $region17
  $region16: #{transformer_decoder_layer.10} parent=0 // pred_region
    %vm19 = vcmask 523264
    %20 = vst.msk [vmem:[#allocation2] sm:$0xff] %vm19, 0.0
    %21 = vst.msk [vmem:[#allocation2 + $0x8] sm:$0xff] %vm19, 0.0
  $region17: #{transformer_decoder_layer.10} parent=0 // pred_fallthru
    _
  %v22 = vld [vmem:[#allocation2] sm:$0xff]
  %v23 = vld [vmem:[#allocation2 + $0x8] sm:$0xff]
  %v24 = vld [vmem:[%s0] sm:$0xff]
  %v25 = vld [vmem:[%s0 + $0x8] sm:$0xff]
  %v26 = vpack.c.bf16 %v25, %v24
  %v27 = vld [vmem:[%s1] sm:$0xf]
  %v28 = vld [vmem:[%s1 + $0x4] sm:$0xf]
  %v29 = vld [vmem:[%s1 + $0x8] sm:$0xf]
  %v30 = vld [vmem:[%s1 + $0xc] sm:$0xf]
  %v35 = vunpack.c.l.b16 %v27
  %v36 = vunpack.c.l.b16 %v28
  %v37 = vunpack.c.l.b16 %v29
  %v38 = vunpack.c.l.b16 %v30
  %v39 = vpack.c.b16 %v36, %v35
  %v40 = vpack.c.b16 %v38, %v37
  %vm43 = vcmask 261120
  %v45 = vsel %vm43, %v26, 0
  %47 = vmatprep.subr.bf16.mxu0 0
  %48 = vmatpush1.bf16.msra.mxu0 0
  %49 = vmatprep.subr.bf16.mxu0 0
  %50 = vmatpush1.bf16.msra.mxu0 0
  %51 = vmatprep.subr.bf16.mxu0 0
  %52 = vmatpush1.bf16.msra.mxu0 0
  %53 = vmatprep.subr.bf16.mxu0 0
  %54 = vmatpush1.bf16.msra.mxu0 0
  %55 = vmatprep.subr.bf16.mxu0 0
  %56 = vmatpush1.bf16.msra.mxu0 0
  %57 = vmatprep.subr.bf16.mxu0 0
  %58 = vmatpush1.bf16.msra.mxu0 0
  %59 = vmatprep.subr.bf16.mxu0 0
  %60 = vmatpush1.bf16.msra.mxu0 %v40
  %61 = vmatprep.subr.bf16.mxu0 0
  %62 = vmatpush1.bf16.msra.mxu0 %v39
  %63 = vmatprep.subr.bf16.mxu0 0
  %64 = vmatpush2.bf16.msra.mxu0 0
  %65 = vmatprep.subr.bf16.mxu0 0
  %66 = vmatpush2.bf16.msra.mxu0 0
  %67 = vmatprep.subr.bf16.mxu0 0
  %68 = vmatpush2.bf16.msra.mxu0 0
  %69 = vmatprep.subr.bf16.mxu0 0
  %70 = vmatpush2.bf16.msra.mxu0 0
  %71 = vmatprep.subr.bf16.mxu0 0
  %72 = vmatpush2.bf16.msra.mxu0 0
  %73 = vmatprep.subr.bf16.mxu0 0
  %74 = vmatpush2.bf16.msra.mxu0 0
  %75 = vmatprep.subr.bf16.mxu0 0
  %76 = vmatpush2.bf16.msra.mxu0 0
  %77 = vmatprep.subr.bf16.mxu0 0
  %78 = vmatpush2.bf16.msra.mxu0 0
  %79 = vmatprep.mubr.bf16.mxu0 0
  %80 = vmatmul.mubr.bf16.gmra.mxu0 %v45
  %v81 = vpop.f32.mrf.mxu0
  %v82 = vadd.f32 0.0, %v81
  %v83 = vpop.f32.mrf.mxu0
  %v84 = vpop.f32.mrf.mxu0
  %v85 = vadd.f32 0.0, %v84
  %v86 = vpop.f32.mrf.mxu0
  %87 = vdwg.mxu0
  %v88 = vadd.f32 %v22, %v82
  %v89 = vadd.f32 %v23, %v85
  %vm90 = vcmask 523264
  %91 = vst.msk [vmem:[#allocation2] sm:$0xff] %vm90, %v88
  %92 = vst.msk [vmem:[#allocation2 + $0x8] sm:$0xff] %vm90, %v89
  // Predicated region
  $region18: #{transformer_decoder_layer.10} parent=0 // pred_check
    %p93 = pneg %p15
  $region19: #{transformer_decoder_layer.10} parent=0 // pred_check_branch
    %95 = sbr.rel (%p93) target = $region21
  $region20: #{transformer_decoder_layer.10} parent=0 // pred_region
    %v96 = vld [vmem:[#allocation2] sm:$0xff]
    %v97 = vld [vmem:[#allocation2 + $0x8] sm:$0xff]
    %v98 = vld [vmem:[%s2] sm:$0x1]
    %v100 = vlaneseq
    %v101 = vshrl.u32 %v100, 7
    %v102 = vsub.s32 0, %v101
    %v103 = vrot.slane %v98, %v102
    %v105 = vadd.f32 %v96, %v103
    %v106 = vadd.f32 %v97, %v103
    %v107 = vmax.f32 %v105, 0.0
    %v108 = vmax.f32 %v106, 0.0
    %v109 = vpack.c.bf16 %v108, %v107
    %v111 = vunpack.c.l.b16 %v109
    %v112 = vunpack.c.h.b16 %v109
    %v113 = vpack.c.b16 %v111, %v111
    %v114 = vpack.c.b16 %v112, %v112
    %vm117 = vcmask 519168
    %118 = vst.msk [vmem:[%s3] sm:$0xf] %vm117, %v113
    %119 = vst.msk [vmem:[%s3 + $0x4] sm:$0xf] %vm117, %v114
  $region21: #{transformer_decoder_layer.10} parent=0 // pred_fallthru
    _
  // Predicated region
  $region22: #{transformer_decoder_layer.10} parent=0 // pred_check
    _
  $region23: #{transformer_decoder_layer.10} parent=0 // pred_check_branch
    %121 = sbr.rel (0) target = $region25
  $region24: #{transformer_decoder_layer.10} parent=0 // pred_region
    _
  $region25: #{transformer_decoder_layer.10} parent=0 // pred_fallthru
    _
  // Predicated region
  $region26: #{transformer_decoder_layer.10} parent=0 // pred_check
    _
  $region27: #{transformer_decoder_layer.10} parent=0 // pred_check_branch
    %123 = sbr.rel (0) target = $region29
  $region28: #{transformer_decoder_layer.10} parent=0 // pred_region
    _
  $region29: #{transformer_decoder_layer.10} parent=0 // pred_fallthru
    _

// kernel: transformer_decoder_layer.9
$region0: #{transformer_decoder_layer.9}
  #allocation0 [shape = 'u32[]', space=smem, size = 0x4, offset = 0x4, fixed_abs, tag = 'smem constant byte address 0x4 - core index']
  #allocation1 [shape = 'u32[144,128]{1,0:T(1,128)}', space=vmem, size = 0x12000, scoped, tag = 'internal scratch']
  #allocation2 [shape = 'bf16[8,32]{1,0:T(8,128)(2,1)}', space=vmem, size = 0x800, scoped, tag = 'scratch operand']
  #allocation3 [shape = 'bf16[8,32]{1,0:T(8,128)(2,1)}', space=vmem, size = 0x800, scoped, tag = 'scratch operand']
  %s0 = inlined_call_operand.vmem [shape: f32[2,8,32], index: 0, kind: input, shape index: {}]
  %s1 = inlined_call_operand.vmem [shape: bf16[2,8,64], index: 1, kind: input, shape index: {}]
  %s2 = inlined_call_operand.vmem [shape: f32[2,1,8], index: 2, kind: input, shape index: {}]
  %s3 = inlined_call_operand.vmem [shape: bf16[32,32], index: 3, kind: input, shape index: {}]
  %s4 = inlined_call_operand.vmem [shape: f32[1,32], index: 4, kind: input, shape index: {}]
  %s5 = inlined_call_operand.vmem [shape: bf16[32,32], index: 5, kind: input, shape index: {}]
  %s6 = inlined_call_operand.vmem [shape: f32[1,32], index: 6, kind: input, shape index: {}]
  %s7 = inlined_call_operand.vmem [shape: f32[1,32], index: 7, kind: input, shape index: {}]
  %s8 = inlined_call_operand.vmem [shape: f32[1,32], index: 8, kind: input, shape index: {}]
  %s9 = inlined_call_operand.vmem [shape: f32[2,8,32], index: 9, kind: output, shape index: {0}]
  %s10 = inlined_call_operand.hbm [shape: f32[2,4,8,8], index: 10, kind: output, shape index: {1}]
  %11 = xla_tuple %s9, %s10
  %s12 = sld [smem:[#allocation0]]
  $region77: #{transformer_decoder_layer.9} parent=0
    _
  %s14 = ssub.s32 1, %s12
  %s15 = scalar_select 0, %s14, %s12
  $region1: #{transformer_decoder_layer.9} parent=0
    #allocation4 [shape = 'u8[32768]{0}', space=vmem, size = 0x8000, scoped, tag = 'output window, operand 1']
    #allocation5 [shape = 's32[2]{0}', space=sflag, size = 0x8, scoped, tag = 'scoped memory for transformer_decoder_layer.9']
    %16 = vsyncpa [#allocation5], 0
    %s17 = scalar_lea.sflag [#allocation5], 1
    %18 = vsyncpa %s17, 0
    loop: start=0, step=1, limit=4
    $region2: #{transformer_decoder_layer.9} parent=1 // loop_pre_header
      _
    $region3: #{transformer_decoder_layer.9} parent=1 // loop_header
      %s20 = sphi 0, %s24
      %p21 = scmp.ge.s32.totalorder %s20, 4
      %s30 = sphi 0, %s32
      %s33 = sphi 0, %s30
      %s34 = sphi 0, %s33
      %s50 = sphi 0, %s34
      %s56 = sphi 0, %s58
      %s59 = sphi 0, %s56
      %s60 = sphi 0, %s59
      %s76 = sphi 0, %s60
      %s82 = sphi 0, %s84
      %s85 = sphi 0, %s82
      %s86 = sphi 0, %s85
      %s102 = sphi 0, %s86
      %s106 = sphi 0, %s106
      %s108 = sphi 0, %s106
      %s109 = sphi 0, %s108
      %s123 = sphi 0, %s109
      %s127 = sphi 0, %s127
      %s129 = sphi 0, %s127
      %s130 = sphi 0, %s129
      %s144 = sphi 0, %s130
      %s148 = sphi 0, %s148
      %s150 = sphi 0, %s148
      %s151 = sphi 0, %s150
      %s165 = sphi 0, %s151
      %s169 = sphi 0, %s169
      %s171 = sphi 0, %s169
      %s172 = sphi 0, %s171
      %s186 = sphi 0, %s172
      %s190 = sphi 0, %s190
      %s192 = sphi 0, %s190
      %s193 = sphi 0, %s192
      %s207 = sphi 0, %s193
      %s211 = sphi 0, %s211
      %s213 = sphi 0, %s211
      %s214 = sphi 0, %s213
      %s228 = sphi 0, %s214
      %s234 = sphi 0, %s236
      %s237 = sphi 0, %s234
      %s238 = sphi 0, %s237
      %s254 = sphi 0, %s238
      %s260 = sphi 0, %s262
      %s263 = sphi 0, %s260
      %s264 = sphi 0, %s263
      %s280 = sphi 0, %s264
    $region4: #{transformer_decoder_layer.9} parent=1 // loop_header_branch
      %23 = sbr.rel (%p21) target = $region8
    $region5: #{transformer_decoder_layer.9} parent=1 // loop_body
      %s25 = ssub.s32 %s20, 1
      %s26 = ssub.s32 %s20, 2
      %s27 = sadd.s32 %s20, 1
      %s28 = ssub.s32 %s20, %s27
      %p29 = scmp.eq.s32.totalorder %s28, 0
      %s31 = sadd.s32 %s30, 1
      %s32 = scalar_select %p29, %s30, %s31
      %p35 = pneg %p29
      %p36 = scmp.eq.s32.totalorder %s20, 1
      %p37 = por %p35, %p36
      %p38 = scmp.ne.s32.totalorder %s30, %s33
      %p39 = scmp.eq.s32.totalorder %s20, 0
      %p40 = por %p38, %p39
      %p41 = scmp.ne.s32.totalorder %s30, %s33
      %p42 = scmp.eq.s32.totalorder %s25, 1
      %p43 = por %p41, %p42
      %p44 = scmp.ne.s32.totalorder %s33, %s34
      %p45 = scmp.eq.s32.totalorder %s25, 0
      %p46 = por %p44, %p45
      %p47 = scmp.ne.s32.totalorder %s33, %s34
      %p48 = scmp.eq.s32.totalorder %s26, 1
      %p49 = por %p47, %p48
      %p51 = scmp.ne.s32.totalorder %s34, %s50
      %p52 = scmp.eq.s32.totalorder %s26, 0
      %p53 = por %p51, %p52
      %s54 = ssub.s32 %s20, %s27
      %p55 = scmp.eq.s32.totalorder %s54, 0
      %s57 = sadd.s32 %s56, 1
      %s58 = scalar_select %p55, %s56, %s57
      %p61 = pneg %p55
      %p62 = scmp.eq.s32.totalorder %s20, 1
      %p63 = por %p61, %p62
      %p64 = scmp.ne.s32.totalorder %s56, %s59
      %p65 = scmp.eq.s32.totalorder %s20, 0
      %p66 = por %p64, %p65
      %p67 = scmp.ne.s32.totalorder %s56, %s59
      %p68 = scmp.eq.s32.totalorder %s25, 1
      %p69 = por %p67, %p68
      %p70 = scmp.ne.s32.totalorder %s59, %s60
      %p71 = scmp.eq.s32.totalorder %s25, 0
      %p72 = por %p70, %p71
      %p73 = scmp.ne.s32.totalorder %s59, %s60
      %p74 = scmp.eq.s32.totalorder %s26, 1
      %p75 = por %p73, %p74
      %p77 = scmp.ne.s32.totalorder %s60, %s76
      %p78 = scmp.eq.s32.totalorder %s26, 0
      %p79 = por %p77, %p78
      %s80 = ssub.s32 %s20, %s27
      %p81 = scmp.eq.s32.totalorder %s80, 0
      %s83 = sadd.s32 %s82, 1
      %s84 = scalar_select %p81, %s82, %s83
      %p87 = pneg %p81
      %p88 = scmp.eq.s32.totalorder %s20, 1
      %p89 = por %p87, %p88
      %p90 = scmp.ne.s32.totalorder %s82, %s85
      %p91 = scmp.eq.s32.totalorder %s20, 0
      %p92 = por %p90, %p91
      %p93 = scmp.ne.s32.totalorder %s82, %s85
      %p94 = scmp.eq.s32.totalorder %s25, 1
      %p95 = por %p93, %p94
      %p96 = scmp.ne.s32.totalorder %s85, %s86
      %p97 = scmp.eq.s32.totalorder %s25, 0
      %p98 = por %p96, %p97
      %p99 = scmp.ne.s32.totalorder %s85, %s86
      %p100 = scmp.eq.s32.totalorder %s26, 1
      %p101 = por %p99, %p100
      %p103 = scmp.ne.s32.totalorder %s86, %s102
      %p104 = scmp.eq.s32.totalorder %s26, 0
      %p105 = por %p103, %p104
      %s107 = sadd.s32 %s106, 1
      %p110 = scmp.eq.s32.totalorder %s20, 1
      %p111 = scmp.ne.s32.totalorder %s106, %s108
      %p112 = scmp.eq.s32.totalorder %s20, 0
      %p113 = por %p111, %p112
      %p114 = scmp.ne.s32.totalorder %s106, %s108
      %p115 = scmp.eq.s32.totalorder %s25, 1
      %p116 = por %p114, %p115
      %p117 = scmp.ne.s32.totalorder %s108, %s109
      %p118 = scmp.eq.s32.totalorder %s25, 0
      %p119 = por %p117, %p118
      %p120 = scmp.ne.s32.totalorder %s108, %s109
      %p121 = scmp.eq.s32.totalorder %s26, 1
      %p122 = por %p120, %p121
      %p124 = scmp.ne.s32.totalorder %s109, %s123
      %p125 = scmp.eq.s32.totalorder %s26, 0
      %p126 = por %p124, %p125
      %s128 = sadd.s32 %s127, 1
      %p131 = scmp.eq.s32.totalorder %s20, 1
      %p132 = scmp.ne.s32.totalorder %s127, %s129
      %p133 = scmp.eq.s32.totalorder %s20, 0
      %p134 = por %p132, %p133
      %p135 = scmp.ne.s32.totalorder %s127, %s129
      %p136 = scmp.eq.s32.totalorder %s25, 1
      %p137 = por %p135, %p136
      %p138 = scmp.ne.s32.totalorder %s129, %s130
      %p139 = scmp.eq.s32.totalorder %s25, 0
      %p140 = por %p138, %p139
      %p141 = scmp.ne.s32.totalorder %s129, %s130
      %p142 = scmp.eq.s32.totalorder %s26, 1
      %p143 = por %p141, %p142
      %p145 = scmp.ne.s32.totalorder %s130, %s144
      %p146 = scmp.eq.s32.totalorder %s26, 0
      %p147 = por %p145, %p146
      %s149 = sadd.s32 %s148, 1
      %p152 = scmp.eq.s32.totalorder %s20, 1
      %p153 = scmp.ne.s32.totalorder %s148, %s150
      %p154 = scmp.eq.s32.totalorder %s20, 0
      %p155 = por %p153, %p154
      %p156 = scmp.ne.s32.totalorder %s148, %s150
      %p157 = scmp.eq.s32.totalorder %s25, 1
      %p158 = por %p156, %p157
      %p159 = scmp.ne.s32.totalorder %s150, %s151
      %p160 = scmp.eq.s32.totalorder %s25, 0
      %p161 = por %p159, %p160
      %p162 = scmp.ne.s32.totalorder %s150, %s151
      %p163 = scmp.eq.s32.totalorder %s26, 1
      %p164 = por %p162, %p163
      %p166 = scmp.ne.s32.totalorder %s151, %s165
      %p167 = scmp.eq.s32.totalorder %s26, 0
      %p168 = por %p166, %p167
      %s170 = sadd.s32 %s169, 1
      %p173 = scmp.eq.s32.totalorder %s20, 1
      %p174 = scmp.ne.s32.totalorder %s169, %s171
      %p175 = scmp.eq.s32.totalorder %s20, 0
      %p176 = por %p174, %p175
      %p177 = scmp.ne.s32.totalorder %s169, %s171
      %p178 = scmp.eq.s32.totalorder %s25, 1
      %p179 = por %p177, %p178
      %p180 = scmp.ne.s32.totalorder %s171, %s172
      %p181 = scmp.eq.s32.totalorder %s25, 0
      %p182 = por %p180, %p181
      %p183 = scmp.ne.s32.totalorder %s171, %s172
      %p184 = scmp.eq.s32.totalorder %s26, 1
      %p185 = por %p183, %p184
      %p187 = scmp.ne.s32.totalorder %s172, %s186
      %p188 = scmp.eq.s32.totalorder %s26, 0
      %p189 = por %p187, %p188
      %s191 = sadd.s32 %s190, 1
      %p194 = scmp.eq.s32.totalorder %s20, 1
      %p195 = scmp.ne.s32.totalorder %s190, %s192
      %p196 = scmp.eq.s32.totalorder %s20, 0
      %p197 = por %p195, %p196
      %p198 = scmp.ne.s32.totalorder %s190, %s192
      %p199 = scmp.eq.s32.totalorder %s25, 1
      %p200 = por %p198, %p199
      %p201 = scmp.ne.s32.totalorder %s192, %s193
      %p202 = scmp.eq.s32.totalorder %s25, 0
      %p203 = por %p201, %p202
      %p204 = scmp.ne.s32.totalorder %s192, %s193
      %p205 = scmp.eq.s32.totalorder %s26, 1
      %p206 = por %p204, %p205
      %p208 = scmp.ne.s32.totalorder %s193, %s207
      %p209 = scmp.eq.s32.totalorder %s26, 0
      %p210 = por %p208, %p209
      %s212 = sadd.s32 %s211, 1
      %p215 = scmp.eq.s32.totalorder %s20, 1
      %p216 = scmp.ne.s32.totalorder %s211, %s213
      %p217 = scmp.eq.s32.totalorder %s20, 0
      %p218 = por %p216, %p217
      %p219 = scmp.ne.s32.totalorder %s211, %s213
      %p220 = scmp.eq.s32.totalorder %s25, 1
      %p221 = por %p219, %p220
      %p222 = scmp.ne.s32.totalorder %s213, %s214
      %p223 = scmp.eq.s32.totalorder %s25, 0
      %p224 = por %p222, %p223
      %p225 = scmp.ne.s32.totalorder %s213, %s214
      %p226 = scmp.eq.s32.totalorder %s26, 1
      %p227 = por %p225, %p226
      %p229 = scmp.ne.s32.totalorder %s214, %s228
      %p230 = scmp.eq.s32.totalorder %s26, 0
      %p231 = por %p229, %p230
      %s232 = ssub.s32 %s20, %s27
      %p233 = scmp.eq.s32.totalorder %s232, 0
      %s235 = sadd.s32 %s234, 1
      %s236 = scalar_select %p233, %s234, %s235
      %p239 = pneg %p233
      %p240 = scmp.eq.s32.totalorder %s20, 1
      %p241 = por %p239, %p240
      %p242 = scmp.ne.s32.totalorder %s234, %s237
      %p243 = scmp.eq.s32.totalorder %s20, 0
      %p244 = por %p242, %p243
      %p245 = scmp.ne.s32.totalorder %s234, %s237
      %p246 = scmp.eq.s32.totalorder %s25, 1
      %p247 = por %p245, %p246
      %p248 = scmp.ne.s32.totalorder %s237, %s238
      %p249 = scmp.eq.s32.totalorder %s25, 0
      %p250 = por %p248, %p249
      %p251 = scmp.ne.s32.totalorder %s237, %s238
      %p252 = scmp.eq.s32.totalorder %s26, 1
      %p253 = por %p251, %p252
      %p255 = scmp.ne.s32.totalorder %s238, %s254
      %p256 = scmp.eq.s32.totalorder %s26, 0
      %p257 = por %p255, %p256
      %s258 = ssub.s32 %s20, %s27
      %p259 = scmp.eq.s32.totalorder %s258, 0
      %s261 = sadd.s32 %s260, 1
      %s262 = scalar_select %p259, %s260, %s261
      %p265 = pneg %p259
      %p266 = scmp.eq.s32.totalorder %s20, 1
      %p267 = por %p265, %p266
      %p268 = scmp.ne.s32.totalorder %s260, %s263
      %p269 = scmp.eq.s32.totalorder %s20, 0
      %p270 = por %p268, %p269
      %p271 = scmp.ne.s32.totalorder %s260, %s263
      %p272 = scmp.eq.s32.totalorder %s25, 1
      %p273 = por %p271, %p272
      %p274 = scmp.ne.s32.totalorder %s263, %s264
      %p275 = scmp.eq.s32.totalorder %s25, 0
      %p276 = por %p274, %p275
      %p277 = scmp.ne.s32.totalorder %s263, %s264
      %p278 = scmp.eq.s32.totalorder %s26, 1
      %p279 = por %p277, %p278
      %p281 = scmp.ne.s32.totalorder %s264, %s280
      %p282 = scmp.eq.s32.totalorder %s26, 0
      %p283 = por %p281, %p282
      %p284 = scmp.le.s32.totalorder 1, %s20
      %p285 = scmp.lt.s32.totalorder %s20, 3
      %p286 = pnand %p284, %p285
      %p287 = pneg %p286
      // Predicated region
      $region9: #{transformer_decoder_layer.9} parent=5 // pred_check
        _
      $region10: #{transformer_decoder_layer.9} parent=5 // pred_check_branch
        %289 = sbr.rel (%p286) target = $region12
      $region11: #{transformer_decoder_layer.9} parent=5 // pred_region
        %s290 = ssub.s32 %s20, 1
        // Predicated region
        $region13: #{transformer_decoder_layer.9} parent=11 // pred_check
          %p291 = pneg %p119
        $region14: #{transformer_decoder_layer.9} parent=11 // pred_check_branch
          %293 = sbr.rel (%p291) target = $region16
        $region15: #{transformer_decoder_layer.9} parent=11 // pred_region
          _
        $region16: #{transformer_decoder_layer.9} parent=11 // pred_fallthru
          _
        // Predicated region
        $region17: #{transformer_decoder_layer.9} parent=11 // pred_check
          %p294 = pneg %p140
        $region18: #{transformer_decoder_layer.9} parent=11 // pred_check_branch
          %296 = sbr.rel (%p294) target = $region20
        $region19: #{transformer_decoder_layer.9} parent=11 // pred_region
          _
        $region20: #{transformer_decoder_layer.9} parent=11 // pred_fallthru
          _
        // Predicated region
        $region21: #{transformer_decoder_layer.9} parent=11 // pred_check
          %p297 = pneg %p161
        $region22: #{transformer_decoder_layer.9} parent=11 // pred_check_branch
          %299 = sbr.rel (%p297) target = $region24
        $region23: #{transformer_decoder_layer.9} parent=11 // pred_region
          _
        $region24: #{transformer_decoder_layer.9} parent=11 // pred_fallthru
          _
        // Predicated region
        $region25: #{transformer_decoder_layer.9} parent=11 // pred_check
          %p300 = pneg %p182
        $region26: #{transformer_decoder_layer.9} parent=11 // pred_check_branch
          %302 = sbr.rel (%p300) target = $region28
        $region27: #{transformer_decoder_layer.9} parent=11 // pred_region
          _
        $region28: #{transformer_decoder_layer.9} parent=11 // pred_fallthru
          _
        // Predicated region
        $region29: #{transformer_decoder_layer.9} parent=11 // pred_check
          %p303 = pneg %p203
        $region30: #{transformer_decoder_layer.9} parent=11 // pred_check_branch
          %305 = sbr.rel (%p303) target = $region32
        $region31: #{transformer_decoder_layer.9} parent=11 // pred_region
          _
        $region32: #{transformer_decoder_layer.9} parent=11 // pred_fallthru
          _
        // Predicated region
        $region33: #{transformer_decoder_layer.9} parent=11 // pred_check
          %p306 = pneg %p224
        $region34: #{transformer_decoder_layer.9} parent=11 // pred_check_branch
          %308 = sbr.rel (%p306) target = $region36
        $region35: #{transformer_decoder_layer.9} parent=11 // pred_region
          _
        $region36: #{transformer_decoder_layer.9} parent=11 // pred_fallthru
          _
      $region12: #{transformer_decoder_layer.9} parent=5 // pred_fallthru
        _
      %p309 = scmp.lt.s32.totalorder %s20, 2
      // Predicated region
      $region37: #{transformer_decoder_layer.9} parent=5 // pred_check
        %p310 = pneg %p309
      $region38: #{transformer_decoder_layer.9} parent=5 // pred_check_branch
        %312 = sbr.rel (%p310) target = $region40
      $region39: #{transformer_decoder_layer.9} parent=5 // pred_region
        // Predicated region
        $region41: #{transformer_decoder_layer.9} parent=39 // pred_check
          %p313 = pneg %p40
        $region42: #{transformer_decoder_layer.9} parent=39 // pred_check_branch
          %315 = sbr.rel (%p313) target = $region44
        $region43: #{transformer_decoder_layer.9} parent=39 // pred_region
          %p316 = scmp.lt.s32.totalorder %s20, 1
          %s317 = scalar_select %p316, %s20, 1
          %s318 = smul.addr %s317, 8
          %s319 = scalar_lea.vmem %s0, %s318
        $region44: #{transformer_decoder_layer.9} parent=39 // pred_fallthru
          _
        // Predicated region
        $region45: #{transformer_decoder_layer.9} parent=39 // pred_check
          %p320 = pneg %p66
        $region46: #{transformer_decoder_layer.9} parent=39 // pred_check_branch
          %322 = sbr.rel (%p320) target = $region48
        $region47: #{transformer_decoder_layer.9} parent=39 // pred_region
          %p323 = scmp.lt.s32.totalorder %s20, 1
          %s324 = scalar_select %p323, %s20, 1
          %s325 = smul.addr %s324, 4
          %s326 = scalar_lea.vmem %s1, %s325
        $region48: #{transformer_decoder_layer.9} parent=39 // pred_fallthru
          _
        // Predicated region
        $region49: #{transformer_decoder_layer.9} parent=39 // pred_check
          %p327 = pneg %p92
        $region50: #{transformer_decoder_layer.9} parent=39 // pred_check_branch
          %329 = sbr.rel (%p327) target = $region52
        $region51: #{transformer_decoder_layer.9} parent=39 // pred_region
          %p330 = scmp.lt.s32.totalorder %s20, 1
          %s331 = scalar_select %p330, %s20, 1
          %s332 = scalar_lea.vmem %s2, %s331
        $region52: #{transformer_decoder_layer.9} parent=39 // pred_fallthru
          _
      $region40: #{transformer_decoder_layer.9} parent=5 // pred_fallthru
        _
      %p333 = scmp.le.s32.totalorder 1, %s20
      %p334 = scmp.lt.s32.totalorder %s20, 3
      %p335 = pnand %p333, %p334
      %p336 = pneg %p335
      // Predicated region
      $region53: #{transformer_decoder_layer.9} parent=5 // pred_check
        _
      $region54: #{transformer_decoder_layer.9} parent=5 // pred_check_branch
        %338 = sbr.rel (%p335) target = $region56
      $region55: #{transformer_decoder_layer.9} parent=5 // pred_region
        %s339 = ssub.s32 %s20, 1
        %p340 = scmp.lt.s32.totalorder %s25, 1
        %s341 = scalar_select %p340, %s25, 1
        %s342 = smul.addr %s341, 8
        %s343 = scalar_lea.vmem %s0, %s342
        %p344 = pneg %p46
        %p345 = pneg %p43
        %p346 = scmp.lt.s32.totalorder %s25, 1
        %s347 = scalar_select %p346, %s25, 1
        %s348 = smul.addr %s347, 4
        %s349 = scalar_lea.vmem %s1, %s348
        %p350 = pneg %p72
        %p351 = pneg %p69
        %p352 = scmp.lt.s32.totalorder %s25, 1
        %s353 = scalar_select %p352, %s25, 1
        %s354 = scalar_lea.vmem %s2, %s353
        %p355 = pneg %p98
        %p356 = pneg %p95
        %p357 = pneg %p119
        %p358 = pneg %p116
        %p359 = pneg %p140
        %p360 = pneg %p137
        %p361 = pneg %p161
        %p362 = pneg %p158
        %p363 = pneg %p182
        %p364 = pneg %p179
        %p365 = pneg %p203
        %p366 = pneg %p200
        %p367 = pneg %p224
        %p368 = pneg %p221
        %p369 = pneg %p250
        %p370 = pneg %p247
        %p371 = scmp.lt.s32.totalorder %s25, 1
        %s372 = scalar_select %p371, %s25, 1
        %s373 = smul.addr %s372, 8
        %s374 = scalar_lea.vmem %s9, %s373
        %p375 = pneg %p276
        %p376 = pneg %p273
        %s377 = sand.u32 %s263, 1
        %s378 = scalar_lea.sflag [#allocation5], %s377
        %s379 = sand.u32 %s263, 1
        %s380 = smul.addr %s379, 32
        %s381 = scalar_lea.vmem [#allocation4], %s380
        %p382 = scmp.lt.s32.totalorder %s25, 1
        %s383 = scalar_select %p382, %s25, 1
        %s384 = smul.addr %s383, 8
        %s385 = scalar_lea.vmem %s0, %s384
        %p386 = scmp.lt.s32.totalorder %s25, 1
        %s387 = scalar_select %p386, %s25, 1
        %s388 = smul.addr %s387, 4
        %s389 = scalar_lea.vmem %s1, %s388
        %p390 = scmp.lt.s32.totalorder %s25, 1
        %s391 = scalar_select %p390, %s25, 1
        %s392 = scalar_lea.vmem %s2, %s391
        %p393 = scmp.lt.s32.totalorder %s25, 1
        %s394 = scalar_select %p393, %s25, 1
        %s395 = smul.addr %s394, 8
        %s396 = scalar_lea.vmem %s9, %s395
        %v398 = vld [vmem:[%s385] sm:$0xff]
        %v399 = vpack.c.bf16 %v398, %v398
        %v400 = vld [vmem:[%s3] sm:$0xf]
        %v401 = vld [vmem:[%s3 + $0x4] sm:$0xf]
        %v402 = vld [vmem:[%s3 + $0x8] sm:$0xf]
        %v403 = vld [vmem:[%s3 + $0xc] sm:$0xf]
        %v404 = vld [vmem:[%s4] sm:$0x1]
        %v406 = vlaneseq
        %v407 = vshrl.u32 %v406, 7
        %v408 = vsub.s32 0, %v407
        %v409 = vrot.slane %v404, %v408
        %v415 = vunpack.c.l.b16 %v400
        %v416 = vunpack.c.l.b16 %v401
        %v417 = vunpack.c.l.b16 %v402
        %v418 = vunpack.c.l.b16 %v403
        %v419 = vpack.c.b16 %v416, %v415
        %v420 = vpack.c.b16 %v418, %v417
        %vm423 = vcmask 261120
        %v425 = vsel %vm423, %v399, 0
        %427 = vmatprep.subr.bf16.mxu0 0
        %428 = vmatpush1.bf16.msra.mxu0 0
        %429 = vmatprep.subr.bf16.mxu0 0
        %430 = vmatpush1.bf16.msra.mxu0 0
        %431 = vmatprep.subr.bf16.mxu0 0
        %432 = vmatpush1.bf16.msra.mxu0 0
        %433 = vmatprep.subr.bf16.mxu0 0
        %434 = vmatpush1.bf16.msra.mxu0 0
        %435 = vmatprep.subr.bf16.mxu0 0
        %436 = vmatpush1.bf16.msra.mxu0 0
        %437 = vmatprep.subr.bf16.mxu0 0
        %438 = vmatpush1.bf16.msra.mxu0 0
        %439 = vmatprep.subr.bf16.mxu0 0
        %440 = vmatpush1.bf16.msra.mxu0 %v420
        %441 = vmatprep.subr.bf16.mxu0 0
        %442 = vmatpush1.bf16.msra.mxu0 %v419
        %443 = vmatprep.subr.bf16.mxu0 0
        %444 = vmatpush2.bf16.msra.mxu0 0
        %445 = vmatprep.subr.bf16.mxu0 0
        %446 = vmatpush2.bf16.msra.mxu0 0
        %447 = vmatprep.subr.bf16.mxu0 0
        %448 = vmatpush2.bf16.msra.mxu0 0
        %449 = vmatprep.subr.bf16.mxu0 0
        %450 = vmatpush2.bf16.msra.mxu0 0
        %451 = vmatprep.subr.bf16.mxu0 0
        %452 = vmatpush2.bf16.msra.mxu0 0
        %453 = vmatprep.subr.bf16.mxu0 0
        %454 = vmatpush2.bf16.msra.mxu0 0
        %455 = vmatprep.subr.bf16.mxu0 0
        %456 = vmatpush2.bf16.msra.mxu0 0
        %457 = vmatprep.subr.bf16.mxu0 0
        %458 = vmatpush2.bf16.msra.mxu0 0
        %459 = vmatprep.mubr.bf16.mxu0 0
        %460 = vmatmul.mubr.bf16.gmra.mxu0 %v425
        %v461 = vpop.f32.mrf.mxu0
        %v462 = vadd.f32 %v409, %v461
        %v463 = vpop.f32.mrf.mxu0
        %v464 = vpop.f32.mrf.mxu0
        %v465 = vpop.f32.mrf.mxu0
        %466 = vdwg.mxu0
        %v467 = vpack.c.bf16 %v462, %v462
        %vm468 = vcmask 257024
        %469 = vst.msk [vmem:[#allocation2] sm:$0xf] %vm468, %v467
        %v470 = vld [vmem:[%s392] sm:$0x1]
        %v471 = vld [vmem:[#allocation2] sm:$0xf]
        %v472 = vld [vmem:[%s389] sm:$0xf]
        %vm473 = vcmask 64512
        %v475 = vsel %vm473, %v471, 0
        %v478 = vsel %vm473, %v472, 0
        %480 = vmatprep.subr.bf16.mxu0 0
        %481 = vmatpush1.bf16.xpose.msra.mxu0 0
        %482 = vmatprep.subr.bf16.mxu0 0
        %483 = vmatpush1.bf16.xpose.msra.mxu0 0
        %484 = vmatprep.subr.bf16.mxu0 0
        %485 = vmatpush1.bf16.xpose.msra.mxu0 0
        %486 = vmatprep.subr.bf16.mxu0 0
        %487 = vmatpush1.bf16.xpose.msra.mxu0 0
        %488 = vmatprep.subr.bf16.mxu0 0
        %489 = vmatpush1.bf16.xpose.msra.mxu0 0
        %490 = vmatprep.subr.bf16.mxu0 0
        %491 = vmatpush1.bf16.xpose.msra.mxu0 0
        %492 = vmatprep.subr.bf16.mxu0 0
        %493 = vmatpush1.bf16.xpose.msra.mxu0 0
        %494 = vmatprep.subr.bf16.mxu0 0
        %495 = vmatpush1.bf16.xpose.msra.mxu0 %v478
        %496 = vmatprep.subr.bf16.mxu0 0
        %497 = vmatpush2.bf16.xpose.msra.mxu0 0
        %498 = vmatprep.subr.bf16.mxu0 0
        %499 = vmatpush2.bf16.xpose.msra.mxu0 0
        %500 = vmatprep.subr.bf16.mxu0 0
        %501 = vmatpush2.bf16.xpose.msra.mxu0 0
        %502 = vmatprep.subr.bf16.mxu0 0
        %503 = vmatpush2.bf16.xpose.msra.mxu0 0
        %504 = vmatprep.subr.bf16.mxu0 0
        %505 = vmatpush2.bf16.xpose.msra.mxu0 0
        %506 = vmatprep.subr.bf16.mxu0 0
        %507 = vmatpush2.bf16.xpose.msra.mxu0 0
        %508 = vmatprep.subr.bf16.mxu0 0
        %509 = vmatpush2.bf16.xpose.msra.mxu0 0
        %510 = vmatprep.subr.bf16.mxu0 0
        %511 = vmatpush2.bf16.xpose.msra.mxu0 0
        %512 = vmatprep.mubr.bf16.mxu0 0
        %513 = vmatmul.mubr.bf16.gmra.mxu0 %v475
        %v514 = vpop.f32.mrf.mxu0
        %v515 = vadd.f32 0.0, %v514
        %v516 = vpop.f32.mrf.mxu0
        %v517 = vpop.f32.mrf.mxu0
        %v518 = vpop.f32.mrf.mxu0
        %519 = vdwg.mxu0
        %v520 = vmul.f32 %v515, 0.35355338
        %v522 = vlaneseq
        %v523 = vshrl.u32 %v522, 7
        %v524 = vsub.s32 0, %v523
        %v525 = vrot.slane %v470, %v524
        %v527 = vadd.f32 %v520, %v525
        %v528 = vsel %vm473, %v527, -inf
        %529 = vmax.xlane.f32.xlu0 %v528
        %v530 = vpop.xlane.xlu0 %529
        %v531 = vsub.f32 %v527, %v530
        %v532 = vmul.f32 %v531, 1.442695
        %v533 = vpow.pop %v532
        %v534 = vsel %vm473, %v533, 0.0
        %535 = vadd.xlane.f32.xlu0 %v534
        %v536 = vpop.xlane.xlu0 %535
        %v537 = vrcp.pop %v536
        %v538 = vmul.f32 %v533, %v537
        %539 = vst.msk [vmem:[%s381] sm:$0xff] %vm473, %v538
        %v540 = vpack.c.bf16 %v538, %v538
        %v542 = vunpack.c.l.b16 %v472
        %v543 = vpack.c.b16 %v542, %v542
        %544 = vrot.lane.b32.xlu0 %v543, 96
        %v545 = vpop.permute.xlu0 %544
        %v547 = vsel %vm473, %v540, 0
        %vm549 = vcmask 1043456
        %v551 = vsel %vm549, %v545, 0
        %553 = vmatprep.subr.bf16.mxu0 0
        %554 = vmatpush1.bf16.msra.mxu0 0
        %555 = vmatprep.subr.bf16.mxu0 0
        %556 = vmatpush1.bf16.msra.mxu0 0
        %557 = vmatprep.subr.bf16.mxu0 0
        %558 = vmatpush1.bf16.msra.mxu0 0
        %559 = vmatprep.subr.bf16.mxu0 0
        %560 = vmatpush1.bf16.msra.mxu0 0
        %561 = vmatprep.subr.bf16.mxu0 0
        %562 = vmatpush1.bf16.msra.mxu0 0
        %563 = vmatprep.subr.bf16.mxu0 0
        %564 = vmatpush1.bf16.msra.mxu0 0
        %565 = vmatprep.subr.bf16.mxu0 0
        %566 = vmatpush1.bf16.msra.mxu0 0
        %567 = vmatprep.subr.bf16.mxu0 0
        %568 = vmatpush1.bf16.msra.mxu0 %v551
        %569 = vmatprep.subr.bf16.mxu0 0
        %570 = vmatpush2.bf16.msra.mxu0 0
        %571 = vmatprep.subr.bf16.mxu0 0
        %572 = vmatpush2.bf16.msra.mxu0 0
        %573 = vmatprep.subr.bf16.mxu0 0
        %574 = vmatpush2.bf16.msra.mxu0 0
        %575 = vmatprep.subr.bf16.mxu0 0
        %576 = vmatpush2.bf16.msra.mxu0 0
        %577 = vmatprep.subr.bf16.mxu0 0
        %578 = vmatpush2.bf16.msra.mxu0 0
        %579 = vmatprep.subr.bf16.mxu0 0
        %580 = vmatpush2.bf16.msra.mxu0 0
        %581 = vmatprep.subr.bf16.mxu0 0
        %582 = vmatpush2.bf16.msra.mxu0 0
        %583 = vmatprep.subr.bf16.mxu0 0
        %584 = vmatpush2.bf16.msra.mxu0 0
        %585 = vmatprep.mubr.bf16.mxu0 0
        %586 = vmatmul.mubr.bf16.gmra.mxu0 %v547
        %v587 = vpop.f32.mrf.mxu0
        %v588 = vadd.f32 0.0, %v587
        %v589 = vpop.f32.mrf.mxu0
        %v590 = vpop.f32.mrf.mxu0
        %v591 = vpop.f32.mrf.mxu0
        %592 = vdwg.mxu0
        %v593 = vpack.c.bf16 %v588, %v588
        %vm594 = vcmask 60416
        %595 = vst.msk [vmem:[#allocation3] sm:$0xf] %vm594, %v593
        %v596 = vld [vmem:[#allocation2] sm:$0xf]
        %v597 = vld [vmem:[%s389] sm:$0xf]
        %v599 = vunpack.c.l.b16 %v596
        %v600 = vpack.c.b16 %v599, %v599
        %601 = vrot.lane.b32.xlu0 %v600, 120
        %v602 = vpop.permute.xlu0 %601
        %v604 = vunpack.c.l.b16 %v597
        %v605 = vpack.c.b16 %v604, %v604
        %606 = vrot.lane.b32.xlu0 %v605, 120
        %v607 = vpop.permute.xlu0 %606
        %v609 = vsel %vm473, %v602, 0
        %v612 = vsel %vm473, %v607, 0
        %614 = vmatprep.subr.bf16.mxu0 0
        %615 = vmatpush1.bf16.xpose.msra.mxu0 0
        %616 = vmatprep.subr.bf16.mxu0 0
        %617 = vmatpush1.bf16.xpose.msra.mxu0 0
        %618 = vmatprep.subr.bf16.mxu0 0
        %619 = vmatpush1.bf16.xpose.msra.mxu0 0
        %620 = vmatprep.subr.bf16.mxu0 0
        %621 = vmatpush1.bf16.xpose.msra.mxu0 0
        %622 = vmatprep.subr.bf16.mxu0 0
        %623 = vmatpush1.bf16.xpose.msra.mxu0 0
        %624 = vmatprep.subr.bf16.mxu0 0
        %625 = vmatpush1.bf16.xpose.msra.mxu0 0
        %626 = vmatprep.subr.bf16.mxu0 0
        %627 = vmatpush1.bf16.xpose.msra.mxu0 0
        %628 = vmatprep.subr.bf16.mxu0 0
        %629 = vmatpush1.bf16.xpose.msra.mxu0 %v612
        %630 = vmatprep.subr.bf16.mxu0 0
        %631 = vmatpush2.bf16.xpose.msra.mxu0 0
        %632 = vmatprep.subr.bf16.mxu0 0
        %633 = vmatpush2.bf16.xpose.msra.mxu0 0
        %634 = vmatprep.subr.bf16.mxu0 0
        %635 = vmatpush2.bf16.xpose.msra.mxu0 0
        %636 = vmatprep.subr.bf16.mxu0 0
        %637 = vmatpush2.bf16.xpose.msra.mxu0 0
        %638 = vmatprep.subr.bf16.mxu0 0
        %639 = vmatpush2.bf16.xpose.msra.mxu0 0
        %640 = vmatprep.subr.bf16.mxu0 0
        %641 = vmatpush2.bf16.xpose.msra.mxu0 0
        %642 = vmatprep.subr.bf16.mxu0 0
        %643 = vmatpush2.bf16.xpose.msra.mxu0 0
        %644 = vmatprep.subr.bf16.mxu0 0
        %645 = vmatpush2.bf16.xpose.msra.mxu0 0
        %646 = vmatprep.mubr.bf16.mxu0 0
        %647 = vmatmul.mubr.bf16.gmra.mxu0 %v609
        %v648 = vpop.f32.mrf.mxu0
        %v649 = vadd.f32 0.0, %v648
        %v650 = vpop.f32.mrf.mxu0
        %v651 = vpop.f32.mrf.mxu0
        %v652 = vpop.f32.mrf.mxu0
        %653 = vdwg.mxu0
        %v654 = vmul.f32 %v649, 0.35355338
        %v655 = vadd.f32 %v654, %v525
        %v656 = vsel %vm473, %v655, -inf
        %657 = vmax.xlane.f32.xlu0 %v656
        %v658 = vpop.xlane.xlu0 %657
        %v659 = vsub.f32 %v655, %v658
        %v660 = vmul.f32 %v659, 1.442695
        %v661 = vpow.pop %v660
        %v662 = vsel %vm473, %v661, 0.0
        %663 = vadd.xlane.f32.xlu0 %v662
        %v664 = vpop.xlane.xlu0 %663
        %v665 = vrcp.pop %v664
        %v666 = vmul.f32 %v661, %v665
        %s667 = scalar_lea.vmem %s381, 8 [#allocation4]
        %668 = vst.msk [vmem:[%s667] sm:$0xff] %vm473, %v666
        %v669 = vpack.c.bf16 %v666, %v666
        %670 = vrot.lane.b32.xlu0 %v605, 88
        %v671 = vpop.permute.xlu0 %670
        %v673 = vsel %vm473, %v669, 0
        %v676 = vsel %vm549, %v671, 0
        %678 = vmatprep.subr.bf16.mxu0 0
        %679 = vmatpush1.bf16.msra.mxu0 0
        %680 = vmatprep.subr.bf16.mxu0 0
        %681 = vmatpush1.bf16.msra.mxu0 0
        %682 = vmatprep.subr.bf16.mxu0 0
        %683 = vmatpush1.bf16.msra.mxu0 0
        %684 = vmatprep.subr.bf16.mxu0 0
        %685 = vmatpush1.bf16.msra.mxu0 0
        %686 = vmatprep.subr.bf16.mxu0 0
        %687 = vmatpush1.bf16.msra.mxu0 0
        %688 = vmatprep.subr.bf16.mxu0 0
        %689 = vmatpush1.bf16.msra.mxu0 0
        %690 = vmatprep.subr.bf16.mxu0 0
        %691 = vmatpush1.bf16.msra.mxu0 0
        %692 = vmatprep.subr.bf16.mxu0 0
        %693 = vmatpush1.bf16.msra.mxu0 %v676
        %694 = vmatprep.subr.bf16.mxu0 0
        %695 = vmatpush2.bf16.msra.mxu0 0
        %696 = vmatprep.subr.bf16.mxu0 0
        %697 = vmatpush2.bf16.msra.mxu0 0
        %698 = vmatprep.subr.bf16.mxu0 0
        %699 = vmatpush2.bf16.msra.mxu0 0
        %700 = vmatprep.subr.bf16.mxu0 0
        %701 = vmatpush2.bf16.msra.mxu0 0
        %702 = vmatprep.subr.bf16.mxu0 0
        %703 = vmatpush2.bf16.msra.mxu0 0
        %704 = vmatprep.subr.bf16.mxu0 0
        %705 = vmatpush2.bf16.msra.mxu0 0
        %706 = vmatprep.subr.bf16.mxu0 0
        %707 = vmatpush2.bf16.msra.mxu0 0
        %708 = vmatprep.subr.bf16.mxu0 0
        %709 = vmatpush2.bf16.msra.mxu0 0
        %710 = vmatprep.mubr.bf16.mxu0 0
        %711 = vmatmul.mubr.bf16.gmra.mxu0 %v673
        %v712 = vpop.f32.mrf.mxu0
        %v713 = vadd.f32 0.0, %v712
        %v714 = vpop.f32.mrf.mxu0
        %v715 = vpop.f32.mrf.mxu0
        %v716 = vpop.f32.mrf.mxu0
        %717 = vdwg.mxu0
        %v718 = vpack.c.bf16 %v713, %v713
        %v720 = vunpack.c.l.b16 %v718
        %v721 = vpack.c.b16 %v720, %v720
        %722 = vrot.lane.b32.xlu0 %v721, 8
        %v723 = vpop.permute.xlu0 %722
        %vm725 = vcmask 126016
        %726 = vst.msk [vmem:[#allocation3] sm:$0xf] %vm725, %v723
        %v727 = vld [vmem:[#allocation2] sm:$0xf]
        %v728 = vld [vmem:[%s389] sm:$0xf]
        %v730 = vunpack.c.l.b16 %v727
        %v731 = vpack.c.b16 %v730, %v730
        %732 = vrot.lane.b32.xlu0 %v731, 112
        %v733 = vpop.permute.xlu0 %732
        %v735 = vunpack.c.l.b16 %v728
        %v736 = vpack.c.b16 %v735, %v735
        %737 = vrot.lane.b32.xlu0 %v736, 112
        %v738 = vpop.permute.xlu0 %737
        %v740 = vsel %vm473, %v733, 0
        %v743 = vsel %vm473, %v738, 0
        %745 = vmatprep.subr.bf16.mxu0 0
        %746 = vmatpush1.bf16.xpose.msra.mxu0 0
        %747 = vmatprep.subr.bf16.mxu0 0
        %748 = vmatpush1.bf16.xpose.msra.mxu0 0
        %749 = vmatprep.subr.bf16.mxu0 0
        %750 = vmatpush1.bf16.xpose.msra.mxu0 0
        %751 = vmatprep.subr.bf16.mxu0 0
        %752 = vmatpush1.bf16.xpose.msra.mxu0 0
        %753 = vmatprep.subr.bf16.mxu0 0
        %754 = vmatpush1.bf16.xpose.msra.mxu0 0
        %755 = vmatprep.subr.bf16.mxu0 0
        %756 = vmatpush1.bf16.xpose.msra.mxu0 0
        %757 = vmatprep.subr.bf16.mxu0 0
        %758 = vmatpush1.bf16.xpose.msra.mxu0 0
        %759 = vmatprep.subr.bf16.mxu0 0
        %760 = vmatpush1.bf16.xpose.msra.mxu0 %v743
        %761 = vmatprep.subr.bf16.mxu0 0
        %762 = vmatpush2.bf16.xpose.msra.mxu0 0
        %763 = vmatprep.subr.bf16.mxu0 0
        %764 = vmatpush2.bf16.xpose.msra.mxu0 0
        %765 = vmatprep.subr.bf16.mxu0 0
        %766 = vmatpush2.bf16.xpose.msra.mxu0 0
        %767 = vmatprep.subr.bf16.mxu0 0
        %768 = vmatpush2.bf16.xpose.msra.mxu0 0
        %769 = vmatprep.subr.bf16.mxu0 0
        %770 = vmatpush2.bf16.xpose.msra.mxu0 0
        %771 = vmatprep.subr.bf16.mxu0 0
        %772 = vmatpush2.bf16.xpose.msra.mxu0 0
        %773 = vmatprep.subr.bf16.mxu0 0
        %774 = vmatpush2.bf16.xpose.msra.mxu0 0
        %775 = vmatprep.subr.bf16.mxu0 0
        %776 = vmatpush2.bf16.xpose.msra.mxu0 0
        %777 = vmatprep.mubr.bf16.mxu0 0
        %778 = vmatmul.mubr.bf16.gmra.mxu0 %v740
        %v779 = vpop.f32.mrf.mxu0
        %v780 = vadd.f32 0.0, %v779
        %v781 = vpop.f32.mrf.mxu0
        %v782 = vpop.f32.mrf.mxu0
        %v783 = vpop.f32.mrf.mxu0
        %784 = vdwg.mxu0
        %v785 = vmul.f32 %v780, 0.35355338
        %v786 = vadd.f32 %v785, %v525
        %v787 = vsel %vm473, %v786, -inf
        %788 = vmax.xlane.f32.xlu0 %v787
        %v789 = vpop.xlane.xlu0 %788
        %v790 = vsub.f32 %v786, %v789
        %v791 = vmul.f32 %v790, 1.442695
        %v792 = vpow.pop %v791
        %v793 = vsel %vm473, %v792, 0.0
        %794 = vadd.xlane.f32.xlu0 %v793
        %v795 = vpop.xlane.xlu0 %794
        %v796 = vrcp.pop %v795
        %v797 = vmul.f32 %v792, %v796
        %s798 = scalar_lea.vmem %s381, 16 [#allocation4]
        %799 = vst.msk [vmem:[%s798] sm:$0xff] %vm473, %v797
        %v800 = vpack.c.bf16 %v797, %v797
        %801 = vrot.lane.b32.xlu0 %v736, 80
        %v802 = vpop.permute.xlu0 %801
        %v804 = vsel %vm473, %v800, 0
        %v807 = vsel %vm549, %v802, 0
        %809 = vmatprep.subr.bf16.mxu0 0
        %810 = vmatpush1.bf16.msra.mxu0 0
        %811 = vmatprep.subr.bf16.mxu0 0
        %812 = vmatpush1.bf16.msra.mxu0 0
        %813 = vmatprep.subr.bf16.mxu0 0
        %814 = vmatpush1.bf16.msra.mxu0 0
        %815 = vmatprep.subr.bf16.mxu0 0
        %816 = vmatpush1.bf16.msra.mxu0 0
        %817 = vmatprep.subr.bf16.mxu0 0
        %818 = vmatpush1.bf16.msra.mxu0 0
        %819 = vmatprep.subr.bf16.mxu0 0
        %820 = vmatpush1.bf16.msra.mxu0 0
        %821 = vmatprep.subr.bf16.mxu0 0
        %822 = vmatpush1.bf16.msra.mxu0 0
        %823 = vmatprep.subr.bf16.mxu0 0
        %824 = vmatpush1.bf16.msra.mxu0 %v807
        %825 = vmatprep.subr.bf16.mxu0 0
        %826 = vmatpush2.bf16.msra.mxu0 0
        %827 = vmatprep.subr.bf16.mxu0 0
        %828 = vmatpush2.bf16.msra.mxu0 0
        %829 = vmatprep.subr.bf16.mxu0 0
        %830 = vmatpush2.bf16.msra.mxu0 0
        %831 = vmatprep.subr.bf16.mxu0 0
        %832 = vmatpush2.bf16.msra.mxu0 0
        %833 = vmatprep.subr.bf16.mxu0 0
        %834 = vmatpush2.bf16.msra.mxu0 0
        %835 = vmatprep.subr.bf16.mxu0 0
        %836 = vmatpush2.bf16.msra.mxu0 0
        %837 = vmatprep.subr.bf16.mxu0 0
        %838 = vmatpush2.bf16.msra.mxu0 0
        %839 = vmatprep.subr.bf16.mxu0 0
        %840 = vmatpush2.bf16.msra.mxu0 0
        %841 = vmatprep.mubr.bf16.mxu0 0
        %842 = vmatmul.mubr.bf16.gmra.mxu0 %v804
        %v843 = vpop.f32.mrf.mxu0
        %v844 = vadd.f32 0.0, %v843
        %v845 = vpop.f32.mrf.mxu0
        %v846 = vpop.f32.mrf.mxu0
        %v847 = vpop.f32.mrf.mxu0
        %848 = vdwg.mxu0
        %v849 = vpack.c.bf16 %v844, %v844
        %v851 = vunpack.c.l.b16 %v849
        %v852 = vpack.c.b16 %v851, %v851
        %853 = vrot.lane.b32.xlu0 %v852, 16
        %v854 = vpop.permute.xlu0 %853
        %vm856 = vcmask 191616
        %857 = vst.msk [vmem:[#allocation3] sm:$0xf] %vm856, %v854
        %v858 = vld [vmem:[#allocation2] sm:$0xf]
        %v859 = vld [vmem:[%s389] sm:$0xf]
        %v861 = vunpack.c.l.b16 %v858
        %v862 = vpack.c.b16 %v861, %v861
        %863 = vrot.lane.b32.xlu0 %v862, 104
        %v864 = vpop.permute.xlu0 %863
        %v866 = vunpack.c.l.b16 %v859
        %v867 = vpack.c.b16 %v866, %v866
        %868 = vrot.lane.b32.xlu0 %v867, 104
        %v869 = vpop.permute.xlu0 %868
        %v871 = vsel %vm473, %v864, 0
        %v874 = vsel %vm473, %v869, 0
        %876 = vmatprep.subr.bf16.mxu0 0
        %877 = vmatpush1.bf16.xpose.msra.mxu0 0
        %878 = vmatprep.subr.bf16.mxu0 0
        %879 = vmatpush1.bf16.xpose.msra.mxu0 0
        %880 = vmatprep.subr.bf16.mxu0 0
        %881 = vmatpush1.bf16.xpose.msra.mxu0 0
        %882 = vmatprep.subr.bf16.mxu0 0
        %883 = vmatpush1.bf16.xpose.msra.mxu0 0
        %884 = vmatprep.subr.bf16.mxu0 0
        %885 = vmatpush1.bf16.xpose.msra.mxu0 0
        %886 = vmatprep.subr.bf16.mxu0 0
        %887 = vmatpush1.bf16.xpose.msra.mxu0 0
        %888 = vmatprep.subr.bf16.mxu0 0
        %889 = vmatpush1.bf16.xpose.msra.mxu0 0
        %890 = vmatprep.subr.bf16.mxu0 0
        %891 = vmatpush1.bf16.xpose.msra.mxu0 %v874
        %892 = vmatprep.subr.bf16.mxu0 0
        %893 = vmatpush2.bf16.xpose.msra.mxu0 0
        %894 = vmatprep.subr.bf16.mxu0 0
        %895 = vmatpush2.bf16.xpose.msra.mxu0 0
        %896 = vmatprep.subr.bf16.mxu0 0
        %897 = vmatpush2.bf16.xpose.msra.mxu0 0
        %898 = vmatprep.subr.bf16.mxu0 0
        %899 = vmatpush2.bf16.xpose.msra.mxu0 0
        %900 = vmatprep.subr.bf16.mxu0 0
        %901 = vmatpush2.bf16.xpose.msra.mxu0 0
        %902 = vmatprep.subr.bf16.mxu0 0
        %903 = vmatpush2.bf16.xpose.msra.mxu0 0
        %904 = vmatprep.subr.bf16.mxu0 0
        %905 = vmatpush2.bf16.xpose.msra.mxu0 0
        %906 = vmatprep.subr.bf16.mxu0 0
        %907 = vmatpush2.bf16.xpose.msra.mxu0 0
        %908 = vmatprep.mubr.bf16.mxu0 0
        %909 = vmatmul.mubr.bf16.gmra.mxu0 %v871
        %v910 = vpop.f32.mrf.mxu0
        %v911 = vadd.f32 0.0, %v910
        %v912 = vpop.f32.mrf.mxu0
        %v913 = vpop.f32.mrf.mxu0
        %v914 = vpop.f32.mrf.mxu0
        %915 = vdwg.mxu0
        %v916 = vmul.f32 %v911, 0.35355338
        %v917 = vadd.f32 %v916, %v525
        %v918 = vsel %vm473, %v917, -inf
        %919 = vmax.xlane.f32.xlu0 %v918
        %v920 = vpop.xlane.xlu0 %919
        %v921 = vsub.f32 %v917, %v920
        %v922 = vmul.f32 %v921, 1.442695
        %v923 = vpow.pop %v922
        %v924 = vsel %vm473, %v923, 0.0
        %925 = vadd.xlane.f32.xlu0 %v924
        %v926 = vpop.xlane.xlu0 %925
        %v927 = vrcp.pop %v926
        %v928 = vmul.f32 %v923, %v927
        %s929 = scalar_lea.vmem %s381, 24 [#allocation4]
        %930 = vst.msk [vmem:[%s929] sm:$0xff] %vm473, %v928
        %v931 = vpack.c.bf16 %v928, %v928
        %932 = vrot.lane.b32.xlu0 %v867, 72
        %v933 = vpop.permute.xlu0 %932
        %v935 = vsel %vm473, %v931, 0
        %v938 = vsel %vm549, %v933, 0
        %940 = vmatprep.subr.bf16.mxu0 0
        %941 = vmatpush1.bf16.msra.mxu0 0
        %942 = vmatprep.subr.bf16.mxu0 0
        %943 = vmatpush1.bf16.msra.mxu0 0
        %944 = vmatprep.subr.bf16.mxu0 0
        %945 = vmatpush1.bf16.msra.mxu0 0
        %946 = vmatprep.subr.bf16.mxu0 0
        %947 = vmatpush1.bf16.msra.mxu0 0
        %948 = vmatprep.subr.bf16.mxu0 0
        %949 = vmatpush1.bf16.msra.mxu0 0
        %950 = vmatprep.subr.bf16.mxu0 0
        %951 = vmatpush1.bf16.msra.mxu0 0
        %952 = vmatprep.subr.bf16.mxu0 0
        %953 = vmatpush1.bf16.msra.mxu0 0
        %954 = vmatprep.subr.bf16.mxu0 0
        %955 = vmatpush1.bf16.msra.mxu0 %v938
        %956 = vmatprep.subr.bf16.mxu0 0
        %957 = vmatpush2.bf16.msra.mxu0 0
        %958 = vmatprep.subr.bf16.mxu0 0
        %959 = vmatpush2.bf16.msra.mxu0 0
        %960 = vmatprep.subr.bf16.mxu0 0
        %961 = vmatpush2.bf16.msra.mxu0 0
        %962 = vmatprep.subr.bf16.mxu0 0
        %963 = vmatpush2.bf16.msra.mxu0 0
        %964 = vmatprep.subr.bf16.mxu0 0
        %965 = vmatpush2.bf16.msra.mxu0 0
        %966 = vmatprep.subr.bf16.mxu0 0
        %967 = vmatpush2.bf16.msra.mxu0 0
        %968 = vmatprep.subr.bf16.mxu0 0
        %969 = vmatpush2.bf16.msra.mxu0 0
        %970 = vmatprep.subr.bf16.mxu0 0
        %971 = vmatpush2.bf16.msra.mxu0 0
        %972 = vmatprep.mubr.bf16.mxu0 0
        %973 = vmatmul.mubr.bf16.gmra.mxu0 %v935
        %v974 = vpop.f32.mrf.mxu0
        %v975 = vadd.f32 0.0, %v974
        %v976 = vpop.f32.mrf.mxu0
        %v977 = vpop.f32.mrf.mxu0
        %v978 = vpop.f32.mrf.mxu0
        %979 = vdwg.mxu0
        %v980 = vpack.c.bf16 %v975, %v975
        %v982 = vunpack.c.l.b16 %v980
        %v983 = vpack.c.b16 %v982, %v982
        %984 = vrot.lane.b32.xlu0 %v983, 24
        %v985 = vpop.permute.xlu0 %984
        %vm987 = vcmask 257216
        %988 = vst.msk [vmem:[#allocation3] sm:$0xf] %vm987, %v985
        %v989 = vld [vmem:[#allocation3] sm:$0xf]
        %v990 = vld [vmem:[%s5] sm:$0xf]
        %v991 = vld [vmem:[%s5 + $0x4] sm:$0xf]
        %v992 = vld [vmem:[%s5 + $0x8] sm:$0xf]
        %v993 = vld [vmem:[%s5 + $0xc] sm:$0xf]
        %v994 = vld [vmem:[%s6] sm:$0x1]
        %v996 = vlaneseq
        %v997 = vshrl.u32 %v996, 7
        %v998 = vsub.s32 0, %v997
        %v999 = vrot.slane %v994, %v998
        %v1005 = vunpack.c.l.b16 %v990
        %v1006 = vunpack.c.l.b16 %v991
        %v1007 = vunpack.c.l.b16 %v992
        %v1008 = vunpack.c.l.b16 %v993
        %v1009 = vpack.c.b16 %v1006, %v1005
        %v1010 = vpack.c.b16 %v1008, %v1007
        %v1014 = vsel %vm423, %v989, 0
        %1016 = vmatprep.subr.bf16.mxu0 0
        %1017 = vmatpush1.bf16.msra.mxu0 0
        %1018 = vmatprep.subr.bf16.mxu0 0
        %1019 = vmatpush1.bf16.msra.mxu0 0
        %1020 = vmatprep.subr.bf16.mxu0 0
        %1021 = vmatpush1.bf16.msra.mxu0 0
        %1022 = vmatprep.subr.bf16.mxu0 0
        %1023 = vmatpush1.bf16.msra.mxu0 0
        %1024 = vmatprep.subr.bf16.mxu0 0
        %1025 = vmatpush1.bf16.msra.mxu0 0
        %1026 = vmatprep.subr.bf16.mxu0 0
        %1027 = vmatpush1.bf16.msra.mxu0 0
        %1028 = vmatprep.subr.bf16.mxu0 0
        %1029 = vmatpush1.bf16.msra.mxu0 %v1010
        %1030 = vmatprep.subr.bf16.mxu0 0
        %1031 = vmatpush1.bf16.msra.mxu0 %v1009
        %1032 = vmatprep.subr.bf16.mxu0 0
        %1033 = vmatpush2.bf16.msra.mxu0 0
        %1034 = vmatprep.subr.bf16.mxu0 0
        %1035 = vmatpush2.bf16.msra.mxu0 0
        %1036 = vmatprep.subr.bf16.mxu0 0
        %1037 = vmatpush2.bf16.msra.mxu0 0
        %1038 = vmatprep.subr.bf16.mxu0 0
        %1039 = vmatpush2.bf16.msra.mxu0 0
        %1040 = vmatprep.subr.bf16.mxu0 0
        %1041 = vmatpush2.bf16.msra.mxu0 0
        %1042 = vmatprep.subr.bf16.mxu0 0
        %1043 = vmatpush2.bf16.msra.mxu0 0
        %1044 = vmatprep.subr.bf16.mxu0 0
        %1045 = vmatpush2.bf16.msra.mxu0 0
        %1046 = vmatprep.subr.bf16.mxu0 0
        %1047 = vmatpush2.bf16.msra.mxu0 0
        %1048 = vmatprep.mubr.bf16.mxu0 0
        %1049 = vmatmul.mubr.bf16.gmra.mxu0 %v1014
        %v1050 = vpop.f32.mrf.mxu0
        %v1051 = vadd.f32 %v999, %v1050
        %v1052 = vpop.f32.mrf.mxu0
        %v1053 = vpop.f32.mrf.mxu0
        %v1054 = vpop.f32.mrf.mxu0
        %1055 = vdwg.mxu0
        %v1056 = vld [vmem:[%s385] sm:$0xff]
        %v1057 = vadd.f32 %v1051, %v1056
        %v1058 = vld [vmem:[%s7] sm:$0x1]
        %v1059 = vld [vmem:[%s8] sm:$0x1]
        %v1060 = vsel %vm423, %v1057, 0.0
        %1061 = vadd.xlane.f32.xlu0 %v1060
        %v1062 = vpop.xlane.xlu0 %1061
        %v1063 = vrcp.pop 32.0
        %v1064 = vmul.f32 %v1062, %v1063
        %v1065 = vsub.f32 %v1057, %v1064
        %v1066 = vmul.f32 %v1065, %v1065
        %v1067 = vsel %vm423, %v1066, 0.0
        %1068 = vadd.xlane.f32.xlu0 %v1067
        %v1069 = vpop.xlane.xlu0 %1068
        %v1070 = vmul.f32 %v1069, %v1063
        %v1071 = vadd.f32 %v1070, 1e-05
        %v1072 = vrsqrt.pop %v1071
        %v1073 = vmul.f32 %v1065, %v1072
        %v1075 = vlaneseq
        %v1076 = vshrl.u32 %v1075, 7
        %v1077 = vsub.s32 0, %v1076
        %v1078 = vrot.slane %v1058, %v1077
        %v1080 = vmul.f32 %v1073, %v1078
        %v1082 = vlaneseq
        %v1083 = vshrl.u32 %v1082, 7
        %v1084 = vsub.s32 0, %v1083
        %v1085 = vrot.slane %v1059, %v1084
        %v1087 = vadd.f32 %v1080, %v1085
        %1088 = vst.msk [vmem:[%s396] sm:$0xff] %vm423, %v1087
        %p1089 = scmp.lt.s32.totalorder %s25, 1
        %s1090 = scalar_select %p1089, %s25, 1
        %s1091 = smul.addr %s1090, 8
        %s1092 = scalar_lea.vmem %s9, %s1091
        %s1093 = sand.u32 %s263, 1
        %s1094 = scalar_lea.sflag [#allocation5], %s1093
        %s1095 = sand.u32 %s263, 1
        %s1096 = smul.addr %s1095, 32
        %s1097 = scalar_lea.vmem [#allocation4], %s1096
        // Predicated region
        $region57: #{transformer_decoder_layer.9} parent=55 // pred_check
          %p1098 = pneg %p247
        $region58: #{transformer_decoder_layer.9} parent=55 // pred_check_branch
          %1100 = sbr.rel (%p1098) target = $region60
        $region59: #{transformer_decoder_layer.9} parent=55 // pred_region
          _
        $region60: #{transformer_decoder_layer.9} parent=55 // pred_fallthru
          _
        // Predicated region
        $region61: #{transformer_decoder_layer.9} parent=55 // pred_check
          %p1101 = pneg %p273
        $region62: #{transformer_decoder_layer.9} parent=55 // pred_check_branch
          %1103 = sbr.rel (%p1101) target = $region64
        $region63: #{transformer_decoder_layer.9} parent=55 // pred_region
          %s1105 = ssub.s32 512, 512
          %1106 = vsyncadd %s1094, %s1105
          %s1107 = smul.addr %s25, 4
          %s1108 = smul.addr %s1107, 128
          %s1109 = scalar_lea.hbm %s10, %s1108
          %s1110 = sshll.u32 %s1097, 4
          %s1111 = int_to_ptr.vmem [resolvable:$true] %s1110
          %1116 = dma.vmem_to_hbm [thread:$0]  %s1111, 512, %s1109, %s1094, 128, 128, 8
        $region64: #{transformer_decoder_layer.9} parent=55 // pred_fallthru
          _
      $region56: #{transformer_decoder_layer.9} parent=5 // pred_fallthru
        _
      %p1117 = scmp.le.s32.totalorder 2, %s20
      // Predicated region
      $region65: #{transformer_decoder_layer.9} parent=5 // pred_check
        %p1118 = pneg %p1117
      $region66: #{transformer_decoder_layer.9} parent=5 // pred_check_branch
        %1120 = sbr.rel (%p1118) target = $region68
      $region67: #{transformer_decoder_layer.9} parent=5 // pred_region
        %s1121 = ssub.s32 %s20, 2
        // Predicated region
        $region69: #{transformer_decoder_layer.9} parent=67 // pred_check
          %p1122 = pneg %p253
        $region70: #{transformer_decoder_layer.9} parent=67 // pred_check_branch
          %1124 = sbr.rel (%p1122) target = $region72
        $region71: #{transformer_decoder_layer.9} parent=67 // pred_region
          %p1125 = scmp.lt.s32.totalorder %s26, 1
          %s1126 = scalar_select %p1125, %s26, 1
          %s1127 = smul.addr %s1126, 8
          %s1128 = scalar_lea.vmem %s9, %s1127
        $region72: #{transformer_decoder_layer.9} parent=67 // pred_fallthru
          _
        // Predicated region
        $region73: #{transformer_decoder_layer.9} parent=67 // pred_check
          %p1129 = pneg %p279
        $region74: #{transformer_decoder_layer.9} parent=67 // pred_check_branch
          %1131 = sbr.rel (%p1129) target = $region76
        $region75: #{transformer_decoder_layer.9} parent=67 // pred_region
          %s1132 = sand.u32 %s264, 1
          %s1133 = scalar_lea.sflag [#allocation5], %s1132
          %s1134 = sand.u32 %s264, 1
          %s1135 = smul.addr %s1134, 32
          %s1136 = scalar_lea.vmem [#allocation4], %s1135
          %1137 = dma.done %s1133, 512
        $region76: #{transformer_decoder_layer.9} parent=67 // pred_fallthru
          _
      $region68: #{transformer_decoder_layer.9} parent=5 // pred_fallthru
        _
    $region6: #{transformer_decoder_layer.9} parent=1 // loop_footer
      %s24 = sadd.s32 1, %s20
    $region7: #{transformer_decoder_layer.9} parent=1 // loop_footer_branch
      %19 = sbr.rel target = $region3
    $region8: #{transformer_decoder_layer.9} parent=1 // loop_exit
      _
    %1138 = vsyncpa [#allocation5], 1
    %s1139 = scalar_lea.sflag [#allocation5], 1
    %1140 = vsyncpa %s1139, 1

// kernel: transformer_decoder_layer.11
$region0: #{transformer_decoder_layer.11}
  #allocation0 [shape = 'u32[]', space=smem, size = 0x4, offset = 0x4, fixed_abs, tag = 'smem constant byte address 0x4 - core index']
  #allocation1 [shape = 'u32[144,128]{1,0:T(1,128)}', space=vmem, size = 0x12000, scoped, tag = 'internal scratch']
  #allocation2 [shape = 'f32[16,32]{1,0:T(8,128)}', space=vmem, size = 0x2000, scoped, tag = 'scratch operand']
  %s0 = inlined_call_operand.vmem [shape: bf16[16,64], index: 0, kind: input, shape index: {}]
  %s1 = inlined_call_operand.vmem [shape: bf16[64,32], index: 1, kind: input, shape index: {}]
  %s2 = inlined_call_operand.vmem [shape: f32[1,32], index: 2, kind: input, shape index: {}]
  %s3 = inlined_call_operand.vmem [shape: f32[16,32], index: 3, kind: input, shape index: {}]
  %s4 = inlined_call_operand.vmem [shape: f32[1,32], index: 4, kind: input, shape index: {}]
  %s5 = inlined_call_operand.vmem [shape: f32[1,32], index: 5, kind: input, shape index: {}]
  %s6 = inlined_call_operand.hbm [shape: f32[16,32], index: 6, kind: output, shape index: {}]
  %s7 = sld [smem:[#allocation0]]
  $region42: #{transformer_decoder_layer.11} parent=0
    _
  %s9 = ssub.s32 1, %s7
  %s10 = scalar_select 0, %s9, %s7
  $region1: #{transformer_decoder_layer.11} parent=0
    #allocation3 [shape = 'u8[8192]{0}', space=vmem, size = 0x2000, scoped, tag = 'output window, operand 0, single buffered']
    #allocation4 [shape = 's32[1]{0}', space=sflag, size = 0x4, scoped, tag = 'scoped memory for transformer_decoder_layer.11']
    %11 = vsyncpa [#allocation4], 0
    // Predicated region
    $region2: #{transformer_decoder_layer.11} parent=1 // pred_check
      _
    $region3: #{transformer_decoder_layer.11} parent=1 // pred_check_branch
      %13 = sbr.rel (0) target = $region5
    $region4: #{transformer_decoder_layer.11} parent=1 // pred_region
      _
    $region5: #{transformer_decoder_layer.11} parent=1 // pred_fallthru
      _
    // Predicated region
    $region6: #{transformer_decoder_layer.11} parent=1 // pred_check
      _
    $region7: #{transformer_decoder_layer.11} parent=1 // pred_check_branch
      %15 = sbr.rel (0) target = $region9
    $region8: #{transformer_decoder_layer.11} parent=1 // pred_region
      _
    $region9: #{transformer_decoder_layer.11} parent=1 // pred_fallthru
      _
    // Predicated region
    $region10: #{transformer_decoder_layer.11} parent=1 // pred_check
      _
    $region11: #{transformer_decoder_layer.11} parent=1 // pred_check_branch
      %17 = sbr.rel (0) target = $region13
    $region12: #{transformer_decoder_layer.11} parent=1 // pred_region
      _
    $region13: #{transformer_decoder_layer.11} parent=1 // pred_fallthru
      _
    // Predicated region
    $region14: #{transformer_decoder_layer.11} parent=1 // pred_check
      _
    $region15: #{transformer_decoder_layer.11} parent=1 // pred_check_branch
      %19 = sbr.rel (0) target = $region17
    $region16: #{transformer_decoder_layer.11} parent=1 // pred_region
      _
    $region17: #{transformer_decoder_layer.11} parent=1 // pred_fallthru
      _
    // Predicated region
    $region18: #{transformer_decoder_layer.11} parent=1 // pred_check
      _
    $region19: #{transformer_decoder_layer.11} parent=1 // pred_check_branch
      %21 = sbr.rel (0) target = $region21
    $region20: #{transformer_decoder_layer.11} parent=1 // pred_region
      _
    $region21: #{transformer_decoder_layer.11} parent=1 // pred_fallthru
      _
    // Predicated region
    $region22: #{transformer_decoder_layer.11} parent=1 // pred_check
      _
    $region23: #{transformer_decoder_layer.11} parent=1 // pred_check_branch
      %23 = sbr.rel (0) target = $region25
    $region24: #{transformer_decoder_layer.11} parent=1 // pred_region
      _
    $region25: #{transformer_decoder_layer.11} parent=1 // pred_fallthru
      _
    %p25 = scmp.eq.s32.totalorder 0, 0
    // Predicated region
    $region26: #{transformer_decoder_layer.11} parent=1 // pred_check
      %p26 = pneg %p25
    $region27: #{transformer_decoder_layer.11} parent=1 // pred_check_branch
      %28 = sbr.rel (%p26) target = $region29
    $region28: #{transformer_decoder_layer.11} parent=1 // pred_region
      %vm29 = vcmask 261120
      %30 = vst.msk [vmem:[#allocation2] sm:$0xff] %vm29, 0.0
      %31 = vst.msk [vmem:[#allocation2 + $0x8] sm:$0xff] %vm29, 0.0
    $region29: #{transformer_decoder_layer.11} parent=1 // pred_fallthru
      _
    %v32 = vld [vmem:[#allocation2] sm:$0xff]
    %v33 = vld [vmem:[#allocation2 + $0x8] sm:$0xff]
    %v34 = vld [vmem:[%s0] sm:$0xf]
    %v35 = vld [vmem:[%s0 + $0x4] sm:$0xf]
    %v36 = vld [vmem:[%s1] sm:$0xf]
    %v37 = vld [vmem:[%s1 + $0x4] sm:$0xf]
    %v38 = vld [vmem:[%s1 + $0x8] sm:$0xf]
    %v39 = vld [vmem:[%s1 + $0xc] sm:$0xf]
    %v40 = vld [vmem:[%s1 + $0x10] sm:$0xf]
    %v41 = vld [vmem:[%s1 + $0x14] sm:$0xf]
    %v42 = vld [vmem:[%s1 + $0x18] sm:$0xf]
    %v43 = vld [vmem:[%s1 + $0x1c] sm:$0xf]
    %v46 = vunpack.c.l.b16 %v34
    %v47 = vunpack.c.l.b16 %v35
    %v48 = vpack.c.b16 %v47, %v46
    %v57 = vunpack.c.l.b16 %v36
    %v58 = vunpack.c.l.b16 %v37
    %v59 = vunpack.c.l.b16 %v38
    %v60 = vunpack.c.l.b16 %v39
    %v61 = vunpack.c.l.b16 %v40
    %v62 = vunpack.c.l.b16 %v41
    %v63 = vunpack.c.l.b16 %v42
    %v64 = vunpack.c.l.b16 %v43
    %v65 = vpack.c.b16 %v58, %v57
    %v66 = vpack.c.b16 %v60, %v59
    %v67 = vpack.c.b16 %v62, %v61
    %v68 = vpack.c.b16 %v64, %v63
    %vm73 = vcmask 523264
    %v75 = vsel %vm73, %v48, 0
    %77 = vmatprep.subr.bf16.mxu0 0
    %78 = vmatpush1.bf16.msra.mxu0 0
    %79 = vmatprep.subr.bf16.mxu0 0
    %80 = vmatpush1.bf16.msra.mxu0 0
    %81 = vmatprep.subr.bf16.mxu0 0
    %82 = vmatpush1.bf16.msra.mxu0 0
    %83 = vmatprep.subr.bf16.mxu0 0
    %84 = vmatpush1.bf16.msra.mxu0 0
    %85 = vmatprep.subr.bf16.mxu0 0
    %86 = vmatpush1.bf16.msra.mxu0 %v68
    %87 = vmatprep.subr.bf16.mxu0 0
    %88 = vmatpush1.bf16.msra.mxu0 %v67
    %89 = vmatprep.subr.bf16.mxu0 0
    %90 = vmatpush1.bf16.msra.mxu0 %v66
    %91 = vmatprep.subr.bf16.mxu0 0
    %92 = vmatpush1.bf16.msra.mxu0 %v65
    %93 = vmatprep.subr.bf16.mxu0 0
    %94 = vmatpush2.bf16.msra.mxu0 0
    %95 = vmatprep.subr.bf16.mxu0 0
    %96 = vmatpush2.bf16.msra.mxu0 0
    %97 = vmatprep.subr.bf16.mxu0 0
    %98 = vmatpush2.bf16.msra.mxu0 0
    %99 = vmatprep.subr.bf16.mxu0 0
    %100 = vmatpush2.bf16.msra.mxu0 0
    %101 = vmatprep.subr.bf16.mxu0 0
    %102 = vmatpush2.bf16.msra.mxu0 0
    %103 = vmatprep.subr.bf16.mxu0 0
    %104 = vmatpush2.bf16.msra.mxu0 0
    %105 = vmatprep.subr.bf16.mxu0 0
    %106 = vmatpush2.bf16.msra.mxu0 0
    %107 = vmatprep.subr.bf16.mxu0 0
    %108 = vmatpush2.bf16.msra.mxu0 0
    %109 = vmatprep.mubr.bf16.mxu0 0
    %110 = vmatmul.mubr.bf16.gmra.mxu0 %v75
    %v111 = vpop.f32.mrf.mxu0
    %v112 = vadd.f32 0.0, %v111
    %v113 = vpop.f32.mrf.mxu0
    %v114 = vpop.f32.mrf.mxu0
    %v115 = vadd.f32 0.0, %v114
    %v116 = vpop.f32.mrf.mxu0
    %117 = vdwg.mxu0
    %v118 = vadd.f32 %v32, %v112
    %v119 = vadd.f32 %v33, %v115
    %vm120 = vcmask 261120
    %121 = vst.msk [vmem:[#allocation2] sm:$0xff] %vm120, %v118
    %122 = vst.msk [vmem:[#allocation2 + $0x8] sm:$0xff] %vm120, %v119
    // Predicated region
    $region30: #{transformer_decoder_layer.11} parent=1 // pred_check
      %p123 = pneg %p25
    $region31: #{transformer_decoder_layer.11} parent=1 // pred_check_branch
      %125 = sbr.rel (%p123) target = $region33
    $region32: #{transformer_decoder_layer.11} parent=1 // pred_region
      %v126 = vld [vmem:[#allocation2] sm:$0xff]
      %v127 = vld [vmem:[#allocation2 + $0x8] sm:$0xff]
      %v128 = vld [vmem:[%s2] sm:$0x1]
      %v130 = vlaneseq
      %v131 = vshrl.u32 %v130, 7
      %v132 = vsub.s32 0, %v131
      %v133 = vrot.slane %v128, %v132
      %v135 = vadd.f32 %v126, %v133
      %v136 = vadd.f32 %v127, %v133
      %v137 = vld [vmem:[%s3] sm:$0xff]
      %v138 = vld [vmem:[%s3 + $0x8] sm:$0xff]
      %v139 = vadd.f32 %v135, %v137
      %v140 = vadd.f32 %v136, %v138
      %v141 = vld [vmem:[%s4] sm:$0x1]
      %v142 = vld [vmem:[%s5] sm:$0x1]
      %v143 = vsel %vm120, %v139, 0.0
      %144 = vadd.xlane.f32.xlu0 %v143
      %v145 = vpop.xlane.xlu0 %144
      %v146 = vsel %vm120, %v140, 0.0
      %147 = vadd.xlane.f32.xlu0 %v146
      %v148 = vpop.xlane.xlu0 %147
      %v149 = vrcp.pop 32.0
      %v150 = vmul.f32 %v145, %v149
      %v151 = vmul.f32 %v148, %v149
      %v152 = vsub.f32 %v139, %v150
      %v153 = vsub.f32 %v140, %v151
      %v154 = vmul.f32 %v152, %v152
      %v155 = vmul.f32 %v153, %v153
      %v156 = vsel %vm120, %v154, 0.0
      %157 = vadd.xlane.f32.xlu0 %v156
      %v158 = vpop.xlane.xlu0 %157
      %v159 = vsel %vm120, %v155, 0.0
      %160 = vadd.xlane.f32.xlu0 %v159
      %v161 = vpop.xlane.xlu0 %160
      %v162 = vmul.f32 %v158, %v149
      %v163 = vmul.f32 %v161, %v149
      %v164 = vadd.f32 %v162, 1e-05
      %v165 = vadd.f32 %v163, 1e-05
      %v166 = vrsqrt.pop %v164
      %v167 = vrsqrt.pop %v165
      %v168 = vmul.f32 %v152, %v166
      %v169 = vmul.f32 %v153, %v167
      %v171 = vlaneseq
      %v172 = vshrl.u32 %v171, 7
      %v173 = vsub.s32 0, %v172
      %v174 = vrot.slane %v141, %v173
      %v176 = vmul.f32 %v168, %v174
      %v177 = vmul.f32 %v169, %v174
      %v179 = vlaneseq
      %v180 = vshrl.u32 %v179, 7
      %v181 = vsub.s32 0, %v180
      %v182 = vrot.slane %v142, %v181
      %v184 = vadd.f32 %v176, %v182
      %v185 = vadd.f32 %v177, %v182
      %186 = vst.msk [vmem:[#allocation3] sm:$0xff] %vm120, %v184
      %187 = vst.msk [vmem:[#allocation3 + $0x8] sm:$0xff] %vm120, %v185
    $region33: #{transformer_decoder_layer.11} parent=1 // pred_fallthru
      _
    // Predicated region
    $region34: #{transformer_decoder_layer.11} parent=1 // pred_check
      _
    $region35: #{transformer_decoder_layer.11} parent=1 // pred_check_branch
      %189 = sbr.rel (0) target = $region37
    $region36: #{transformer_decoder_layer.11} parent=1 // pred_region
      %s191 = ssub.s32 256, 256
      %192 = vsyncadd [#allocation4], %s191
      %s193 = sshll.u32 [#allocation3], 4
      %s194 = int_to_ptr.vmem [resolvable:$true] %s193
      %199 = dma.vmem_to_hbm [thread:$0]  %s194, 256, %s6, [#allocation4], 128, 128, 8
    $region37: #{transformer_decoder_layer.11} parent=1 // pred_fallthru
      _
    // Predicated region
    $region38: #{transformer_decoder_layer.11} parent=1 // pred_check
      _
    $region39: #{transformer_decoder_layer.11} parent=1 // pred_check_branch
      %201 = sbr.rel (0) target = $region41
    $region40: #{transformer_decoder_layer.11} parent=1 // pred_region
      %202 = dma.done [#allocation4], 256
    $region41: #{transformer_decoder_layer.11} parent=1 // pred_fallthru
      _
    %203 = vsyncpa [#allocation4], 1

</llo_original>
